<compile_context>
chip_gen: v6e
topology: v6e:2x2x1
jax: 0.10.0
libtpu: 0.0.40
codegen_flags: <defaults>
</compile_context>

<pallas_src>
import numpy as np
from math import exp

import jax
import jax.numpy as jnp
from jax.experimental import pallas as pl
from jax.experimental.pallas import tpu as pltpu


# ----------------------------------------------------------------------------
# Deterministic Gaussian window (same construction as the PyTorch module).
# ----------------------------------------------------------------------------
def gaussian_np(window_size: int, sigma: float) -> np.ndarray:
    g = np.array(
        [exp(-((x - window_size // 2) ** 2) / float(2 * sigma ** 2))
         for x in range(window_size)],
        dtype=np.float32,
    )
    return g / g.sum()


def create_window_np(window_size: int) -> np.ndarray:
    g = gaussian_np(window_size, 1.5).astype(np.float32)
    return np.outer(g, g).astype(np.float32)  # (ws, ws) 2D Gaussian window


# ----------------------------------------------------------------------------
# Compile-time banded "same"-conv matrices (zero padding folded in).
# ----------------------------------------------------------------------------
def _conv_matrices(window_size: int, H: int, W: int, G: int):
    g = gaussian_np(window_size, 1.5)
    pad = window_size // 2

    def same_matrix(L):
        M = np.zeros((L, L), np.float32)
        for i in range(L):
            for k in range(window_size):
                j = i + k - pad
                if 0 <= j < L:
                    M[i, j] = g[k]
        return M

    A = same_matrix(H)                 # vertical pass:   out = A @ x
    Bw = same_matrix(W).T              # horizontal pass: out = x @ Bw (per channel)
    B = np.kron(np.eye(G, dtype=np.float32), Bw)   # block-diag (G*W, G*W)
    return A, B


def _pick_group(nc: int, w: int, lane_target: int = 128,
                width_cap: int = 2048) -> int:
    """Smallest divisor of nc whose packed width >= lane_target (capped)."""
    divisors = [d for d in range(1, nc + 1) if nc % d == 0]
    under_cap = [d for d in divisors if d * w <= width_cap] or [1]
    for d in under_cap:
        if d * w >= lane_target:
            return d
    return under_cap[-1]


def _pack_channels(x: jax.Array, G: int) -> jax.Array:
    """(N, C, H, W) -> (N*C//G, H, G*W): G flat channels packed along lanes."""
    N, C, H, W = x.shape
    NCG = (N * C) // G
    return (x.reshape(NCG, G, H, W)
             .transpose(0, 2, 1, 3)
             .reshape(NCG, H, G * W))


# ----------------------------------------------------------------------------
# Pallas kernels
# ----------------------------------------------------------------------------
_C1 = 0.01 ** 2
_C2 = 0.03 ** 2


def _ssim_map_block(p1, p2, A, B):
    """SSIM map for one packed (H, G*W) block. Gaussian filter = 2 matmuls."""

    def gfilt(x):
        t = jnp.dot(A, x, precision=jax.lax.Precision.HIGHEST,
                    preferred_element_type=jnp.float32)
        return jnp.dot(t, B, precision=jax.lax.Precision.HIGHEST,
                       preferred_element_type=jnp.float32)

    mu1 = gfilt(p1)
    mu2 = gfilt(p2)
    s11 = gfilt(p1 * p1)
    s22 = gfilt(p2 * p2)
    s12 = gfilt(p1 * p2)

    mu1_sq = mu1 * mu1
    mu2_sq = mu2 * mu2
    mu1_mu2 = mu1 * mu2
    sigma1_sq = s11 - mu1_sq
    sigma2_sq = s22 - mu2_sq
    sigma12 = s12 - mu1_mu2

    num = (2.0 * mu1_mu2 + _C1) * (2.0 * sigma12 + _C2)
    den = (mu1_sq + mu2_sq + _C1) * (sigma1_sq + sigma2_sq + _C2)
    return num / den


def _ssim_accum_kernel(x1_ref, x2_ref, A_ref, B_ref, acc_ref):
    # acc_ref: (1, H, GW) f32 vector accumulator, resident across the inner
    # (reduction) grid axis; one block per "parallel" core slice.
    @pl.when(pl.program_id(1) == 0)
    def _():
        acc_ref[...] = jnp.zeros_like(acc_ref)

    sm = _ssim_map_block(x1_ref[0].astype(jnp.float32),
                         x2_ref[0].astype(jnp.float32),
                         A_ref[...], B_ref[...])
    acc_ref[0, :, :] = acc_ref[0, :, :] + sm


def _ssim_maps_kernel(x1_ref, x2_ref, A_ref, B_ref, out_ref):
    sm = _ssim_map_block(x1_ref[0].astype(jnp.float32),
                         x2_ref[0].astype(jnp.float32),
                         A_ref[...], B_ref[...])
    out_ref[0, :, :] = sm.astype(out_ref.dtype)


# ----------------------------------------------------------------------------
# Wrapper
# ----------------------------------------------------------------------------
def ssim_pallas(img1: jax.Array, img2: jax.Array,
                window_size: int = 11, size_average: bool = True) -> jax.Array:
    assert img1.shape == img2.shape and img1.ndim == 4
    N, C, H, W = img1.shape
    NC = N * C

    G = _pick_group(NC, W)          # channels packed per grid step
    NCG = NC // G
    GW = G * W

    A_np, B_np = _conv_matrices(window_size, H, W, G)
    A = jnp.asarray(A_np)           # (H, H)
    B = jnp.asarray(B_np)           # (GW, GW), block-diagonal

    x1 = _pack_channels(img1, G)    # (NCG, H, GW), native dtype (cast in kernel)
    x2 = _pack_channels(img2, G)

    # Megacore split of the channel-group axis (v7x has 2 TensorCores).
    P = 2 if (NCG % 2 == 0 and NCG >= 2) else 1
    inner = NCG // P

    in_specs = [
        pl.BlockSpec((1, H, GW), lambda p, i: (p * inner + i, 0, 0)),
        pl.BlockSpec((1, H, GW), lambda p, i: (p * inner + i, 0, 0)),
        pl.BlockSpec((H, H), lambda p, i: (0, 0)),
        pl.BlockSpec((GW, GW), lambda p, i: (0, 0)),
    ]

    if size_average:
        acc = pl.pallas_call(
            _ssim_accum_kernel,
            out_shape=jax.ShapeDtypeStruct((P, H, GW), jnp.float32),
            grid_spec=pltpu.PrefetchScalarGridSpec(
                num_scalar_prefetch=0,
                grid=(P, inner),
                in_specs=in_specs,
                out_specs=pl.BlockSpec((1, H, GW), lambda p, i: (p, 0, 0)),
            ),
            compiler_params=pltpu.CompilerParams(
                dimension_semantics=("parallel", "arbitrary")),
        )(x1, x2, A, B)
        # Single cross-lane reduction of the vector accumulators, in glue.
        return jnp.sum(acc) / jnp.float32(NC * H * W)

    # size_average=False: per-sample means (matches ssim_map.mean(1).mean(1).mean(1))
    maps = pl.pallas_call(
        _ssim_maps_kernel,
        out_shape=jax.ShapeDtypeStruct((NCG, H, GW), jnp.float32),
        grid_spec=pltpu.PrefetchScalarGridSpec(
            num_scalar_prefetch=0,
            grid=(P, inner),
            in_specs=in_specs,
            out_specs=pl.BlockSpec((1, H, GW),
                                   lambda p, i: (p * inner + i, 0, 0)),
        ),
        compiler_params=pltpu.CompilerParams(
            dimension_semantics=("parallel", "parallel")),
    )(x1, x2, A, B)
    maps = maps.reshape(NCG, H, G, W).transpose(0, 2, 1, 3).reshape(N, C, H, W)
    return maps.mean(axis=(1, 2, 3))


# ----------------------------------------------------------------------------
# Pure-JAX reference (for correctness check only).
# ----------------------------------------------------------------------------
def ssim_ref(img1, img2, window_size=11, size_average=True):
    N, C, H, W = img1.shape
    pad = window_size // 2
    w2d = jnp.asarray(create_window_np(window_size))
    win = jnp.broadcast_to(w2d[None, None], (C, 1, window_size, window_size))

    def conv(x):
        return jax.lax.conv_general_dilated(
            x, win, window_strides=(1, 1),
            padding=[(pad, pad), (pad, pad)],
            dimension_numbers=("NCHW", "OIHW", "NCHW"),
            feature_group_count=C,
            precision=jax.lax.Precision.HIGHEST)

    mu1, mu2 = conv(img1), conv(img2)
    mu1_sq, mu2_sq, mu1_mu2 = mu1 * mu1, mu2 * mu2, mu1 * mu2
    sigma1_sq = conv(img1 * img1) - mu1_sq
    sigma2_sq = conv(img2 * img2) - mu2_sq
    sigma12 = conv(img1 * img2) - mu1_mu2
    ssim_map = ((2 * mu1_mu2 + _C1) * (2 * sigma12 + _C2)) / (
        (mu1_sq + mu2_sq + _C1) * (sigma1_sq + sigma2_sq + _C2))
    if size_average:
        return ssim_map.mean()
    return ssim_map.mean(axis=(1, 2, 3))


if __name__ == "__main__":
    key = jax.random.PRNGKey(0)
    k1, k2, k3 = jax.random.split(key, 3)

    # Small NCHW inputs consistent with the module's forward.
    img1 = jax.random.uniform(k1, (2, 4, 16, 16), dtype=jnp.float32)
    noise = 0.1 * jax.random.normal(k3, img1.shape, dtype=jnp.float32)
    img2 = jnp.clip(img1 + noise, 0.0, 1.0)            # correlated pair
    img3 = jax.random.uniform(k2, img1.shape, dtype=jnp.float32)  # independent pair

    # size_average=True, correlated pair (typical SSIM usage)
    out = jax.block_until_ready(ssim_pallas(img1, img2, window_size=11))
    ref = jax.block_until_ready(ssim_ref(img1, img2, window_size=11))
    assert np.allclose(np.asarray(out), np.asarray(ref), rtol=1e-4, atol=1e-5), \
        (out, ref)

    # size_average=True, independent pair (numerator near C2 -> slightly looser)
    out_i = jax.block_until_ready(ssim_pallas(img1, img3, window_size=11))
    ref_i = jax.block_until_ready(ssim_ref(img1, img3, window_size=11))
    assert np.allclose(np.asarray(out_i), np.asarray(ref_i), rtol=2e-3, atol=1e-4), \
        (out_i, ref_i)

    # size_average=False: per-sample means
    out_ps = jax.block_until_ready(
        ssim_pallas(img1, img2, window_size=11, size_average=False))
    ref_ps = jax.block_until_ready(
        ssim_ref(img1, img2, window_size=11, size_average=False))
    assert out_ps.shape == (2,)
    assert np.allclose(np.asarray(out_ps), np.asarray(ref_ps), rtol=1e-4, atol=1e-5), \
        (out_ps, ref_ps)

    print("KERNEL_OK")
</pallas_src>

<mosaic_0001>
module attributes {stable_mosaic.version = 11 : i64} {
  func.func @_ssim_accum_kernel(%arg0: i32, %arg1: i32, %arg2: memref<1x16x128xf32, #tpu.memory_space<vmem>>, %arg3: memref<1x16x128xf32, #tpu.memory_space<vmem>>, %arg4: memref<16x16xf32, #tpu.memory_space<vmem>>, %arg5: memref<128x128xf32, #tpu.memory_space<vmem>>, %arg6: memref<1x16x128xf32, #tpu.memory_space<vmem>>) attributes {dimension_semantics = [#tpu.dimension_semantics<parallel>, #tpu.dimension_semantics<arbitrary>], iteration_bounds = array<i64: 1, 1>, scalar_prefetch = 0 : i64, scratch_operands = 0 : i64, tpu.core_type = #tpu.core_type<tc>, window_params = [{transform_indices = @transform_0, window_bounds = array<i64: 1, 16, 128>}, {transform_indices = @transform_1, window_bounds = array<i64: 1, 16, 128>}, {pipeline_mode = #tpu.pipeline_mode<synchronous>, transform_indices = @transform_2, window_bounds = array<i64: 16, 16>}, {pipeline_mode = #tpu.pipeline_mode<synchronous>, transform_indices = @transform_3, window_bounds = array<i64: 128, 128>}, {transform_indices = @transform_4, window_bounds = array<i64: 1, 16, 128>}]} {
    %c0_i32 = arith.constant 0 : i32
    %0 = arith.cmpi eq, %arg1, %c0_i32 : i32
    %1 = arith.extui %0 : i1 to i32
    %c0_i32_0 = arith.constant 0 : i32
    %2 = arith.cmpi ne, %1, %c0_i32_0 : i32
    scf.if %2 {
      %cst_31 = arith.constant 0.000000e+00 : f32
      %51 = vector.broadcast %cst_31 : f32 to vector<1x16x128xf32>
      %c0_32 = arith.constant 0 : index
      %c0_33 = arith.constant 0 : index
      %c0_34 = arith.constant 0 : index
      %52 = vector.load %arg6[%c0_32, %c0_33, %c0_34] : memref<1x16x128xf32, #tpu.memory_space<vmem>>, vector<1x16x128xf32>
      tpu.vector_store %arg6[%c0_32, %c0_33, %c0_34], %51 {strides = array<i32>} : memref<1x16x128xf32, #tpu.memory_space<vmem>>, vector<1x16x128xf32>,
    } else {
    }
    %c0 = arith.constant 0 : index
    %c0_1 = arith.constant 0 : index
    %c0_2 = arith.constant 0 : index
    %3 = vector.load %arg2[%c0, %c0_1, %c0_2] : memref<1x16x128xf32, #tpu.memory_space<vmem>>, vector<1x16x128xf32>
    %4 = vector.shape_cast %3 : vector<1x16x128xf32> to vector<16x128xf32>
    %c0_3 = arith.constant 0 : index
    %c0_4 = arith.constant 0 : index
    %c0_5 = arith.constant 0 : index
    %5 = vector.load %arg3[%c0_3, %c0_4, %c0_5] : memref<1x16x128xf32, #tpu.memory_space<vmem>>, vector<1x16x128xf32>
    %6 = vector.shape_cast %5 : vector<1x16x128xf32> to vector<16x128xf32>
    %c0_6 = arith.constant 0 : index
    %c0_7 = arith.constant 0 : index
    %7 = vector.load %arg4[%c0_6, %c0_7] : memref<16x16xf32, #tpu.memory_space<vmem>>, vector<16x16xf32>
    %c0_8 = arith.constant 0 : index
    %c0_9 = arith.constant 0 : index
    %8 = vector.load %arg5[%c0_8, %c0_9] : memref<128x128xf32, #tpu.memory_space<vmem>>, vector<128x128xf32>
    %cst = arith.constant dense<0.000000e+00> : vector<16x128xf32>
    %9 = tpu.matmul %7, %4, %cst {dimension_numbers = #tpu.dot_dimension_numbers<[1], [0], [0], [1], [0, 0, 1, 1], [], []>, precision = #tpu.contract_precision<fp32>} : vector<16x16xf32>, vector<16x128xf32>, vector<16x128xf32> -> vector<16x128xf32>
    %cst_10 = arith.constant dense<0.000000e+00> : vector<16x128xf32>
    %10 = tpu.matmul %9, %8, %cst_10 {dimension_numbers = #tpu.dot_dimension_numbers<[1], [0], [0], [1], [0, 0, 1, 1], [], []>, precision = #tpu.contract_precision<fp32>} : vector<16x128xf32>, vector<128x128xf32>, vector<16x128xf32> -> vector<16x128xf32>
    %cst_11 = arith.constant dense<0.000000e+00> : vector<16x128xf32>
    %11 = tpu.matmul %7, %6, %cst_11 {dimension_numbers = #tpu.dot_dimension_numbers<[1], [0], [0], [1], [0, 0, 1, 1], [], []>, precision = #tpu.contract_precision<fp32>} : vector<16x16xf32>, vector<16x128xf32>, vector<16x128xf32> -> vector<16x128xf32>
    %cst_12 = arith.constant dense<0.000000e+00> : vector<16x128xf32>
    %12 = tpu.matmul %11, %8, %cst_12 {dimension_numbers = #tpu.dot_dimension_numbers<[1], [0], [0], [1], [0, 0, 1, 1], [], []>, precision = #tpu.contract_precision<fp32>} : vector<16x128xf32>, vector<128x128xf32>, vector<16x128xf32> -> vector<16x128xf32>
    %13 = arith.mulf %4, %4 : vector<16x128xf32>
    %cst_13 = arith.constant dense<0.000000e+00> : vector<16x128xf32>
    %14 = tpu.matmul %7, %13, %cst_13 {dimension_numbers = #tpu.dot_dimension_numbers<[1], [0], [0], [1], [0, 0, 1, 1], [], []>, precision = #tpu.contract_precision<fp32>} : vector<16x16xf32>, vector<16x128xf32>, vector<16x128xf32> -> vector<16x128xf32>
    %cst_14 = arith.constant dense<0.000000e+00> : vector<16x128xf32>
    %15 = tpu.matmul %14, %8, %cst_14 {dimension_numbers = #tpu.dot_dimension_numbers<[1], [0], [0], [1], [0, 0, 1, 1], [], []>, precision = #tpu.contract_precision<fp32>} : vector<16x128xf32>, vector<128x128xf32>, vector<16x128xf32> -> vector<16x128xf32>
    %16 = arith.mulf %6, %6 : vector<16x128xf32>
    %cst_15 = arith.constant dense<0.000000e+00> : vector<16x128xf32>
    %17 = tpu.matmul %7, %16, %cst_15 {dimension_numbers = #tpu.dot_dimension_numbers<[1], [0], [0], [1], [0, 0, 1, 1], [], []>, precision = #tpu.contract_precision<fp32>} : vector<16x16xf32>, vector<16x128xf32>, vector<16x128xf32> -> vector<16x128xf32>
    %cst_16 = arith.constant dense<0.000000e+00> : vector<16x128xf32>
    %18 = tpu.matmul %17, %8, %cst_16 {dimension_numbers = #tpu.dot_dimension_numbers<[1], [0], [0], [1], [0, 0, 1, 1], [], []>, precision = #tpu.contract_precision<fp32>} : vector<16x128xf32>, vector<128x128xf32>, vector<16x128xf32> -> vector<16x128xf32>
    %19 = arith.mulf %4, %6 : vector<16x128xf32>
    %cst_17 = arith.constant dense<0.000000e+00> : vector<16x128xf32>
    %20 = tpu.matmul %7, %19, %cst_17 {dimension_numbers = #tpu.dot_dimension_numbers<[1], [0], [0], [1], [0, 0, 1, 1], [], []>, precision = #tpu.contract_precision<fp32>} : vector<16x16xf32>, vector<16x128xf32>, vector<16x128xf32> -> vector<16x128xf32>
    %cst_18 = arith.constant dense<0.000000e+00> : vector<16x128xf32>
    %21 = tpu.matmul %20, %8, %cst_18 {dimension_numbers = #tpu.dot_dimension_numbers<[1], [0], [0], [1], [0, 0, 1, 1], [], []>, precision = #tpu.contract_precision<fp32>} : vector<16x128xf32>, vector<128x128xf32>, vector<16x128xf32> -> vector<16x128xf32>
    %22 = arith.mulf %10, %10 : vector<16x128xf32>
    %23 = arith.mulf %12, %12 : vector<16x128xf32>
    %24 = arith.mulf %10, %12 : vector<16x128xf32>
    %25 = arith.subf %15, %22 : vector<16x128xf32>
    %26 = arith.subf %18, %23 : vector<16x128xf32>
    %27 = arith.subf %21, %24 : vector<16x128xf32>
    %cst_19 = arith.constant 2.000000e+00 : f32
    %28 = vector.broadcast %cst_19 : f32 to vector<16x128xf32>
    %29 = arith.mulf %28, %24 : vector<16x128xf32>
    %cst_20 = arith.constant 9.99999974E-5 : f32
    %30 = vector.broadcast %cst_20 : f32 to vector<16x128xf32>
    %31 = arith.addf %29, %30 : vector<16x128xf32>
    %cst_21 = arith.constant 2.000000e+00 : f32
    %32 = vector.broadcast %cst_21 : f32 to vector<16x128xf32>
    %33 = arith.mulf %32, %27 : vector<16x128xf32>
    %cst_22 = arith.constant 8.99999984E-4 : f32
    %34 = vector.broadcast %cst_22 : f32 to vector<16x128xf32>
    %35 = arith.addf %33, %34 : vector<16x128xf32>
    %36 = arith.mulf %31, %35 : vector<16x128xf32>
    %37 = arith.addf %22, %23 : vector<16x128xf32>
    %cst_23 = arith.constant 9.99999974E-5 : f32
    %38 = vector.broadcast %cst_23 : f32 to vector<16x128xf32>
    %39 = arith.addf %37, %38 : vector<16x128xf32>
    %40 = arith.addf %25, %26 : vector<16x128xf32>
    %cst_24 = arith.constant 8.99999984E-4 : f32
    %41 = vector.broadcast %cst_24 : f32 to vector<16x128xf32>
    %42 = arith.addf %40, %41 : vector<16x128xf32>
    %43 = arith.mulf %39, %42 : vector<16x128xf32>
    %44 = arith.divf %36, %43 : vector<16x128xf32>
    %c0_25 = arith.constant 0 : index
    %c0_26 = arith.constant 0 : index
    %c0_27 = arith.constant 0 : index
    %45 = vector.load %arg6[%c0_25, %c0_26, %c0_27] : memref<1x16x128xf32, #tpu.memory_space<vmem>>, vector<1x16x128xf32>
    %46 = vector.shape_cast %45 : vector<1x16x128xf32> to vector<16x128xf32>
    %47 = arith.addf %46, %44 : vector<16x128xf32>
    %c0_28 = arith.constant 0 : index
    %c0_29 = arith.constant 0 : index
    %c0_30 = arith.constant 0 : index
    %48 = vector.load %arg6[%c0_28, %c0_29, %c0_30] : memref<1x16x128xf32, #tpu.memory_space<vmem>>, vector<1x16x128xf32>
    %49 = vector.shape_cast %48 : vector<1x16x128xf32> to vector<16x128xf32>
    %50 = vector.shape_cast %47 : vector<16x128xf32> to vector<1x16x128xf32>
    tpu.vector_store %arg6[%c0_28, %c0_29, %c0_30], %50 {strides = array<i32>} : memref<1x16x128xf32, #tpu.memory_space<vmem>>, vector<1x16x128xf32>,
    return
  }
  func.func @transform_0(%arg0: i32, %arg1: i32) -> (i32, i32, i32) {
    %c1_i32 = arith.constant 1 : i32
    %0 = arith.muli %arg0, %c1_i32 : i32
    %1 = arith.addi %0, %arg1 : i32
    %c0_i32 = arith.constant 0 : i32
    %c0_i32_0 = arith.constant 0 : i32
    %c0_i32_1 = arith.constant 0 : i32
    return %1, %c0_i32, %c0_i32_0 : i32, i32, i32
  }
  func.func @transform_1(%arg0: i32, %arg1: i32) -> (i32, i32, i32) {
    %c1_i32 = arith.constant 1 : i32
    %0 = arith.muli %arg0, %c1_i32 : i32
    %1 = arith.addi %0, %arg1 : i32
    %c0_i32 = arith.constant 0 : i32
    %c0_i32_0 = arith.constant 0 : i32
    %c0_i32_1 = arith.constant 0 : i32
    return %1, %c0_i32, %c0_i32_0 : i32, i32, i32
  }
  func.func @transform_2(%arg0: i32, %arg1: i32) -> (i32, i32) {
    %c0_i32 = arith.constant 0 : i32
    %c0_i32_0 = arith.constant 0 : i32
    %c0_i32_1 = arith.constant 0 : i32
    return %c0_i32, %c0_i32_0 : i32, i32
  }
  func.func @transform_3(%arg0: i32, %arg1: i32) -> (i32, i32) {
    %c0_i32 = arith.constant 0 : i32
    %c0_i32_0 = arith.constant 0 : i32
    %c0_i32_1 = arith.constant 0 : i32
    return %c0_i32, %c0_i32_0 : i32, i32
  }
  func.func @transform_4(%arg0: i32, %arg1: i32) -> (i32, i32, i32) {
    %c0_i32 = arith.constant 0 : i32
    %c0_i32_0 = arith.constant 0 : i32
    %c0_i32_1 = arith.constant 0 : i32
    return %arg0, %c0_i32, %c0_i32_0 : i32, i32, i32
  }
}

</mosaic_0001>

<llo_original>
// kernel: tpu_custom_call.1
$region0: #{tpu_custom_call.1}
  #allocation0 [shape = 'u32[]', space=smem, size = 0x4, offset = 0x4, fixed_abs, tag = 'smem constant byte address 0x4 - core index']
  #allocation1 [shape = 'u32[144,128]{1,0:T(1,128)}', space=vmem, size = 0x12000, scoped, tag = 'internal scratch']
  %s0 = inlined_call_operand.hbm [shape: f32[1,16,128], index: 0, kind: input, shape index: {}]
  %s1 = inlined_call_operand.hbm [shape: f32[1,16,128], index: 1, kind: input, shape index: {}]
  %s2 = inlined_call_operand.hbm [shape: f32[16,16], index: 2, kind: input, shape index: {}]
  %s3 = inlined_call_operand.hbm [shape: f32[128,128], index: 3, kind: input, shape index: {}]
  %s4 = inlined_call_operand.hbm [shape: f32[1,16,128], index: 4, kind: output, shape index: {}]
  %s5 = sld [smem:[#allocation0]]
  $region46: #{tpu_custom_call.1} parent=0
    _
  %s7 = ssub.s32 1, %s5
  %s8 = scalar_select 0, %s7, %s5
  $region1: #{tpu_custom_call.1} parent=0
    #allocation2 [shape = 'u8[8192]{0}', space=vmem, size = 0x2000, scoped, tag = 'input window, operand 0, single buffered']
    #allocation3 [shape = 's32[1]{0}', space=sflag, size = 0x4, scoped, tag = 'scoped memory for tpu_custom_call.1']
    #allocation4 [shape = 's32[1]{0}', space=sflag, size = 0x4, scoped, tag = 'scoped memory for tpu_custom_call.1']
    #allocation5 [shape = 'u8[8192]{0}', space=vmem, size = 0x2000, scoped, tag = 'input window, operand 1, single buffered']
    #allocation6 [shape = 's32[1]{0}', space=sflag, size = 0x4, scoped, tag = 'scoped memory for tpu_custom_call.1']
    #allocation7 [shape = 'u8[8192]{0}', space=vmem, size = 0x2000, scoped, tag = 'input window, operand 2, single buffered']
    #allocation8 [shape = 'u8[65536]{0}', space=vmem, size = 0x10000, scoped, tag = 'input window, operand 3, single buffered']
    #allocation9 [shape = 's32[1]{0}', space=sflag, size = 0x4, scoped, tag = 'scoped memory for tpu_custom_call.1']
    #allocation10 [shape = 'u8[8192]{0}', space=vmem, size = 0x2000, scoped, tag = 'output window, operand 0, single buffered']
    %9 = vsyncpa [#allocation3], 0
    %10 = vsyncpa [#allocation6], 0
    %11 = vsyncpa [#allocation9], 0
    %12 = vsyncpa [#allocation4], 0
    // Predicated region
    $region2: #{tpu_custom_call.1} parent=1 // pred_check
      _
    $region3: #{tpu_custom_call.1} parent=1 // pred_check_branch
      %14 = sbr.rel (0) target = $region5
    $region4: #{tpu_custom_call.1} parent=1 // pred_region
      %s15 = sadd.s32 0, 0
      %s17 = ssub.s32 256, 256
      %18 = vsyncadd [#allocation3], %s17
      %s19 = smul.addr %s15, 2
      %s20 = smul.addr %s19, 128
      %s21 = scalar_lea.hbm %s0, %s20
      %s22 = sshll.u32 [#allocation2], 4
      %s23 = int_to_ptr.vmem [resolvable:$true] %s22
      %28 = dma.hbm_to_vmem [thread:$0]  %s21, 256, %s23, [#allocation3], 128, 128, 8
    $region5: #{tpu_custom_call.1} parent=1 // pred_fallthru
      _
    // Predicated region
    $region6: #{tpu_custom_call.1} parent=1 // pred_check
      _
    $region7: #{tpu_custom_call.1} parent=1 // pred_check_branch
      %30 = sbr.rel (0) target = $region9
    $region8: #{tpu_custom_call.1} parent=1 // pred_region
      %s31 = sadd.s32 0, 0
      %s33 = ssub.s32 256, 256
      %34 = vsyncadd [#allocation6], %s33
      %s35 = smul.addr %s31, 2
      %s36 = smul.addr %s35, 128
      %s37 = scalar_lea.hbm %s1, %s36
      %s38 = sshll.u32 [#allocation5], 4
      %s39 = int_to_ptr.vmem [resolvable:$true] %s38
      %44 = dma.hbm_to_vmem [thread:$0]  %s37, 256, %s39, [#allocation6], 128, 128, 8
    $region9: #{tpu_custom_call.1} parent=1 // pred_fallthru
      _
    // Predicated region
    $region10: #{tpu_custom_call.1} parent=1 // pred_check
      _
    $region11: #{tpu_custom_call.1} parent=1 // pred_check_branch
      %46 = sbr.rel (0) target = $region13
    $region12: #{tpu_custom_call.1} parent=1 // pred_region
      %s48 = ssub.s32 256, 256
      %49 = vsyncadd [#allocation6], %s48
      %s50 = sshll.u32 [#allocation7], 4
      %s51 = int_to_ptr.vmem [resolvable:$true] %s50
      %56 = dma.hbm_to_vmem [thread:$0]  %s2, 256, %s51, [#allocation6], 128, 128, 8
    $region13: #{tpu_custom_call.1} parent=1 // pred_fallthru
      _
    // Predicated region
    $region14: #{tpu_custom_call.1} parent=1 // pred_check
      _
    $region15: #{tpu_custom_call.1} parent=1 // pred_check_branch
      %58 = sbr.rel (0) target = $region17
    $region16: #{tpu_custom_call.1} parent=1 // pred_region
      %s60 = ssub.s32 2048, 2048
      %61 = vsyncadd [#allocation9], %s60
      %s62 = sshll.u32 [#allocation8], 4
      %s63 = int_to_ptr.vmem [resolvable:$true] %s62
      %68 = dma.hbm_to_vmem [thread:$0]  %s3, 2048, %s63, [#allocation9], 128, 128, 8
    $region17: #{tpu_custom_call.1} parent=1 // pred_fallthru
      _
    // Predicated region
    $region18: #{tpu_custom_call.1} parent=1 // pred_check
      _
    $region19: #{tpu_custom_call.1} parent=1 // pred_check_branch
      %70 = sbr.rel (0) target = $region21
    $region20: #{tpu_custom_call.1} parent=1 // pred_region
      %71 = dma.done [#allocation3], 256
    $region21: #{tpu_custom_call.1} parent=1 // pred_fallthru
      _
    // Predicated region
    $region22: #{tpu_custom_call.1} parent=1 // pred_check
      _
    $region23: #{tpu_custom_call.1} parent=1 // pred_check_branch
      %73 = sbr.rel (0) target = $region25
    $region24: #{tpu_custom_call.1} parent=1 // pred_region
      %74 = dma.done [#allocation6], 256
    $region25: #{tpu_custom_call.1} parent=1 // pred_fallthru
      _
    // Predicated region
    $region26: #{tpu_custom_call.1} parent=1 // pred_check
      _
    $region27: #{tpu_custom_call.1} parent=1 // pred_check_branch
      %76 = sbr.rel (0) target = $region29
    $region28: #{tpu_custom_call.1} parent=1 // pred_region
      %77 = dma.done [#allocation6], 256
    $region29: #{tpu_custom_call.1} parent=1 // pred_fallthru
      _
    // Predicated region
    $region30: #{tpu_custom_call.1} parent=1 // pred_check
      _
    $region31: #{tpu_custom_call.1} parent=1 // pred_check_branch
      %79 = sbr.rel (0) target = $region33
    $region32: #{tpu_custom_call.1} parent=1 // pred_region
      %80 = dma.done [#allocation9], 2048
    $region33: #{tpu_custom_call.1} parent=1 // pred_fallthru
      _
    %s81 = sadd.s32 0, 0
    %s82 = sadd.s32 0, 0
    %p83 = scmp.eq.s32.totalorder 0, 0
    // Predicated region
    $region34: #{tpu_custom_call.1} parent=1 // pred_check
      %p84 = pneg %p83
    $region35: #{tpu_custom_call.1} parent=1 // pred_check_branch
      %86 = sbr.rel (%p84) target = $region37
    $region36: #{tpu_custom_call.1} parent=1 // pred_region
      %87 = vst [vmem:[#allocation10] sm:$0xff] 0.0
      %88 = vst [vmem:[#allocation10 + $0x8] sm:$0xff] 0.0
    $region37: #{tpu_custom_call.1} parent=1 // pred_fallthru
      _
    %v89 = vld [vmem:[#allocation2] sm:$0xff]
    %v90 = vld [vmem:[#allocation2 + $0x8] sm:$0xff]
    %v91 = vld [vmem:[#allocation5] sm:$0xff]
    %v92 = vld [vmem:[#allocation5 + $0x8] sm:$0xff]
    %v93 = vld [vmem:[#allocation7] sm:$0xff]
    %v94 = vld [vmem:[#allocation7 + $0x8] sm:$0xff]
    %v95 = vld [vmem:[#allocation8] sm:$0xff]
    %v96 = vld [vmem:[#allocation8 + $0x8] sm:$0xff]
    %v97 = vld [vmem:[#allocation8 + $0x10] sm:$0xff]
    %v98 = vld [vmem:[#allocation8 + $0x18] sm:$0xff]
    %v99 = vld [vmem:[#allocation8 + $0x20] sm:$0xff]
    %v100 = vld [vmem:[#allocation8 + $0x28] sm:$0xff]
    %v101 = vld [vmem:[#allocation8 + $0x30] sm:$0xff]
    %v102 = vld [vmem:[#allocation8 + $0x38] sm:$0xff]
    %v103 = vld [vmem:[#allocation8 + $0x40] sm:$0xff]
    %v104 = vld [vmem:[#allocation8 + $0x48] sm:$0xff]
    %v105 = vld [vmem:[#allocation8 + $0x50] sm:$0xff]
    %v106 = vld [vmem:[#allocation8 + $0x58] sm:$0xff]
    %v107 = vld [vmem:[#allocation8 + $0x60] sm:$0xff]
    %v108 = vld [vmem:[#allocation8 + $0x68] sm:$0xff]
    %v109 = vld [vmem:[#allocation8 + $0x70] sm:$0xff]
    %v110 = vld [vmem:[#allocation8 + $0x78] sm:$0xff]
    %vm111 = vcmask 130048
    %v113 = vsel %vm111, %v93, 0
    %v116 = vsel %vm111, %v94, 0
    %118 = vmatprep.subr.mxu0 0.0
    %119 = vmatpush1.msra.mxu0 0.0
    %120 = vmatprep.subr.mxu0 0.0
    %121 = vmatpush1.msra.mxu0 0.0
    %122 = vmatprep.subr.mxu0 0.0
    %123 = vmatpush1.msra.mxu0 0.0
    %124 = vmatprep.subr.mxu0 0.0
    %125 = vmatpush1.msra.mxu0 0.0
    %126 = vmatprep.subr.mxu0 0.0
    %127 = vmatpush1.msra.mxu0 0.0
    %128 = vmatprep.subr.mxu0 0.0
    %129 = vmatpush1.msra.mxu0 0.0
    %130 = vmatprep.subr.mxu0 0.0
    %131 = vmatpush1.msra.mxu0 0.0
    %132 = vmatprep.subr.mxu0 0.0
    %133 = vmatpush1.msra.mxu0 0.0
    %134 = vmatprep.subr.mxu0 0.0
    %135 = vmatpush1.msra.mxu0 0.0
    %136 = vmatprep.subr.mxu0 0.0
    %137 = vmatpush1.msra.mxu0 0.0
    %138 = vmatprep.subr.mxu0 0.0
    %139 = vmatpush1.msra.mxu0 0.0
    %140 = vmatprep.subr.mxu0 0.0
    %141 = vmatpush1.msra.mxu0 0.0
    %142 = vmatprep.subr.mxu0 0.0
    %143 = vmatpush1.msra.mxu0 0.0
    %144 = vmatprep.subr.mxu0 0.0
    %145 = vmatpush1.msra.mxu0 0.0
    %146 = vmatprep.subr.mxu0 0.0
    %v147 = vand.u32 %v90, 4294901760
    %148 = vmatpush1.msra.mxu0 %v147
    %149 = vmatprep.subr.mxu0 0.0
    %v150 = vand.u32 %v89, 4294901760
    %151 = vmatpush1.msra.mxu0 %v150
    %152 = vmatprep.subr.mxu0 0.0
    %153 = vmatpush2.msra.mxu0 0.0
    %154 = vmatprep.subr.mxu0 0.0
    %155 = vmatpush2.msra.mxu0 0.0
    %156 = vmatprep.subr.mxu0 0.0
    %157 = vmatpush2.msra.mxu0 0.0
    %158 = vmatprep.subr.mxu0 0.0
    %159 = vmatpush2.msra.mxu0 0.0
    %160 = vmatprep.subr.mxu0 0.0
    %161 = vmatpush2.msra.mxu0 0.0
    %162 = vmatprep.subr.mxu0 0.0
    %163 = vmatpush2.msra.mxu0 0.0
    %164 = vmatprep.subr.mxu0 0.0
    %165 = vmatpush2.msra.mxu0 0.0
    %166 = vmatprep.subr.mxu0 0.0
    %167 = vmatpush2.msra.mxu0 0.0
    %168 = vmatprep.subr.mxu0 0.0
    %169 = vmatpush2.msra.mxu0 0.0
    %170 = vmatprep.subr.mxu0 0.0
    %171 = vmatpush2.msra.mxu0 0.0
    %172 = vmatprep.subr.mxu0 0.0
    %173 = vmatpush2.msra.mxu0 0.0
    %174 = vmatprep.subr.mxu0 0.0
    %175 = vmatpush2.msra.mxu0 0.0
    %176 = vmatprep.subr.mxu0 0.0
    %177 = vmatpush2.msra.mxu0 0.0
    %178 = vmatprep.subr.mxu0 0.0
    %179 = vmatpush2.msra.mxu0 0.0
    %180 = vmatprep.subr.mxu0 0.0
    %181 = vmatpush2.msra.mxu0 0.0
    %182 = vmatprep.subr.mxu0 0.0
    %183 = vmatpush2.msra.mxu0 0.0
    %184 = vmatprep.mubr.f32.mxu0 0.0
    %v185 = vand.u32 %v113, 4294901760
    %v186 = vsub.f32 %v113, %v185
    %v187 = vand.u32 %v186, 4294901760
    %v188 = vsub.f32 %v186, %v187
    %v189 = vand.u32 %v188, 4294901760
    %190 = vmatmul.mubr.f32.gmra.mxu0 %v189
    %v191 = vpop.f32.mrf.mxu0
    %v192 = vadd.f32 0.0, %v191
    %v193 = vpop.f32.mrf.mxu0
    %194 = vmatprep.mubr.f32.mxu0 0.0
    %v195 = vand.u32 %v116, 4294901760
    %v196 = vsub.f32 %v116, %v195
    %v197 = vand.u32 %v196, 4294901760
    %v198 = vsub.f32 %v196, %v197
    %v199 = vand.u32 %v198, 4294901760
    %200 = vmatmul.mubr.f32.gmra.mxu0 %v199
    %v201 = vpop.f32.mrf.mxu0
    %v202 = vadd.f32 0.0, %v201
    %v203 = vpop.f32.mrf.mxu0
    %204 = vdwg.mxu0
    %205 = vmatprep.subr.mxu0 0.0
    %206 = vmatpush1.msra.mxu0 0.0
    %207 = vmatprep.subr.mxu0 0.0
    %208 = vmatpush1.msra.mxu0 0.0
    %209 = vmatprep.subr.mxu0 0.0
    %210 = vmatpush1.msra.mxu0 0.0
    %211 = vmatprep.subr.mxu0 0.0
    %212 = vmatpush1.msra.mxu0 0.0
    %213 = vmatprep.subr.mxu0 0.0
    %214 = vmatpush1.msra.mxu0 0.0
    %215 = vmatprep.subr.mxu0 0.0
    %216 = vmatpush1.msra.mxu0 0.0
    %217 = vmatprep.subr.mxu0 0.0
    %218 = vmatpush1.msra.mxu0 0.0
    %219 = vmatprep.subr.mxu0 0.0
    %220 = vmatpush1.msra.mxu0 0.0
    %221 = vmatprep.subr.mxu0 0.0
    %222 = vmatpush1.msra.mxu0 0.0
    %223 = vmatprep.subr.mxu0 0.0
    %224 = vmatpush1.msra.mxu0 0.0
    %225 = vmatprep.subr.mxu0 0.0
    %226 = vmatpush1.msra.mxu0 0.0
    %227 = vmatprep.subr.mxu0 0.0
    %228 = vmatpush1.msra.mxu0 0.0
    %229 = vmatprep.subr.mxu0 0.0
    %230 = vmatpush1.msra.mxu0 0.0
    %231 = vmatprep.subr.mxu0 0.0
    %232 = vmatpush1.msra.mxu0 0.0
    %233 = vmatprep.subr.mxu0 0.0
    %v234 = vand.u32 %v90, 4294901760
    %v235 = vsub.f32 %v90, %v234
    %v236 = vand.u32 %v235, 4294901760
    %v237 = vsub.f32 %v235, %v236
    %v238 = vand.u32 %v237, 4294901760
    %239 = vmatpush1.msra.mxu0 %v238
    %240 = vmatprep.subr.mxu0 0.0
    %v241 = vand.u32 %v89, 4294901760
    %v242 = vsub.f32 %v89, %v241
    %v243 = vand.u32 %v242, 4294901760
    %v244 = vsub.f32 %v242, %v243
    %v245 = vand.u32 %v244, 4294901760
    %246 = vmatpush1.msra.mxu0 %v245
    %247 = vmatprep.subr.mxu0 0.0
    %248 = vmatpush2.msra.mxu0 0.0
    %249 = vmatprep.subr.mxu0 0.0
    %250 = vmatpush2.msra.mxu0 0.0
    %251 = vmatprep.subr.mxu0 0.0
    %252 = vmatpush2.msra.mxu0 0.0
    %253 = vmatprep.subr.mxu0 0.0
    %254 = vmatpush2.msra.mxu0 0.0
    %255 = vmatprep.subr.mxu0 0.0
    %256 = vmatpush2.msra.mxu0 0.0
    %257 = vmatprep.subr.mxu0 0.0
    %258 = vmatpush2.msra.mxu0 0.0
    %259 = vmatprep.subr.mxu0 0.0
    %260 = vmatpush2.msra.mxu0 0.0
    %261 = vmatprep.subr.mxu0 0.0
    %262 = vmatpush2.msra.mxu0 0.0
    %263 = vmatprep.subr.mxu0 0.0
    %264 = vmatpush2.msra.mxu0 0.0
    %265 = vmatprep.subr.mxu0 0.0
    %266 = vmatpush2.msra.mxu0 0.0
    %267 = vmatprep.subr.mxu0 0.0
    %268 = vmatpush2.msra.mxu0 0.0
    %269 = vmatprep.subr.mxu0 0.0
    %270 = vmatpush2.msra.mxu0 0.0
    %271 = vmatprep.subr.mxu0 0.0
    %272 = vmatpush2.msra.mxu0 0.0
    %273 = vmatprep.subr.mxu0 0.0
    %274 = vmatpush2.msra.mxu0 0.0
    %275 = vmatprep.subr.mxu0 0.0
    %276 = vmatpush2.msra.mxu0 0.0
    %277 = vmatprep.subr.mxu0 0.0
    %278 = vmatpush2.msra.mxu0 0.0
    %279 = vmatprep.mubr.f32.mxu0 0.0
    %v280 = vand.u32 %v113, 4294901760
    %281 = vmatmul.mubr.f32.gmra.mxu0 %v280
    %v282 = vpop.f32.mrf.mxu0
    %v283 = vadd.f32 %v192, %v282
    %v284 = vpop.f32.mrf.mxu0
    %285 = vmatprep.mubr.f32.mxu0 0.0
    %v286 = vand.u32 %v116, 4294901760
    %287 = vmatmul.mubr.f32.gmra.mxu0 %v286
    %v288 = vpop.f32.mrf.mxu0
    %v289 = vadd.f32 %v202, %v288
    %v290 = vpop.f32.mrf.mxu0
    %291 = vdwg.mxu0
    %292 = vmatprep.subr.mxu0 0.0
    %293 = vmatpush1.msra.mxu0 0.0
    %294 = vmatprep.subr.mxu0 0.0
    %295 = vmatpush1.msra.mxu0 0.0
    %296 = vmatprep.subr.mxu0 0.0
    %297 = vmatpush1.msra.mxu0 0.0
    %298 = vmatprep.subr.mxu0 0.0
    %299 = vmatpush1.msra.mxu0 0.0
    %300 = vmatprep.subr.mxu0 0.0
    %301 = vmatpush1.msra.mxu0 0.0
    %302 = vmatprep.subr.mxu0 0.0
    %303 = vmatpush1.msra.mxu0 0.0
    %304 = vmatprep.subr.mxu0 0.0
    %305 = vmatpush1.msra.mxu0 0.0
    %306 = vmatprep.subr.mxu0 0.0
    %307 = vmatpush1.msra.mxu0 0.0
    %308 = vmatprep.subr.mxu0 0.0
    %309 = vmatpush1.msra.mxu0 0.0
    %310 = vmatprep.subr.mxu0 0.0
    %311 = vmatpush1.msra.mxu0 0.0
    %312 = vmatprep.subr.mxu0 0.0
    %313 = vmatpush1.msra.mxu0 0.0
    %314 = vmatprep.subr.mxu0 0.0
    %315 = vmatpush1.msra.mxu0 0.0
    %316 = vmatprep.subr.mxu0 0.0
    %317 = vmatpush1.msra.mxu0 0.0
    %318 = vmatprep.subr.mxu0 0.0
    %319 = vmatpush1.msra.mxu0 0.0
    %320 = vmatprep.subr.mxu0 0.0
    %v321 = vand.u32 %v90, 4294901760
    %v322 = vsub.f32 %v90, %v321
    %323 = vmatpush1.msra.mxu0 %v322
    %324 = vmatprep.subr.mxu0 0.0
    %v325 = vand.u32 %v89, 4294901760
    %v326 = vsub.f32 %v89, %v325
    %327 = vmatpush1.msra.mxu0 %v326
    %328 = vmatprep.subr.mxu0 0.0
    %329 = vmatpush2.msra.mxu0 0.0
    %330 = vmatprep.subr.mxu0 0.0
    %331 = vmatpush2.msra.mxu0 0.0
    %332 = vmatprep.subr.mxu0 0.0
    %333 = vmatpush2.msra.mxu0 0.0
    %334 = vmatprep.subr.mxu0 0.0
    %335 = vmatpush2.msra.mxu0 0.0
    %336 = vmatprep.subr.mxu0 0.0
    %337 = vmatpush2.msra.mxu0 0.0
    %338 = vmatprep.subr.mxu0 0.0
    %339 = vmatpush2.msra.mxu0 0.0
    %340 = vmatprep.subr.mxu0 0.0
    %341 = vmatpush2.msra.mxu0 0.0
    %342 = vmatprep.subr.mxu0 0.0
    %343 = vmatpush2.msra.mxu0 0.0
    %344 = vmatprep.subr.mxu0 0.0
    %345 = vmatpush2.msra.mxu0 0.0
    %346 = vmatprep.subr.mxu0 0.0
    %347 = vmatpush2.msra.mxu0 0.0
    %348 = vmatprep.subr.mxu0 0.0
    %349 = vmatpush2.msra.mxu0 0.0
    %350 = vmatprep.subr.mxu0 0.0
    %351 = vmatpush2.msra.mxu0 0.0
    %352 = vmatprep.subr.mxu0 0.0
    %353 = vmatpush2.msra.mxu0 0.0
    %354 = vmatprep.subr.mxu0 0.0
    %355 = vmatpush2.msra.mxu0 0.0
    %356 = vmatprep.subr.mxu0 0.0
    %357 = vmatpush2.msra.mxu0 0.0
    %358 = vmatprep.subr.mxu0 0.0
    %359 = vmatpush2.msra.mxu0 0.0
    %360 = vmatprep.mubr.f32.mxu0 0.0
    %v361 = vand.u32 %v113, 4294901760
    %v362 = vsub.f32 %v113, %v361
    %363 = vmatmul.mubr.f32.gmra.mxu0 %v362
    %v364 = vpop.f32.mrf.mxu0
    %v365 = vadd.f32 %v283, %v364
    %v366 = vpop.f32.mrf.mxu0
    %367 = vmatprep.mubr.f32.mxu0 0.0
    %v368 = vand.u32 %v116, 4294901760
    %v369 = vsub.f32 %v116, %v368
    %370 = vmatmul.mubr.f32.gmra.mxu0 %v369
    %v371 = vpop.f32.mrf.mxu0
    %v372 = vadd.f32 %v289, %v371
    %v373 = vpop.f32.mrf.mxu0
    %374 = vdwg.mxu0
    %375 = vmatprep.subr.mxu0 0.0
    %376 = vmatpush1.msra.mxu0 0.0
    %377 = vmatprep.subr.mxu0 0.0
    %378 = vmatpush1.msra.mxu0 0.0
    %379 = vmatprep.subr.mxu0 0.0
    %380 = vmatpush1.msra.mxu0 0.0
    %381 = vmatprep.subr.mxu0 0.0
    %382 = vmatpush1.msra.mxu0 0.0
    %383 = vmatprep.subr.mxu0 0.0
    %384 = vmatpush1.msra.mxu0 0.0
    %385 = vmatprep.subr.mxu0 0.0
    %386 = vmatpush1.msra.mxu0 0.0
    %387 = vmatprep.subr.mxu0 0.0
    %388 = vmatpush1.msra.mxu0 0.0
    %389 = vmatprep.subr.mxu0 0.0
    %390 = vmatpush1.msra.mxu0 0.0
    %391 = vmatprep.subr.mxu0 0.0
    %392 = vmatpush1.msra.mxu0 0.0
    %393 = vmatprep.subr.mxu0 0.0
    %394 = vmatpush1.msra.mxu0 0.0
    %395 = vmatprep.subr.mxu0 0.0
    %396 = vmatpush1.msra.mxu0 0.0
    %397 = vmatprep.subr.mxu0 0.0
    %398 = vmatpush1.msra.mxu0 0.0
    %399 = vmatprep.subr.mxu0 0.0
    %400 = vmatpush1.msra.mxu0 0.0
    %401 = vmatprep.subr.mxu0 0.0
    %402 = vmatpush1.msra.mxu0 0.0
    %403 = vmatprep.subr.mxu0 0.0
    %v404 = vand.u32 %v90, 4294901760
    %405 = vmatpush1.msra.mxu0 %v404
    %406 = vmatprep.subr.mxu0 0.0
    %v407 = vand.u32 %v89, 4294901760
    %408 = vmatpush1.msra.mxu0 %v407
    %409 = vmatprep.subr.mxu0 0.0
    %410 = vmatpush2.msra.mxu0 0.0
    %411 = vmatprep.subr.mxu0 0.0
    %412 = vmatpush2.msra.mxu0 0.0
    %413 = vmatprep.subr.mxu0 0.0
    %414 = vmatpush2.msra.mxu0 0.0
    %415 = vmatprep.subr.mxu0 0.0
    %416 = vmatpush2.msra.mxu0 0.0
    %417 = vmatprep.subr.mxu0 0.0
    %418 = vmatpush2.msra.mxu0 0.0
    %419 = vmatprep.subr.mxu0 0.0
    %420 = vmatpush2.msra.mxu0 0.0
    %421 = vmatprep.subr.mxu0 0.0
    %422 = vmatpush2.msra.mxu0 0.0
    %423 = vmatprep.subr.mxu0 0.0
    %424 = vmatpush2.msra.mxu0 0.0
    %425 = vmatprep.subr.mxu0 0.0
    %426 = vmatpush2.msra.mxu0 0.0
    %427 = vmatprep.subr.mxu0 0.0
    %428 = vmatpush2.msra.mxu0 0.0
    %429 = vmatprep.subr.mxu0 0.0
    %430 = vmatpush2.msra.mxu0 0.0
    %431 = vmatprep.subr.mxu0 0.0
    %432 = vmatpush2.msra.mxu0 0.0
    %433 = vmatprep.subr.mxu0 0.0
    %434 = vmatpush2.msra.mxu0 0.0
    %435 = vmatprep.subr.mxu0 0.0
    %436 = vmatpush2.msra.mxu0 0.0
    %437 = vmatprep.subr.mxu0 0.0
    %438 = vmatpush2.msra.mxu0 0.0
    %439 = vmatprep.subr.mxu0 0.0
    %440 = vmatpush2.msra.mxu0 0.0
    %441 = vmatprep.mubr.f32.mxu0 0.0
    %v442 = vand.u32 %v113, 4294901760
    %v443 = vsub.f32 %v113, %v442
    %v444 = vand.u32 %v443, 4294901760
    %445 = vmatmul.mubr.f32.gmra.mxu0 %v444
    %v446 = vpop.f32.mrf.mxu0
    %v447 = vadd.f32 %v365, %v446
    %v448 = vpop.f32.mrf.mxu0
    %449 = vmatprep.mubr.f32.mxu0 0.0
    %v450 = vand.u32 %v116, 4294901760
    %v451 = vsub.f32 %v116, %v450
    %v452 = vand.u32 %v451, 4294901760
    %453 = vmatmul.mubr.f32.gmra.mxu0 %v452
    %v454 = vpop.f32.mrf.mxu0
    %v455 = vadd.f32 %v372, %v454
    %v456 = vpop.f32.mrf.mxu0
    %457 = vdwg.mxu0
    %458 = vmatprep.subr.mxu0 0.0
    %459 = vmatpush1.msra.mxu0 0.0
    %460 = vmatprep.subr.mxu0 0.0
    %461 = vmatpush1.msra.mxu0 0.0
    %462 = vmatprep.subr.mxu0 0.0
    %463 = vmatpush1.msra.mxu0 0.0
    %464 = vmatprep.subr.mxu0 0.0
    %465 = vmatpush1.msra.mxu0 0.0
    %466 = vmatprep.subr.mxu0 0.0
    %467 = vmatpush1.msra.mxu0 0.0
    %468 = vmatprep.subr.mxu0 0.0
    %469 = vmatpush1.msra.mxu0 0.0
    %470 = vmatprep.subr.mxu0 0.0
    %471 = vmatpush1.msra.mxu0 0.0
    %472 = vmatprep.subr.mxu0 0.0
    %473 = vmatpush1.msra.mxu0 0.0
    %474 = vmatprep.subr.mxu0 0.0
    %475 = vmatpush1.msra.mxu0 0.0
    %476 = vmatprep.subr.mxu0 0.0
    %477 = vmatpush1.msra.mxu0 0.0
    %478 = vmatprep.subr.mxu0 0.0
    %479 = vmatpush1.msra.mxu0 0.0
    %480 = vmatprep.subr.mxu0 0.0
    %481 = vmatpush1.msra.mxu0 0.0
    %482 = vmatprep.subr.mxu0 0.0
    %483 = vmatpush1.msra.mxu0 0.0
    %484 = vmatprep.subr.mxu0 0.0
    %485 = vmatpush1.msra.mxu0 0.0
    %486 = vmatprep.subr.mxu0 0.0
    %v487 = vand.u32 %v90, 4294901760
    %v488 = vsub.f32 %v90, %v487
    %v489 = vand.u32 %v488, 4294901760
    %490 = vmatpush1.msra.mxu0 %v489
    %491 = vmatprep.subr.mxu0 0.0
    %v492 = vand.u32 %v89, 4294901760
    %v493 = vsub.f32 %v89, %v492
    %v494 = vand.u32 %v493, 4294901760
    %495 = vmatpush1.msra.mxu0 %v494
    %496 = vmatprep.subr.mxu0 0.0
    %497 = vmatpush2.msra.mxu0 0.0
    %498 = vmatprep.subr.mxu0 0.0
    %499 = vmatpush2.msra.mxu0 0.0
    %500 = vmatprep.subr.mxu0 0.0
    %501 = vmatpush2.msra.mxu0 0.0
    %502 = vmatprep.subr.mxu0 0.0
    %503 = vmatpush2.msra.mxu0 0.0
    %504 = vmatprep.subr.mxu0 0.0
    %505 = vmatpush2.msra.mxu0 0.0
    %506 = vmatprep.subr.mxu0 0.0
    %507 = vmatpush2.msra.mxu0 0.0
    %508 = vmatprep.subr.mxu0 0.0
    %509 = vmatpush2.msra.mxu0 0.0
    %510 = vmatprep.subr.mxu0 0.0
    %511 = vmatpush2.msra.mxu0 0.0
    %512 = vmatprep.subr.mxu0 0.0
    %513 = vmatpush2.msra.mxu0 0.0
    %514 = vmatprep.subr.mxu0 0.0
    %515 = vmatpush2.msra.mxu0 0.0
    %516 = vmatprep.subr.mxu0 0.0
    %517 = vmatpush2.msra.mxu0 0.0
    %518 = vmatprep.subr.mxu0 0.0
    %519 = vmatpush2.msra.mxu0 0.0
    %520 = vmatprep.subr.mxu0 0.0
    %521 = vmatpush2.msra.mxu0 0.0
    %522 = vmatprep.subr.mxu0 0.0
    %523 = vmatpush2.msra.mxu0 0.0
    %524 = vmatprep.subr.mxu0 0.0
    %525 = vmatpush2.msra.mxu0 0.0
    %526 = vmatprep.subr.mxu0 0.0
    %527 = vmatpush2.msra.mxu0 0.0
    %528 = vmatprep.mubr.f32.mxu0 0.0
    %v529 = vand.u32 %v113, 4294901760
    %530 = vmatmul.mubr.f32.gmra.mxu0 %v529
    %v531 = vpop.f32.mrf.mxu0
    %v532 = vadd.f32 %v447, %v531
    %v533 = vpop.f32.mrf.mxu0
    %534 = vmatprep.mubr.f32.mxu0 0.0
    %v535 = vand.u32 %v116, 4294901760
    %536 = vmatmul.mubr.f32.gmra.mxu0 %v535
    %v537 = vpop.f32.mrf.mxu0
    %v538 = vadd.f32 %v455, %v537
    %v539 = vpop.f32.mrf.mxu0
    %540 = vdwg.mxu0
    %541 = vmatprep.subr.mxu0 0.0
    %542 = vmatpush1.msra.mxu0 0.0
    %543 = vmatprep.subr.mxu0 0.0
    %544 = vmatpush1.msra.mxu0 0.0
    %545 = vmatprep.subr.mxu0 0.0
    %546 = vmatpush1.msra.mxu0 0.0
    %547 = vmatprep.subr.mxu0 0.0
    %548 = vmatpush1.msra.mxu0 0.0
    %549 = vmatprep.subr.mxu0 0.0
    %550 = vmatpush1.msra.mxu0 0.0
    %551 = vmatprep.subr.mxu0 0.0
    %552 = vmatpush1.msra.mxu0 0.0
    %553 = vmatprep.subr.mxu0 0.0
    %554 = vmatpush1.msra.mxu0 0.0
    %555 = vmatprep.subr.mxu0 0.0
    %556 = vmatpush1.msra.mxu0 0.0
    %557 = vmatprep.subr.mxu0 0.0
    %558 = vmatpush1.msra.mxu0 0.0
    %559 = vmatprep.subr.mxu0 0.0
    %560 = vmatpush1.msra.mxu0 0.0
    %561 = vmatprep.subr.mxu0 0.0
    %562 = vmatpush1.msra.mxu0 0.0
    %563 = vmatprep.subr.mxu0 0.0
    %564 = vmatpush1.msra.mxu0 0.0
    %565 = vmatprep.subr.mxu0 0.0
    %566 = vmatpush1.msra.mxu0 0.0
    %567 = vmatprep.subr.mxu0 0.0
    %568 = vmatpush1.msra.mxu0 0.0
    %569 = vmatprep.subr.mxu0 0.0
    %v570 = vand.u32 %v90, 4294901760
    %571 = vmatpush1.msra.mxu0 %v570
    %572 = vmatprep.subr.mxu0 0.0
    %v573 = vand.u32 %v89, 4294901760
    %574 = vmatpush1.msra.mxu0 %v573
    %575 = vmatprep.subr.mxu0 0.0
    %576 = vmatpush2.msra.mxu0 0.0
    %577 = vmatprep.subr.mxu0 0.0
    %578 = vmatpush2.msra.mxu0 0.0
    %579 = vmatprep.subr.mxu0 0.0
    %580 = vmatpush2.msra.mxu0 0.0
    %581 = vmatprep.subr.mxu0 0.0
    %582 = vmatpush2.msra.mxu0 0.0
    %583 = vmatprep.subr.mxu0 0.0
    %584 = vmatpush2.msra.mxu0 0.0
    %585 = vmatprep.subr.mxu0 0.0
    %586 = vmatpush2.msra.mxu0 0.0
    %587 = vmatprep.subr.mxu0 0.0
    %588 = vmatpush2.msra.mxu0 0.0
    %589 = vmatprep.subr.mxu0 0.0
    %590 = vmatpush2.msra.mxu0 0.0
    %591 = vmatprep.subr.mxu0 0.0
    %592 = vmatpush2.msra.mxu0 0.0
    %593 = vmatprep.subr.mxu0 0.0
    %594 = vmatpush2.msra.mxu0 0.0
    %595 = vmatprep.subr.mxu0 0.0
    %596 = vmatpush2.msra.mxu0 0.0
    %597 = vmatprep.subr.mxu0 0.0
    %598 = vmatpush2.msra.mxu0 0.0
    %599 = vmatprep.subr.mxu0 0.0
    %600 = vmatpush2.msra.mxu0 0.0
    %601 = vmatprep.subr.mxu0 0.0
    %602 = vmatpush2.msra.mxu0 0.0
    %603 = vmatprep.subr.mxu0 0.0
    %604 = vmatpush2.msra.mxu0 0.0
    %605 = vmatprep.subr.mxu0 0.0
    %606 = vmatpush2.msra.mxu0 0.0
    %607 = vmatprep.mubr.f32.mxu0 0.0
    %v608 = vand.u32 %v113, 4294901760
    %609 = vmatmul.mubr.f32.gmra.mxu0 %v608
    %v610 = vpop.f32.mrf.mxu0
    %v611 = vadd.f32 %v532, %v610
    %v612 = vpop.f32.mrf.mxu0
    %613 = vmatprep.mubr.f32.mxu0 0.0
    %v614 = vand.u32 %v116, 4294901760
    %615 = vmatmul.mubr.f32.gmra.mxu0 %v614
    %v616 = vpop.f32.mrf.mxu0
    %v617 = vadd.f32 %v538, %v616
    %v618 = vpop.f32.mrf.mxu0
    %619 = vdwg.mxu0
    %620 = vmatprep.subr.mxu0 0.0
    %v621 = vand.u32 %v110, 4294901760
    %622 = vmatpush1.msra.mxu0 %v621
    %623 = vmatprep.subr.mxu0 0.0
    %v624 = vand.u32 %v109, 4294901760
    %625 = vmatpush1.msra.mxu0 %v624
    %626 = vmatprep.subr.mxu0 0.0
    %v627 = vand.u32 %v108, 4294901760
    %628 = vmatpush1.msra.mxu0 %v627
    %629 = vmatprep.subr.mxu0 0.0
    %v630 = vand.u32 %v107, 4294901760
    %631 = vmatpush1.msra.mxu0 %v630
    %632 = vmatprep.subr.mxu0 0.0
    %v633 = vand.u32 %v106, 4294901760
    %634 = vmatpush1.msra.mxu0 %v633
    %635 = vmatprep.subr.mxu0 0.0
    %v636 = vand.u32 %v105, 4294901760
    %637 = vmatpush1.msra.mxu0 %v636
    %638 = vmatprep.subr.mxu0 0.0
    %v639 = vand.u32 %v104, 4294901760
    %640 = vmatpush1.msra.mxu0 %v639
    %641 = vmatprep.subr.mxu0 0.0
    %v642 = vand.u32 %v103, 4294901760
    %643 = vmatpush1.msra.mxu0 %v642
    %644 = vmatprep.subr.mxu0 0.0
    %v645 = vand.u32 %v102, 4294901760
    %646 = vmatpush1.msra.mxu0 %v645
    %647 = vmatprep.subr.mxu0 0.0
    %v648 = vand.u32 %v101, 4294901760
    %649 = vmatpush1.msra.mxu0 %v648
    %650 = vmatprep.subr.mxu0 0.0
    %v651 = vand.u32 %v100, 4294901760
    %652 = vmatpush1.msra.mxu0 %v651
    %653 = vmatprep.subr.mxu0 0.0
    %v654 = vand.u32 %v99, 4294901760
    %655 = vmatpush1.msra.mxu0 %v654
    %656 = vmatprep.subr.mxu0 0.0
    %v657 = vand.u32 %v98, 4294901760
    %658 = vmatpush1.msra.mxu0 %v657
    %659 = vmatprep.subr.mxu0 0.0
    %v660 = vand.u32 %v97, 4294901760
    %661 = vmatpush1.msra.mxu0 %v660
    %662 = vmatprep.subr.mxu0 0.0
    %v663 = vand.u32 %v96, 4294901760
    %664 = vmatpush1.msra.mxu0 %v663
    %665 = vmatprep.subr.mxu0 0.0
    %v666 = vand.u32 %v95, 4294901760
    %667 = vmatpush1.msra.mxu0 %v666
    %668 = vmatprep.subr.mxu0 0.0
    %669 = vmatpush2.msra.mxu0 0.0
    %670 = vmatprep.subr.mxu0 0.0
    %671 = vmatpush2.msra.mxu0 0.0
    %672 = vmatprep.subr.mxu0 0.0
    %673 = vmatpush2.msra.mxu0 0.0
    %674 = vmatprep.subr.mxu0 0.0
    %675 = vmatpush2.msra.mxu0 0.0
    %676 = vmatprep.subr.mxu0 0.0
    %677 = vmatpush2.msra.mxu0 0.0
    %678 = vmatprep.subr.mxu0 0.0
    %679 = vmatpush2.msra.mxu0 0.0
    %680 = vmatprep.subr.mxu0 0.0
    %681 = vmatpush2.msra.mxu0 0.0
    %682 = vmatprep.subr.mxu0 0.0
    %683 = vmatpush2.msra.mxu0 0.0
    %684 = vmatprep.subr.mxu0 0.0
    %685 = vmatpush2.msra.mxu0 0.0
    %686 = vmatprep.subr.mxu0 0.0
    %687 = vmatpush2.msra.mxu0 0.0
    %688 = vmatprep.subr.mxu0 0.0
    %689 = vmatpush2.msra.mxu0 0.0
    %690 = vmatprep.subr.mxu0 0.0
    %691 = vmatpush2.msra.mxu0 0.0
    %692 = vmatprep.subr.mxu0 0.0
    %693 = vmatpush2.msra.mxu0 0.0
    %694 = vmatprep.subr.mxu0 0.0
    %695 = vmatpush2.msra.mxu0 0.0
    %696 = vmatprep.subr.mxu0 0.0
    %697 = vmatpush2.msra.mxu0 0.0
    %698 = vmatprep.subr.mxu0 0.0
    %699 = vmatpush2.msra.mxu0 0.0
    %700 = vmatprep.mubr.f32.mxu0 0.0
    %v701 = vand.u32 %v611, 4294901760
    %v702 = vsub.f32 %v611, %v701
    %v703 = vand.u32 %v702, 4294901760
    %v704 = vsub.f32 %v702, %v703
    %v705 = vand.u32 %v704, 4294901760
    %706 = vmatmul.mubr.f32.gmra.mxu0 %v705
    %v707 = vpop.f32.mrf.mxu0
    %v708 = vadd.f32 0.0, %v707
    %v709 = vpop.f32.mrf.mxu0
    %710 = vmatprep.mubr.f32.mxu0 0.0
    %v711 = vand.u32 %v617, 4294901760
    %v712 = vsub.f32 %v617, %v711
    %v713 = vand.u32 %v712, 4294901760
    %v714 = vsub.f32 %v712, %v713
    %v715 = vand.u32 %v714, 4294901760
    %716 = vmatmul.mubr.f32.gmra.mxu0 %v715
    %v717 = vpop.f32.mrf.mxu0
    %v718 = vadd.f32 0.0, %v717
    %v719 = vpop.f32.mrf.mxu0
    %720 = vdwg.mxu0
    %721 = vmatprep.subr.mxu0 0.0
    %v722 = vand.u32 %v110, 4294901760
    %v723 = vsub.f32 %v110, %v722
    %v724 = vand.u32 %v723, 4294901760
    %v725 = vsub.f32 %v723, %v724
    %v726 = vand.u32 %v725, 4294901760
    %727 = vmatpush1.msra.mxu0 %v726
    %728 = vmatprep.subr.mxu0 0.0
    %v729 = vand.u32 %v109, 4294901760
    %v730 = vsub.f32 %v109, %v729
    %v731 = vand.u32 %v730, 4294901760
    %v732 = vsub.f32 %v730, %v731
    %v733 = vand.u32 %v732, 4294901760
    %734 = vmatpush1.msra.mxu0 %v733
    %735 = vmatprep.subr.mxu0 0.0
    %v736 = vand.u32 %v108, 4294901760
    %v737 = vsub.f32 %v108, %v736
    %v738 = vand.u32 %v737, 4294901760
    %v739 = vsub.f32 %v737, %v738
    %v740 = vand.u32 %v739, 4294901760
    %741 = vmatpush1.msra.mxu0 %v740
    %742 = vmatprep.subr.mxu0 0.0
    %v743 = vand.u32 %v107, 4294901760
    %v744 = vsub.f32 %v107, %v743
    %v745 = vand.u32 %v744, 4294901760
    %v746 = vsub.f32 %v744, %v745
    %v747 = vand.u32 %v746, 4294901760
    %748 = vmatpush1.msra.mxu0 %v747
    %749 = vmatprep.subr.mxu0 0.0
    %v750 = vand.u32 %v106, 4294901760
    %v751 = vsub.f32 %v106, %v750
    %v752 = vand.u32 %v751, 4294901760
    %v753 = vsub.f32 %v751, %v752
    %v754 = vand.u32 %v753, 4294901760
    %755 = vmatpush1.msra.mxu0 %v754
    %756 = vmatprep.subr.mxu0 0.0
    %v757 = vand.u32 %v105, 4294901760
    %v758 = vsub.f32 %v105, %v757
    %v759 = vand.u32 %v758, 4294901760
    %v760 = vsub.f32 %v758, %v759
    %v761 = vand.u32 %v760, 4294901760
    %762 = vmatpush1.msra.mxu0 %v761
    %763 = vmatprep.subr.mxu0 0.0
    %v764 = vand.u32 %v104, 4294901760
    %v765 = vsub.f32 %v104, %v764
    %v766 = vand.u32 %v765, 4294901760
    %v767 = vsub.f32 %v765, %v766
    %v768 = vand.u32 %v767, 4294901760
    %769 = vmatpush1.msra.mxu0 %v768
    %770 = vmatprep.subr.mxu0 0.0
    %v771 = vand.u32 %v103, 4294901760
    %v772 = vsub.f32 %v103, %v771
    %v773 = vand.u32 %v772, 4294901760
    %v774 = vsub.f32 %v772, %v773
    %v775 = vand.u32 %v774, 4294901760
    %776 = vmatpush1.msra.mxu0 %v775
    %777 = vmatprep.subr.mxu0 0.0
    %v778 = vand.u32 %v102, 4294901760
    %v779 = vsub.f32 %v102, %v778
    %v780 = vand.u32 %v779, 4294901760
    %v781 = vsub.f32 %v779, %v780
    %v782 = vand.u32 %v781, 4294901760
    %783 = vmatpush1.msra.mxu0 %v782
    %784 = vmatprep.subr.mxu0 0.0
    %v785 = vand.u32 %v101, 4294901760
    %v786 = vsub.f32 %v101, %v785
    %v787 = vand.u32 %v786, 4294901760
    %v788 = vsub.f32 %v786, %v787
    %v789 = vand.u32 %v788, 4294901760
    %790 = vmatpush1.msra.mxu0 %v789
    %791 = vmatprep.subr.mxu0 0.0
    %v792 = vand.u32 %v100, 4294901760
    %v793 = vsub.f32 %v100, %v792
    %v794 = vand.u32 %v793, 4294901760
    %v795 = vsub.f32 %v793, %v794
    %v796 = vand.u32 %v795, 4294901760
    %797 = vmatpush1.msra.mxu0 %v796
    %798 = vmatprep.subr.mxu0 0.0
    %v799 = vand.u32 %v99, 4294901760
    %v800 = vsub.f32 %v99, %v799
    %v801 = vand.u32 %v800, 4294901760
    %v802 = vsub.f32 %v800, %v801
    %v803 = vand.u32 %v802, 4294901760
    %804 = vmatpush1.msra.mxu0 %v803
    %805 = vmatprep.subr.mxu0 0.0
    %v806 = vand.u32 %v98, 4294901760
    %v807 = vsub.f32 %v98, %v806
    %v808 = vand.u32 %v807, 4294901760
    %v809 = vsub.f32 %v807, %v808
    %v810 = vand.u32 %v809, 4294901760
    %811 = vmatpush1.msra.mxu0 %v810
    %812 = vmatprep.subr.mxu0 0.0
    %v813 = vand.u32 %v97, 4294901760
    %v814 = vsub.f32 %v97, %v813
    %v815 = vand.u32 %v814, 4294901760
    %v816 = vsub.f32 %v814, %v815
    %v817 = vand.u32 %v816, 4294901760
    %818 = vmatpush1.msra.mxu0 %v817
    %819 = vmatprep.subr.mxu0 0.0
    %v820 = vand.u32 %v96, 4294901760
    %v821 = vsub.f32 %v96, %v820
    %v822 = vand.u32 %v821, 4294901760
    %v823 = vsub.f32 %v821, %v822
    %v824 = vand.u32 %v823, 4294901760
    %825 = vmatpush1.msra.mxu0 %v824
    %826 = vmatprep.subr.mxu0 0.0
    %v827 = vand.u32 %v95, 4294901760
    %v828 = vsub.f32 %v95, %v827
    %v829 = vand.u32 %v828, 4294901760
    %v830 = vsub.f32 %v828, %v829
    %v831 = vand.u32 %v830, 4294901760
    %832 = vmatpush1.msra.mxu0 %v831
    %833 = vmatprep.subr.mxu0 0.0
    %834 = vmatpush2.msra.mxu0 0.0
    %835 = vmatprep.subr.mxu0 0.0
    %836 = vmatpush2.msra.mxu0 0.0
    %837 = vmatprep.subr.mxu0 0.0
    %838 = vmatpush2.msra.mxu0 0.0
    %839 = vmatprep.subr.mxu0 0.0
    %840 = vmatpush2.msra.mxu0 0.0
    %841 = vmatprep.subr.mxu0 0.0
    %842 = vmatpush2.msra.mxu0 0.0
    %843 = vmatprep.subr.mxu0 0.0
    %844 = vmatpush2.msra.mxu0 0.0
    %845 = vmatprep.subr.mxu0 0.0
    %846 = vmatpush2.msra.mxu0 0.0
    %847 = vmatprep.subr.mxu0 0.0
    %848 = vmatpush2.msra.mxu0 0.0
    %849 = vmatprep.subr.mxu0 0.0
    %850 = vmatpush2.msra.mxu0 0.0
    %851 = vmatprep.subr.mxu0 0.0
    %852 = vmatpush2.msra.mxu0 0.0
    %853 = vmatprep.subr.mxu0 0.0
    %854 = vmatpush2.msra.mxu0 0.0
    %855 = vmatprep.subr.mxu0 0.0
    %856 = vmatpush2.msra.mxu0 0.0
    %857 = vmatprep.subr.mxu0 0.0
    %858 = vmatpush2.msra.mxu0 0.0
    %859 = vmatprep.subr.mxu0 0.0
    %860 = vmatpush2.msra.mxu0 0.0
    %861 = vmatprep.subr.mxu0 0.0
    %862 = vmatpush2.msra.mxu0 0.0
    %863 = vmatprep.subr.mxu0 0.0
    %864 = vmatpush2.msra.mxu0 0.0
    %865 = vmatprep.mubr.f32.mxu0 0.0
    %v866 = vand.u32 %v611, 4294901760
    %867 = vmatmul.mubr.f32.gmra.mxu0 %v866
    %v868 = vpop.f32.mrf.mxu0
    %v869 = vadd.f32 %v708, %v868
    %v870 = vpop.f32.mrf.mxu0
    %871 = vmatprep.mubr.f32.mxu0 0.0
    %v872 = vand.u32 %v617, 4294901760
    %873 = vmatmul.mubr.f32.gmra.mxu0 %v872
    %v874 = vpop.f32.mrf.mxu0
    %v875 = vadd.f32 %v718, %v874
    %v876 = vpop.f32.mrf.mxu0
    %877 = vdwg.mxu0
    %878 = vmatprep.subr.mxu0 0.0
    %v879 = vand.u32 %v110, 4294901760
    %v880 = vsub.f32 %v110, %v879
    %881 = vmatpush1.msra.mxu0 %v880
    %882 = vmatprep.subr.mxu0 0.0
    %v883 = vand.u32 %v109, 4294901760
    %v884 = vsub.f32 %v109, %v883
    %885 = vmatpush1.msra.mxu0 %v884
    %886 = vmatprep.subr.mxu0 0.0
    %v887 = vand.u32 %v108, 4294901760
    %v888 = vsub.f32 %v108, %v887
    %889 = vmatpush1.msra.mxu0 %v888
    %890 = vmatprep.subr.mxu0 0.0
    %v891 = vand.u32 %v107, 4294901760
    %v892 = vsub.f32 %v107, %v891
    %893 = vmatpush1.msra.mxu0 %v892
    %894 = vmatprep.subr.mxu0 0.0
    %v895 = vand.u32 %v106, 4294901760
    %v896 = vsub.f32 %v106, %v895
    %897 = vmatpush1.msra.mxu0 %v896
    %898 = vmatprep.subr.mxu0 0.0
    %v899 = vand.u32 %v105, 4294901760
    %v900 = vsub.f32 %v105, %v899
    %901 = vmatpush1.msra.mxu0 %v900
    %902 = vmatprep.subr.mxu0 0.0
    %v903 = vand.u32 %v104, 4294901760
    %v904 = vsub.f32 %v104, %v903
    %905 = vmatpush1.msra.mxu0 %v904
    %906 = vmatprep.subr.mxu0 0.0
    %v907 = vand.u32 %v103, 4294901760
    %v908 = vsub.f32 %v103, %v907
    %909 = vmatpush1.msra.mxu0 %v908
    %910 = vmatprep.subr.mxu0 0.0
    %v911 = vand.u32 %v102, 4294901760
    %v912 = vsub.f32 %v102, %v911
    %913 = vmatpush1.msra.mxu0 %v912
    %914 = vmatprep.subr.mxu0 0.0
    %v915 = vand.u32 %v101, 4294901760
    %v916 = vsub.f32 %v101, %v915
    %917 = vmatpush1.msra.mxu0 %v916
    %918 = vmatprep.subr.mxu0 0.0
    %v919 = vand.u32 %v100, 4294901760
    %v920 = vsub.f32 %v100, %v919
    %921 = vmatpush1.msra.mxu0 %v920
    %922 = vmatprep.subr.mxu0 0.0
    %v923 = vand.u32 %v99, 4294901760
    %v924 = vsub.f32 %v99, %v923
    %925 = vmatpush1.msra.mxu0 %v924
    %926 = vmatprep.subr.mxu0 0.0
    %v927 = vand.u32 %v98, 4294901760
    %v928 = vsub.f32 %v98, %v927
    %929 = vmatpush1.msra.mxu0 %v928
    %930 = vmatprep.subr.mxu0 0.0
    %v931 = vand.u32 %v97, 4294901760
    %v932 = vsub.f32 %v97, %v931
    %933 = vmatpush1.msra.mxu0 %v932
    %934 = vmatprep.subr.mxu0 0.0
    %v935 = vand.u32 %v96, 4294901760
    %v936 = vsub.f32 %v96, %v935
    %937 = vmatpush1.msra.mxu0 %v936
    %938 = vmatprep.subr.mxu0 0.0
    %v939 = vand.u32 %v95, 4294901760
    %v940 = vsub.f32 %v95, %v939
    %941 = vmatpush1.msra.mxu0 %v940
    %942 = vmatprep.subr.mxu0 0.0
    %943 = vmatpush2.msra.mxu0 0.0
    %944 = vmatprep.subr.mxu0 0.0
    %945 = vmatpush2.msra.mxu0 0.0
    %946 = vmatprep.subr.mxu0 0.0
    %947 = vmatpush2.msra.mxu0 0.0
    %948 = vmatprep.subr.mxu0 0.0
    %949 = vmatpush2.msra.mxu0 0.0
    %950 = vmatprep.subr.mxu0 0.0
    %951 = vmatpush2.msra.mxu0 0.0
    %952 = vmatprep.subr.mxu0 0.0
    %953 = vmatpush2.msra.mxu0 0.0
    %954 = vmatprep.subr.mxu0 0.0
    %955 = vmatpush2.msra.mxu0 0.0
    %956 = vmatprep.subr.mxu0 0.0
    %957 = vmatpush2.msra.mxu0 0.0
    %958 = vmatprep.subr.mxu0 0.0
    %959 = vmatpush2.msra.mxu0 0.0
    %960 = vmatprep.subr.mxu0 0.0
    %961 = vmatpush2.msra.mxu0 0.0
    %962 = vmatprep.subr.mxu0 0.0
    %963 = vmatpush2.msra.mxu0 0.0
    %964 = vmatprep.subr.mxu0 0.0
    %965 = vmatpush2.msra.mxu0 0.0
    %966 = vmatprep.subr.mxu0 0.0
    %967 = vmatpush2.msra.mxu0 0.0
    %968 = vmatprep.subr.mxu0 0.0
    %969 = vmatpush2.msra.mxu0 0.0
    %970 = vmatprep.subr.mxu0 0.0
    %971 = vmatpush2.msra.mxu0 0.0
    %972 = vmatprep.subr.mxu0 0.0
    %973 = vmatpush2.msra.mxu0 0.0
    %974 = vmatprep.mubr.f32.mxu0 0.0
    %v975 = vand.u32 %v611, 4294901760
    %v976 = vsub.f32 %v611, %v975
    %977 = vmatmul.mubr.f32.gmra.mxu0 %v976
    %v978 = vpop.f32.mrf.mxu0
    %v979 = vadd.f32 %v869, %v978
    %v980 = vpop.f32.mrf.mxu0
    %981 = vmatprep.mubr.f32.mxu0 0.0
    %v982 = vand.u32 %v617, 4294901760
    %v983 = vsub.f32 %v617, %v982
    %984 = vmatmul.mubr.f32.gmra.mxu0 %v983
    %v985 = vpop.f32.mrf.mxu0
    %v986 = vadd.f32 %v875, %v985
    %v987 = vpop.f32.mrf.mxu0
    %988 = vdwg.mxu0
    %989 = vmatprep.subr.mxu0 0.0
    %v990 = vand.u32 %v110, 4294901760
    %991 = vmatpush1.msra.mxu0 %v990
    %992 = vmatprep.subr.mxu0 0.0
    %v993 = vand.u32 %v109, 4294901760
    %994 = vmatpush1.msra.mxu0 %v993
    %995 = vmatprep.subr.mxu0 0.0
    %v996 = vand.u32 %v108, 4294901760
    %997 = vmatpush1.msra.mxu0 %v996
    %998 = vmatprep.subr.mxu0 0.0
    %v999 = vand.u32 %v107, 4294901760
    %1000 = vmatpush1.msra.mxu0 %v999
    %1001 = vmatprep.subr.mxu0 0.0
    %v1002 = vand.u32 %v106, 4294901760
    %1003 = vmatpush1.msra.mxu0 %v1002
    %1004 = vmatprep.subr.mxu0 0.0
    %v1005 = vand.u32 %v105, 4294901760
    %1006 = vmatpush1.msra.mxu0 %v1005
    %1007 = vmatprep.subr.mxu0 0.0
    %v1008 = vand.u32 %v104, 4294901760
    %1009 = vmatpush1.msra.mxu0 %v1008
    %1010 = vmatprep.subr.mxu0 0.0
    %v1011 = vand.u32 %v103, 4294901760
    %1012 = vmatpush1.msra.mxu0 %v1011
    %1013 = vmatprep.subr.mxu0 0.0
    %v1014 = vand.u32 %v102, 4294901760
    %1015 = vmatpush1.msra.mxu0 %v1014
    %1016 = vmatprep.subr.mxu0 0.0
    %v1017 = vand.u32 %v101, 4294901760
    %1018 = vmatpush1.msra.mxu0 %v1017
    %1019 = vmatprep.subr.mxu0 0.0
    %v1020 = vand.u32 %v100, 4294901760
    %1021 = vmatpush1.msra.mxu0 %v1020
    %1022 = vmatprep.subr.mxu0 0.0
    %v1023 = vand.u32 %v99, 4294901760
    %1024 = vmatpush1.msra.mxu0 %v1023
    %1025 = vmatprep.subr.mxu0 0.0
    %v1026 = vand.u32 %v98, 4294901760
    %1027 = vmatpush1.msra.mxu0 %v1026
    %1028 = vmatprep.subr.mxu0 0.0
    %v1029 = vand.u32 %v97, 4294901760
    %1030 = vmatpush1.msra.mxu0 %v1029
    %1031 = vmatprep.subr.mxu0 0.0
    %v1032 = vand.u32 %v96, 4294901760
    %1033 = vmatpush1.msra.mxu0 %v1032
    %1034 = vmatprep.subr.mxu0 0.0
    %v1035 = vand.u32 %v95, 4294901760
    %1036 = vmatpush1.msra.mxu0 %v1035
    %1037 = vmatprep.subr.mxu0 0.0
    %1038 = vmatpush2.msra.mxu0 0.0
    %1039 = vmatprep.subr.mxu0 0.0
    %1040 = vmatpush2.msra.mxu0 0.0
    %1041 = vmatprep.subr.mxu0 0.0
    %1042 = vmatpush2.msra.mxu0 0.0
    %1043 = vmatprep.subr.mxu0 0.0
    %1044 = vmatpush2.msra.mxu0 0.0
    %1045 = vmatprep.subr.mxu0 0.0
    %1046 = vmatpush2.msra.mxu0 0.0
    %1047 = vmatprep.subr.mxu0 0.0
    %1048 = vmatpush2.msra.mxu0 0.0
    %1049 = vmatprep.subr.mxu0 0.0
    %1050 = vmatpush2.msra.mxu0 0.0
    %1051 = vmatprep.subr.mxu0 0.0
    %1052 = vmatpush2.msra.mxu0 0.0
    %1053 = vmatprep.subr.mxu0 0.0
    %1054 = vmatpush2.msra.mxu0 0.0
    %1055 = vmatprep.subr.mxu0 0.0
    %1056 = vmatpush2.msra.mxu0 0.0
    %1057 = vmatprep.subr.mxu0 0.0
    %1058 = vmatpush2.msra.mxu0 0.0
    %1059 = vmatprep.subr.mxu0 0.0
    %1060 = vmatpush2.msra.mxu0 0.0
    %1061 = vmatprep.subr.mxu0 0.0
    %1062 = vmatpush2.msra.mxu0 0.0
    %1063 = vmatprep.subr.mxu0 0.0
    %1064 = vmatpush2.msra.mxu0 0.0
    %1065 = vmatprep.subr.mxu0 0.0
    %1066 = vmatpush2.msra.mxu0 0.0
    %1067 = vmatprep.subr.mxu0 0.0
    %1068 = vmatpush2.msra.mxu0 0.0
    %1069 = vmatprep.mubr.f32.mxu0 0.0
    %v1070 = vand.u32 %v611, 4294901760
    %v1071 = vsub.f32 %v611, %v1070
    %v1072 = vand.u32 %v1071, 4294901760
    %1073 = vmatmul.mubr.f32.gmra.mxu0 %v1072
    %v1074 = vpop.f32.mrf.mxu0
    %v1075 = vadd.f32 %v979, %v1074
    %v1076 = vpop.f32.mrf.mxu0
    %1077 = vmatprep.mubr.f32.mxu0 0.0
    %v1078 = vand.u32 %v617, 4294901760
    %v1079 = vsub.f32 %v617, %v1078
    %v1080 = vand.u32 %v1079, 4294901760
    %1081 = vmatmul.mubr.f32.gmra.mxu0 %v1080
    %v1082 = vpop.f32.mrf.mxu0
    %v1083 = vadd.f32 %v986, %v1082
    %v1084 = vpop.f32.mrf.mxu0
    %1085 = vdwg.mxu0
    %1086 = vmatprep.subr.mxu0 0.0
    %v1087 = vand.u32 %v110, 4294901760
    %v1088 = vsub.f32 %v110, %v1087
    %v1089 = vand.u32 %v1088, 4294901760
    %1090 = vmatpush1.msra.mxu0 %v1089
    %1091 = vmatprep.subr.mxu0 0.0
    %v1092 = vand.u32 %v109, 4294901760
    %v1093 = vsub.f32 %v109, %v1092
    %v1094 = vand.u32 %v1093, 4294901760
    %1095 = vmatpush1.msra.mxu0 %v1094
    %1096 = vmatprep.subr.mxu0 0.0
    %v1097 = vand.u32 %v108, 4294901760
    %v1098 = vsub.f32 %v108, %v1097
    %v1099 = vand.u32 %v1098, 4294901760
    %1100 = vmatpush1.msra.mxu0 %v1099
    %1101 = vmatprep.subr.mxu0 0.0
    %v1102 = vand.u32 %v107, 4294901760
    %v1103 = vsub.f32 %v107, %v1102
    %v1104 = vand.u32 %v1103, 4294901760
    %1105 = vmatpush1.msra.mxu0 %v1104
    %1106 = vmatprep.subr.mxu0 0.0
    %v1107 = vand.u32 %v106, 4294901760
    %v1108 = vsub.f32 %v106, %v1107
    %v1109 = vand.u32 %v1108, 4294901760
    %1110 = vmatpush1.msra.mxu0 %v1109
    %1111 = vmatprep.subr.mxu0 0.0
    %v1112 = vand.u32 %v105, 4294901760
    %v1113 = vsub.f32 %v105, %v1112
    %v1114 = vand.u32 %v1113, 4294901760
    %1115 = vmatpush1.msra.mxu0 %v1114
    %1116 = vmatprep.subr.mxu0 0.0
    %v1117 = vand.u32 %v104, 4294901760
    %v1118 = vsub.f32 %v104, %v1117
    %v1119 = vand.u32 %v1118, 4294901760
    %1120 = vmatpush1.msra.mxu0 %v1119
    %1121 = vmatprep.subr.mxu0 0.0
    %v1122 = vand.u32 %v103, 4294901760
    %v1123 = vsub.f32 %v103, %v1122
    %v1124 = vand.u32 %v1123, 4294901760
    %1125 = vmatpush1.msra.mxu0 %v1124
    %1126 = vmatprep.subr.mxu0 0.0
    %v1127 = vand.u32 %v102, 4294901760
    %v1128 = vsub.f32 %v102, %v1127
    %v1129 = vand.u32 %v1128, 4294901760
    %1130 = vmatpush1.msra.mxu0 %v1129
    %1131 = vmatprep.subr.mxu0 0.0
    %v1132 = vand.u32 %v101, 4294901760
    %v1133 = vsub.f32 %v101, %v1132
    %v1134 = vand.u32 %v1133, 4294901760
    %1135 = vmatpush1.msra.mxu0 %v1134
    %1136 = vmatprep.subr.mxu0 0.0
    %v1137 = vand.u32 %v100, 4294901760
    %v1138 = vsub.f32 %v100, %v1137
    %v1139 = vand.u32 %v1138, 4294901760
    %1140 = vmatpush1.msra.mxu0 %v1139
    %1141 = vmatprep.subr.mxu0 0.0
    %v1142 = vand.u32 %v99, 4294901760
    %v1143 = vsub.f32 %v99, %v1142
    %v1144 = vand.u32 %v1143, 4294901760
    %1145 = vmatpush1.msra.mxu0 %v1144
    %1146 = vmatprep.subr.mxu0 0.0
    %v1147 = vand.u32 %v98, 4294901760
    %v1148 = vsub.f32 %v98, %v1147
    %v1149 = vand.u32 %v1148, 4294901760
    %1150 = vmatpush1.msra.mxu0 %v1149
    %1151 = vmatprep.subr.mxu0 0.0
    %v1152 = vand.u32 %v97, 4294901760
    %v1153 = vsub.f32 %v97, %v1152
    %v1154 = vand.u32 %v1153, 4294901760
    %1155 = vmatpush1.msra.mxu0 %v1154
    %1156 = vmatprep.subr.mxu0 0.0
    %v1157 = vand.u32 %v96, 4294901760
    %v1158 = vsub.f32 %v96, %v1157
    %v1159 = vand.u32 %v1158, 4294901760
    %1160 = vmatpush1.msra.mxu0 %v1159
    %1161 = vmatprep.subr.mxu0 0.0
    %v1162 = vand.u32 %v95, 4294901760
    %v1163 = vsub.f32 %v95, %v1162
    %v1164 = vand.u32 %v1163, 4294901760
    %1165 = vmatpush1.msra.mxu0 %v1164
    %1166 = vmatprep.subr.mxu0 0.0
    %1167 = vmatpush2.msra.mxu0 0.0
    %1168 = vmatprep.subr.mxu0 0.0
    %1169 = vmatpush2.msra.mxu0 0.0
    %1170 = vmatprep.subr.mxu0 0.0
    %1171 = vmatpush2.msra.mxu0 0.0
    %1172 = vmatprep.subr.mxu0 0.0
    %1173 = vmatpush2.msra.mxu0 0.0
    %1174 = vmatprep.subr.mxu0 0.0
    %1175 = vmatpush2.msra.mxu0 0.0
    %1176 = vmatprep.subr.mxu0 0.0
    %1177 = vmatpush2.msra.mxu0 0.0
    %1178 = vmatprep.subr.mxu0 0.0
    %1179 = vmatpush2.msra.mxu0 0.0
    %1180 = vmatprep.subr.mxu0 0.0
    %1181 = vmatpush2.msra.mxu0 0.0
    %1182 = vmatprep.subr.mxu0 0.0
    %1183 = vmatpush2.msra.mxu0 0.0
    %1184 = vmatprep.subr.mxu0 0.0
    %1185 = vmatpush2.msra.mxu0 0.0
    %1186 = vmatprep.subr.mxu0 0.0
    %1187 = vmatpush2.msra.mxu0 0.0
    %1188 = vmatprep.subr.mxu0 0.0
    %1189 = vmatpush2.msra.mxu0 0.0
    %1190 = vmatprep.subr.mxu0 0.0
    %1191 = vmatpush2.msra.mxu0 0.0
    %1192 = vmatprep.subr.mxu0 0.0
    %1193 = vmatpush2.msra.mxu0 0.0
    %1194 = vmatprep.subr.mxu0 0.0
    %1195 = vmatpush2.msra.mxu0 0.0
    %1196 = vmatprep.subr.mxu0 0.0
    %1197 = vmatpush2.msra.mxu0 0.0
    %1198 = vmatprep.mubr.f32.mxu0 0.0
    %v1199 = vand.u32 %v611, 4294901760
    %1200 = vmatmul.mubr.f32.gmra.mxu0 %v1199
    %v1201 = vpop.f32.mrf.mxu0
    %v1202 = vadd.f32 %v1075, %v1201
    %v1203 = vpop.f32.mrf.mxu0
    %1204 = vmatprep.mubr.f32.mxu0 0.0
    %v1205 = vand.u32 %v617, 4294901760
    %1206 = vmatmul.mubr.f32.gmra.mxu0 %v1205
    %v1207 = vpop.f32.mrf.mxu0
    %v1208 = vadd.f32 %v1083, %v1207
    %v1209 = vpop.f32.mrf.mxu0
    %1210 = vdwg.mxu0
    %1211 = vmatprep.subr.mxu0 0.0
    %v1212 = vand.u32 %v110, 4294901760
    %1213 = vmatpush1.msra.mxu0 %v1212
    %1214 = vmatprep.subr.mxu0 0.0
    %v1215 = vand.u32 %v109, 4294901760
    %1216 = vmatpush1.msra.mxu0 %v1215
    %1217 = vmatprep.subr.mxu0 0.0
    %v1218 = vand.u32 %v108, 4294901760
    %1219 = vmatpush1.msra.mxu0 %v1218
    %1220 = vmatprep.subr.mxu0 0.0
    %v1221 = vand.u32 %v107, 4294901760
    %1222 = vmatpush1.msra.mxu0 %v1221
    %1223 = vmatprep.subr.mxu0 0.0
    %v1224 = vand.u32 %v106, 4294901760
    %1225 = vmatpush1.msra.mxu0 %v1224
    %1226 = vmatprep.subr.mxu0 0.0
    %v1227 = vand.u32 %v105, 4294901760
    %1228 = vmatpush1.msra.mxu0 %v1227
    %1229 = vmatprep.subr.mxu0 0.0
    %v1230 = vand.u32 %v104, 4294901760
    %1231 = vmatpush1.msra.mxu0 %v1230
    %1232 = vmatprep.subr.mxu0 0.0
    %v1233 = vand.u32 %v103, 4294901760
    %1234 = vmatpush1.msra.mxu0 %v1233
    %1235 = vmatprep.subr.mxu0 0.0
    %v1236 = vand.u32 %v102, 4294901760
    %1237 = vmatpush1.msra.mxu0 %v1236
    %1238 = vmatprep.subr.mxu0 0.0
    %v1239 = vand.u32 %v101, 4294901760
    %1240 = vmatpush1.msra.mxu0 %v1239
    %1241 = vmatprep.subr.mxu0 0.0
    %v1242 = vand.u32 %v100, 4294901760
    %1243 = vmatpush1.msra.mxu0 %v1242
    %1244 = vmatprep.subr.mxu0 0.0
    %v1245 = vand.u32 %v99, 4294901760
    %1246 = vmatpush1.msra.mxu0 %v1245
    %1247 = vmatprep.subr.mxu0 0.0
    %v1248 = vand.u32 %v98, 4294901760
    %1249 = vmatpush1.msra.mxu0 %v1248
    %1250 = vmatprep.subr.mxu0 0.0
    %v1251 = vand.u32 %v97, 4294901760
    %1252 = vmatpush1.msra.mxu0 %v1251
    %1253 = vmatprep.subr.mxu0 0.0
    %v1254 = vand.u32 %v96, 4294901760
    %1255 = vmatpush1.msra.mxu0 %v1254
    %1256 = vmatprep.subr.mxu0 0.0
    %v1257 = vand.u32 %v95, 4294901760
    %1258 = vmatpush1.msra.mxu0 %v1257
    %1259 = vmatprep.subr.mxu0 0.0
    %1260 = vmatpush2.msra.mxu0 0.0
    %1261 = vmatprep.subr.mxu0 0.0
    %1262 = vmatpush2.msra.mxu0 0.0
    %1263 = vmatprep.subr.mxu0 0.0
    %1264 = vmatpush2.msra.mxu0 0.0
    %1265 = vmatprep.subr.mxu0 0.0
    %1266 = vmatpush2.msra.mxu0 0.0
    %1267 = vmatprep.subr.mxu0 0.0
    %1268 = vmatpush2.msra.mxu0 0.0
    %1269 = vmatprep.subr.mxu0 0.0
    %1270 = vmatpush2.msra.mxu0 0.0
    %1271 = vmatprep.subr.mxu0 0.0
    %1272 = vmatpush2.msra.mxu0 0.0
    %1273 = vmatprep.subr.mxu0 0.0
    %1274 = vmatpush2.msra.mxu0 0.0
    %1275 = vmatprep.subr.mxu0 0.0
    %1276 = vmatpush2.msra.mxu0 0.0
    %1277 = vmatprep.subr.mxu0 0.0
    %1278 = vmatpush2.msra.mxu0 0.0
    %1279 = vmatprep.subr.mxu0 0.0
    %1280 = vmatpush2.msra.mxu0 0.0
    %1281 = vmatprep.subr.mxu0 0.0
    %1282 = vmatpush2.msra.mxu0 0.0
    %1283 = vmatprep.subr.mxu0 0.0
    %1284 = vmatpush2.msra.mxu0 0.0
    %1285 = vmatprep.subr.mxu0 0.0
    %1286 = vmatpush2.msra.mxu0 0.0
    %1287 = vmatprep.subr.mxu0 0.0
    %1288 = vmatpush2.msra.mxu0 0.0
    %1289 = vmatprep.subr.mxu0 0.0
    %1290 = vmatpush2.msra.mxu0 0.0
    %1291 = vmatprep.mubr.f32.mxu0 0.0
    %v1292 = vand.u32 %v611, 4294901760
    %1293 = vmatmul.mubr.f32.gmra.mxu0 %v1292
    %v1294 = vpop.f32.mrf.mxu0
    %v1295 = vadd.f32 %v1202, %v1294
    %v1296 = vpop.f32.mrf.mxu0
    %1297 = vmatprep.mubr.f32.mxu0 0.0
    %v1298 = vand.u32 %v617, 4294901760
    %1299 = vmatmul.mubr.f32.gmra.mxu0 %v1298
    %v1300 = vpop.f32.mrf.mxu0
    %v1301 = vadd.f32 %v1208, %v1300
    %v1302 = vpop.f32.mrf.mxu0
    %1303 = vdwg.mxu0
    %1304 = vmatprep.subr.mxu0 0.0
    %1305 = vmatpush1.msra.mxu0 0.0
    %1306 = vmatprep.subr.mxu0 0.0
    %1307 = vmatpush1.msra.mxu0 0.0
    %1308 = vmatprep.subr.mxu0 0.0
    %1309 = vmatpush1.msra.mxu0 0.0
    %1310 = vmatprep.subr.mxu0 0.0
    %1311 = vmatpush1.msra.mxu0 0.0
    %1312 = vmatprep.subr.mxu0 0.0
    %1313 = vmatpush1.msra.mxu0 0.0
    %1314 = vmatprep.subr.mxu0 0.0
    %1315 = vmatpush1.msra.mxu0 0.0
    %1316 = vmatprep.subr.mxu0 0.0
    %1317 = vmatpush1.msra.mxu0 0.0
    %1318 = vmatprep.subr.mxu0 0.0
    %1319 = vmatpush1.msra.mxu0 0.0
    %1320 = vmatprep.subr.mxu0 0.0
    %1321 = vmatpush1.msra.mxu0 0.0
    %1322 = vmatprep.subr.mxu0 0.0
    %1323 = vmatpush1.msra.mxu0 0.0
    %1324 = vmatprep.subr.mxu0 0.0
    %1325 = vmatpush1.msra.mxu0 0.0
    %1326 = vmatprep.subr.mxu0 0.0
    %1327 = vmatpush1.msra.mxu0 0.0
    %1328 = vmatprep.subr.mxu0 0.0
    %1329 = vmatpush1.msra.mxu0 0.0
    %1330 = vmatprep.subr.mxu0 0.0
    %1331 = vmatpush1.msra.mxu0 0.0
    %1332 = vmatprep.subr.mxu0 0.0
    %v1333 = vand.u32 %v92, 4294901760
    %1334 = vmatpush1.msra.mxu0 %v1333
    %1335 = vmatprep.subr.mxu0 0.0
    %v1336 = vand.u32 %v91, 4294901760
    %1337 = vmatpush1.msra.mxu0 %v1336
    %1338 = vmatprep.subr.mxu0 0.0
    %1339 = vmatpush2.msra.mxu0 0.0
    %1340 = vmatprep.subr.mxu0 0.0
    %1341 = vmatpush2.msra.mxu0 0.0
    %1342 = vmatprep.subr.mxu0 0.0
    %1343 = vmatpush2.msra.mxu0 0.0
    %1344 = vmatprep.subr.mxu0 0.0
    %1345 = vmatpush2.msra.mxu0 0.0
    %1346 = vmatprep.subr.mxu0 0.0
    %1347 = vmatpush2.msra.mxu0 0.0
    %1348 = vmatprep.subr.mxu0 0.0
    %1349 = vmatpush2.msra.mxu0 0.0
    %1350 = vmatprep.subr.mxu0 0.0
    %1351 = vmatpush2.msra.mxu0 0.0
    %1352 = vmatprep.subr.mxu0 0.0
    %1353 = vmatpush2.msra.mxu0 0.0
    %1354 = vmatprep.subr.mxu0 0.0
    %1355 = vmatpush2.msra.mxu0 0.0
    %1356 = vmatprep.subr.mxu0 0.0
    %1357 = vmatpush2.msra.mxu0 0.0
    %1358 = vmatprep.subr.mxu0 0.0
    %1359 = vmatpush2.msra.mxu0 0.0
    %1360 = vmatprep.subr.mxu0 0.0
    %1361 = vmatpush2.msra.mxu0 0.0
    %1362 = vmatprep.subr.mxu0 0.0
    %1363 = vmatpush2.msra.mxu0 0.0
    %1364 = vmatprep.subr.mxu0 0.0
    %1365 = vmatpush2.msra.mxu0 0.0
    %1366 = vmatprep.subr.mxu0 0.0
    %1367 = vmatpush2.msra.mxu0 0.0
    %1368 = vmatprep.subr.mxu0 0.0
    %1369 = vmatpush2.msra.mxu0 0.0
    %1370 = vmatprep.mubr.f32.mxu0 0.0
    %v1371 = vand.u32 %v113, 4294901760
    %v1372 = vsub.f32 %v113, %v1371
    %v1373 = vand.u32 %v1372, 4294901760
    %v1374 = vsub.f32 %v1372, %v1373
    %v1375 = vand.u32 %v1374, 4294901760
    %1376 = vmatmul.mubr.f32.gmra.mxu0 %v1375
    %v1377 = vpop.f32.mrf.mxu0
    %v1378 = vadd.f32 0.0, %v1377
    %v1379 = vpop.f32.mrf.mxu0
    %1380 = vmatprep.mubr.f32.mxu0 0.0
    %v1381 = vand.u32 %v116, 4294901760
    %v1382 = vsub.f32 %v116, %v1381
    %v1383 = vand.u32 %v1382, 4294901760
    %v1384 = vsub.f32 %v1382, %v1383
    %v1385 = vand.u32 %v1384, 4294901760
    %1386 = vmatmul.mubr.f32.gmra.mxu0 %v1385
    %v1387 = vpop.f32.mrf.mxu0
    %v1388 = vadd.f32 0.0, %v1387
    %v1389 = vpop.f32.mrf.mxu0
    %1390 = vdwg.mxu0
    %1391 = vmatprep.subr.mxu0 0.0
    %1392 = vmatpush1.msra.mxu0 0.0
    %1393 = vmatprep.subr.mxu0 0.0
    %1394 = vmatpush1.msra.mxu0 0.0
    %1395 = vmatprep.subr.mxu0 0.0
    %1396 = vmatpush1.msra.mxu0 0.0
    %1397 = vmatprep.subr.mxu0 0.0
    %1398 = vmatpush1.msra.mxu0 0.0
    %1399 = vmatprep.subr.mxu0 0.0
    %1400 = vmatpush1.msra.mxu0 0.0
    %1401 = vmatprep.subr.mxu0 0.0
    %1402 = vmatpush1.msra.mxu0 0.0
    %1403 = vmatprep.subr.mxu0 0.0
    %1404 = vmatpush1.msra.mxu0 0.0
    %1405 = vmatprep.subr.mxu0 0.0
    %1406 = vmatpush1.msra.mxu0 0.0
    %1407 = vmatprep.subr.mxu0 0.0
    %1408 = vmatpush1.msra.mxu0 0.0
    %1409 = vmatprep.subr.mxu0 0.0
    %1410 = vmatpush1.msra.mxu0 0.0
    %1411 = vmatprep.subr.mxu0 0.0
    %1412 = vmatpush1.msra.mxu0 0.0
    %1413 = vmatprep.subr.mxu0 0.0
    %1414 = vmatpush1.msra.mxu0 0.0
    %1415 = vmatprep.subr.mxu0 0.0
    %1416 = vmatpush1.msra.mxu0 0.0
    %1417 = vmatprep.subr.mxu0 0.0
    %1418 = vmatpush1.msra.mxu0 0.0
    %1419 = vmatprep.subr.mxu0 0.0
    %v1420 = vand.u32 %v92, 4294901760
    %v1421 = vsub.f32 %v92, %v1420
    %v1422 = vand.u32 %v1421, 4294901760
    %v1423 = vsub.f32 %v1421, %v1422
    %v1424 = vand.u32 %v1423, 4294901760
    %1425 = vmatpush1.msra.mxu0 %v1424
    %1426 = vmatprep.subr.mxu0 0.0
    %v1427 = vand.u32 %v91, 4294901760
    %v1428 = vsub.f32 %v91, %v1427
    %v1429 = vand.u32 %v1428, 4294901760
    %v1430 = vsub.f32 %v1428, %v1429
    %v1431 = vand.u32 %v1430, 4294901760
    %1432 = vmatpush1.msra.mxu0 %v1431
    %1433 = vmatprep.subr.mxu0 0.0
    %1434 = vmatpush2.msra.mxu0 0.0
    %1435 = vmatprep.subr.mxu0 0.0
    %1436 = vmatpush2.msra.mxu0 0.0
    %1437 = vmatprep.subr.mxu0 0.0
    %1438 = vmatpush2.msra.mxu0 0.0
    %1439 = vmatprep.subr.mxu0 0.0
    %1440 = vmatpush2.msra.mxu0 0.0
    %1441 = vmatprep.subr.mxu0 0.0
    %1442 = vmatpush2.msra.mxu0 0.0
    %1443 = vmatprep.subr.mxu0 0.0
    %1444 = vmatpush2.msra.mxu0 0.0
    %1445 = vmatprep.subr.mxu0 0.0
    %1446 = vmatpush2.msra.mxu0 0.0
    %1447 = vmatprep.subr.mxu0 0.0
    %1448 = vmatpush2.msra.mxu0 0.0
    %1449 = vmatprep.subr.mxu0 0.0
    %1450 = vmatpush2.msra.mxu0 0.0
    %1451 = vmatprep.subr.mxu0 0.0
    %1452 = vmatpush2.msra.mxu0 0.0
    %1453 = vmatprep.subr.mxu0 0.0
    %1454 = vmatpush2.msra.mxu0 0.0
    %1455 = vmatprep.subr.mxu0 0.0
    %1456 = vmatpush2.msra.mxu0 0.0
    %1457 = vmatprep.subr.mxu0 0.0
    %1458 = vmatpush2.msra.mxu0 0.0
    %1459 = vmatprep.subr.mxu0 0.0
    %1460 = vmatpush2.msra.mxu0 0.0
    %1461 = vmatprep.subr.mxu0 0.0
    %1462 = vmatpush2.msra.mxu0 0.0
    %1463 = vmatprep.subr.mxu0 0.0
    %1464 = vmatpush2.msra.mxu0 0.0
    %1465 = vmatprep.mubr.f32.mxu0 0.0
    %v1466 = vand.u32 %v113, 4294901760
    %1467 = vmatmul.mubr.f32.gmra.mxu0 %v1466
    %v1468 = vpop.f32.mrf.mxu0
    %v1469 = vadd.f32 %v1378, %v1468
    %v1470 = vpop.f32.mrf.mxu0
    %1471 = vmatprep.mubr.f32.mxu0 0.0
    %v1472 = vand.u32 %v116, 4294901760
    %1473 = vmatmul.mubr.f32.gmra.mxu0 %v1472
    %v1474 = vpop.f32.mrf.mxu0
    %v1475 = vadd.f32 %v1388, %v1474
    %v1476 = vpop.f32.mrf.mxu0
    %1477 = vdwg.mxu0
    %1478 = vmatprep.subr.mxu0 0.0
    %1479 = vmatpush1.msra.mxu0 0.0
    %1480 = vmatprep.subr.mxu0 0.0
    %1481 = vmatpush1.msra.mxu0 0.0
    %1482 = vmatprep.subr.mxu0 0.0
    %1483 = vmatpush1.msra.mxu0 0.0
    %1484 = vmatprep.subr.mxu0 0.0
    %1485 = vmatpush1.msra.mxu0 0.0
    %1486 = vmatprep.subr.mxu0 0.0
    %1487 = vmatpush1.msra.mxu0 0.0
    %1488 = vmatprep.subr.mxu0 0.0
    %1489 = vmatpush1.msra.mxu0 0.0
    %1490 = vmatprep.subr.mxu0 0.0
    %1491 = vmatpush1.msra.mxu0 0.0
    %1492 = vmatprep.subr.mxu0 0.0
    %1493 = vmatpush1.msra.mxu0 0.0
    %1494 = vmatprep.subr.mxu0 0.0
    %1495 = vmatpush1.msra.mxu0 0.0
    %1496 = vmatprep.subr.mxu0 0.0
    %1497 = vmatpush1.msra.mxu0 0.0
    %1498 = vmatprep.subr.mxu0 0.0
    %1499 = vmatpush1.msra.mxu0 0.0
    %1500 = vmatprep.subr.mxu0 0.0
    %1501 = vmatpush1.msra.mxu0 0.0
    %1502 = vmatprep.subr.mxu0 0.0
    %1503 = vmatpush1.msra.mxu0 0.0
    %1504 = vmatprep.subr.mxu0 0.0
    %1505 = vmatpush1.msra.mxu0 0.0
    %1506 = vmatprep.subr.mxu0 0.0
    %v1507 = vand.u32 %v92, 4294901760
    %v1508 = vsub.f32 %v92, %v1507
    %1509 = vmatpush1.msra.mxu0 %v1508
    %1510 = vmatprep.subr.mxu0 0.0
    %v1511 = vand.u32 %v91, 4294901760
    %v1512 = vsub.f32 %v91, %v1511
    %1513 = vmatpush1.msra.mxu0 %v1512
    %1514 = vmatprep.subr.mxu0 0.0
    %1515 = vmatpush2.msra.mxu0 0.0
    %1516 = vmatprep.subr.mxu0 0.0
    %1517 = vmatpush2.msra.mxu0 0.0
    %1518 = vmatprep.subr.mxu0 0.0
    %1519 = vmatpush2.msra.mxu0 0.0
    %1520 = vmatprep.subr.mxu0 0.0
    %1521 = vmatpush2.msra.mxu0 0.0
    %1522 = vmatprep.subr.mxu0 0.0
    %1523 = vmatpush2.msra.mxu0 0.0
    %1524 = vmatprep.subr.mxu0 0.0
    %1525 = vmatpush2.msra.mxu0 0.0
    %1526 = vmatprep.subr.mxu0 0.0
    %1527 = vmatpush2.msra.mxu0 0.0
    %1528 = vmatprep.subr.mxu0 0.0
    %1529 = vmatpush2.msra.mxu0 0.0
    %1530 = vmatprep.subr.mxu0 0.0
    %1531 = vmatpush2.msra.mxu0 0.0
    %1532 = vmatprep.subr.mxu0 0.0
    %1533 = vmatpush2.msra.mxu0 0.0
    %1534 = vmatprep.subr.mxu0 0.0
    %1535 = vmatpush2.msra.mxu0 0.0
    %1536 = vmatprep.subr.mxu0 0.0
    %1537 = vmatpush2.msra.mxu0 0.0
    %1538 = vmatprep.subr.mxu0 0.0
    %1539 = vmatpush2.msra.mxu0 0.0
    %1540 = vmatprep.subr.mxu0 0.0
    %1541 = vmatpush2.msra.mxu0 0.0
    %1542 = vmatprep.subr.mxu0 0.0
    %1543 = vmatpush2.msra.mxu0 0.0
    %1544 = vmatprep.subr.mxu0 0.0
    %1545 = vmatpush2.msra.mxu0 0.0
    %1546 = vmatprep.mubr.f32.mxu0 0.0
    %v1547 = vand.u32 %v113, 4294901760
    %v1548 = vsub.f32 %v113, %v1547
    %1549 = vmatmul.mubr.f32.gmra.mxu0 %v1548
    %v1550 = vpop.f32.mrf.mxu0
    %v1551 = vadd.f32 %v1469, %v1550
    %v1552 = vpop.f32.mrf.mxu0
    %1553 = vmatprep.mubr.f32.mxu0 0.0
    %v1554 = vand.u32 %v116, 4294901760
    %v1555 = vsub.f32 %v116, %v1554
    %1556 = vmatmul.mubr.f32.gmra.mxu0 %v1555
    %v1557 = vpop.f32.mrf.mxu0
    %v1558 = vadd.f32 %v1475, %v1557
    %v1559 = vpop.f32.mrf.mxu0
    %1560 = vdwg.mxu0
    %1561 = vmatprep.subr.mxu0 0.0
    %1562 = vmatpush1.msra.mxu0 0.0
    %1563 = vmatprep.subr.mxu0 0.0
    %1564 = vmatpush1.msra.mxu0 0.0
    %1565 = vmatprep.subr.mxu0 0.0
    %1566 = vmatpush1.msra.mxu0 0.0
    %1567 = vmatprep.subr.mxu0 0.0
    %1568 = vmatpush1.msra.mxu0 0.0
    %1569 = vmatprep.subr.mxu0 0.0
    %1570 = vmatpush1.msra.mxu0 0.0
    %1571 = vmatprep.subr.mxu0 0.0
    %1572 = vmatpush1.msra.mxu0 0.0
    %1573 = vmatprep.subr.mxu0 0.0
    %1574 = vmatpush1.msra.mxu0 0.0
    %1575 = vmatprep.subr.mxu0 0.0
    %1576 = vmatpush1.msra.mxu0 0.0
    %1577 = vmatprep.subr.mxu0 0.0
    %1578 = vmatpush1.msra.mxu0 0.0
    %1579 = vmatprep.subr.mxu0 0.0
    %1580 = vmatpush1.msra.mxu0 0.0
    %1581 = vmatprep.subr.mxu0 0.0
    %1582 = vmatpush1.msra.mxu0 0.0
    %1583 = vmatprep.subr.mxu0 0.0
    %1584 = vmatpush1.msra.mxu0 0.0
    %1585 = vmatprep.subr.mxu0 0.0
    %1586 = vmatpush1.msra.mxu0 0.0
    %1587 = vmatprep.subr.mxu0 0.0
    %1588 = vmatpush1.msra.mxu0 0.0
    %1589 = vmatprep.subr.mxu0 0.0
    %v1590 = vand.u32 %v92, 4294901760
    %1591 = vmatpush1.msra.mxu0 %v1590
    %1592 = vmatprep.subr.mxu0 0.0
    %v1593 = vand.u32 %v91, 4294901760
    %1594 = vmatpush1.msra.mxu0 %v1593
    %1595 = vmatprep.subr.mxu0 0.0
    %1596 = vmatpush2.msra.mxu0 0.0
    %1597 = vmatprep.subr.mxu0 0.0
    %1598 = vmatpush2.msra.mxu0 0.0
    %1599 = vmatprep.subr.mxu0 0.0
    %1600 = vmatpush2.msra.mxu0 0.0
    %1601 = vmatprep.subr.mxu0 0.0
    %1602 = vmatpush2.msra.mxu0 0.0
    %1603 = vmatprep.subr.mxu0 0.0
    %1604 = vmatpush2.msra.mxu0 0.0
    %1605 = vmatprep.subr.mxu0 0.0
    %1606 = vmatpush2.msra.mxu0 0.0
    %1607 = vmatprep.subr.mxu0 0.0
    %1608 = vmatpush2.msra.mxu0 0.0
    %1609 = vmatprep.subr.mxu0 0.0
    %1610 = vmatpush2.msra.mxu0 0.0
    %1611 = vmatprep.subr.mxu0 0.0
    %1612 = vmatpush2.msra.mxu0 0.0
    %1613 = vmatprep.subr.mxu0 0.0
    %1614 = vmatpush2.msra.mxu0 0.0
    %1615 = vmatprep.subr.mxu0 0.0
    %1616 = vmatpush2.msra.mxu0 0.0
    %1617 = vmatprep.subr.mxu0 0.0
    %1618 = vmatpush2.msra.mxu0 0.0
    %1619 = vmatprep.subr.mxu0 0.0
    %1620 = vmatpush2.msra.mxu0 0.0
    %1621 = vmatprep.subr.mxu0 0.0
    %1622 = vmatpush2.msra.mxu0 0.0
    %1623 = vmatprep.subr.mxu0 0.0
    %1624 = vmatpush2.msra.mxu0 0.0
    %1625 = vmatprep.subr.mxu0 0.0
    %1626 = vmatpush2.msra.mxu0 0.0
    %1627 = vmatprep.mubr.f32.mxu0 0.0
    %v1628 = vand.u32 %v113, 4294901760
    %v1629 = vsub.f32 %v113, %v1628
    %v1630 = vand.u32 %v1629, 4294901760
    %1631 = vmatmul.mubr.f32.gmra.mxu0 %v1630
    %v1632 = vpop.f32.mrf.mxu0
    %v1633 = vadd.f32 %v1551, %v1632
    %v1634 = vpop.f32.mrf.mxu0
    %1635 = vmatprep.mubr.f32.mxu0 0.0
    %v1636 = vand.u32 %v116, 4294901760
    %v1637 = vsub.f32 %v116, %v1636
    %v1638 = vand.u32 %v1637, 4294901760
    %1639 = vmatmul.mubr.f32.gmra.mxu0 %v1638
    %v1640 = vpop.f32.mrf.mxu0
    %v1641 = vadd.f32 %v1558, %v1640
    %v1642 = vpop.f32.mrf.mxu0
    %1643 = vdwg.mxu0
    %1644 = vmatprep.subr.mxu0 0.0
    %1645 = vmatpush1.msra.mxu0 0.0
    %1646 = vmatprep.subr.mxu0 0.0
    %1647 = vmatpush1.msra.mxu0 0.0
    %1648 = vmatprep.subr.mxu0 0.0
    %1649 = vmatpush1.msra.mxu0 0.0
    %1650 = vmatprep.subr.mxu0 0.0
    %1651 = vmatpush1.msra.mxu0 0.0
    %1652 = vmatprep.subr.mxu0 0.0
    %1653 = vmatpush1.msra.mxu0 0.0
    %1654 = vmatprep.subr.mxu0 0.0
    %1655 = vmatpush1.msra.mxu0 0.0
    %1656 = vmatprep.subr.mxu0 0.0
    %1657 = vmatpush1.msra.mxu0 0.0
    %1658 = vmatprep.subr.mxu0 0.0
    %1659 = vmatpush1.msra.mxu0 0.0
    %1660 = vmatprep.subr.mxu0 0.0
    %1661 = vmatpush1.msra.mxu0 0.0
    %1662 = vmatprep.subr.mxu0 0.0
    %1663 = vmatpush1.msra.mxu0 0.0
    %1664 = vmatprep.subr.mxu0 0.0
    %1665 = vmatpush1.msra.mxu0 0.0
    %1666 = vmatprep.subr.mxu0 0.0
    %1667 = vmatpush1.msra.mxu0 0.0
    %1668 = vmatprep.subr.mxu0 0.0
    %1669 = vmatpush1.msra.mxu0 0.0
    %1670 = vmatprep.subr.mxu0 0.0
    %1671 = vmatpush1.msra.mxu0 0.0
    %1672 = vmatprep.subr.mxu0 0.0
    %v1673 = vand.u32 %v92, 4294901760
    %v1674 = vsub.f32 %v92, %v1673
    %v1675 = vand.u32 %v1674, 4294901760
    %1676 = vmatpush1.msra.mxu0 %v1675
    %1677 = vmatprep.subr.mxu0 0.0
    %v1678 = vand.u32 %v91, 4294901760
    %v1679 = vsub.f32 %v91, %v1678
    %v1680 = vand.u32 %v1679, 4294901760
    %1681 = vmatpush1.msra.mxu0 %v1680
    %1682 = vmatprep.subr.mxu0 0.0
    %1683 = vmatpush2.msra.mxu0 0.0
    %1684 = vmatprep.subr.mxu0 0.0
    %1685 = vmatpush2.msra.mxu0 0.0
    %1686 = vmatprep.subr.mxu0 0.0
    %1687 = vmatpush2.msra.mxu0 0.0
    %1688 = vmatprep.subr.mxu0 0.0
    %1689 = vmatpush2.msra.mxu0 0.0
    %1690 = vmatprep.subr.mxu0 0.0
    %1691 = vmatpush2.msra.mxu0 0.0
    %1692 = vmatprep.subr.mxu0 0.0
    %1693 = vmatpush2.msra.mxu0 0.0
    %1694 = vmatprep.subr.mxu0 0.0
    %1695 = vmatpush2.msra.mxu0 0.0
    %1696 = vmatprep.subr.mxu0 0.0
    %1697 = vmatpush2.msra.mxu0 0.0
    %1698 = vmatprep.subr.mxu0 0.0
    %1699 = vmatpush2.msra.mxu0 0.0
    %1700 = vmatprep.subr.mxu0 0.0
    %1701 = vmatpush2.msra.mxu0 0.0
    %1702 = vmatprep.subr.mxu0 0.0
    %1703 = vmatpush2.msra.mxu0 0.0
    %1704 = vmatprep.subr.mxu0 0.0
    %1705 = vmatpush2.msra.mxu0 0.0
    %1706 = vmatprep.subr.mxu0 0.0
    %1707 = vmatpush2.msra.mxu0 0.0
    %1708 = vmatprep.subr.mxu0 0.0
    %1709 = vmatpush2.msra.mxu0 0.0
    %1710 = vmatprep.subr.mxu0 0.0
    %1711 = vmatpush2.msra.mxu0 0.0
    %1712 = vmatprep.subr.mxu0 0.0
    %1713 = vmatpush2.msra.mxu0 0.0
    %1714 = vmatprep.mubr.f32.mxu0 0.0
    %v1715 = vand.u32 %v113, 4294901760
    %1716 = vmatmul.mubr.f32.gmra.mxu0 %v1715
    %v1717 = vpop.f32.mrf.mxu0
    %v1718 = vadd.f32 %v1633, %v1717
    %v1719 = vpop.f32.mrf.mxu0
    %1720 = vmatprep.mubr.f32.mxu0 0.0
    %v1721 = vand.u32 %v116, 4294901760
    %1722 = vmatmul.mubr.f32.gmra.mxu0 %v1721
    %v1723 = vpop.f32.mrf.mxu0
    %v1724 = vadd.f32 %v1641, %v1723
    %v1725 = vpop.f32.mrf.mxu0
    %1726 = vdwg.mxu0
    %1727 = vmatprep.subr.mxu0 0.0
    %1728 = vmatpush1.msra.mxu0 0.0
    %1729 = vmatprep.subr.mxu0 0.0
    %1730 = vmatpush1.msra.mxu0 0.0
    %1731 = vmatprep.subr.mxu0 0.0
    %1732 = vmatpush1.msra.mxu0 0.0
    %1733 = vmatprep.subr.mxu0 0.0
    %1734 = vmatpush1.msra.mxu0 0.0
    %1735 = vmatprep.subr.mxu0 0.0
    %1736 = vmatpush1.msra.mxu0 0.0
    %1737 = vmatprep.subr.mxu0 0.0
    %1738 = vmatpush1.msra.mxu0 0.0
    %1739 = vmatprep.subr.mxu0 0.0
    %1740 = vmatpush1.msra.mxu0 0.0
    %1741 = vmatprep.subr.mxu0 0.0
    %1742 = vmatpush1.msra.mxu0 0.0
    %1743 = vmatprep.subr.mxu0 0.0
    %1744 = vmatpush1.msra.mxu0 0.0
    %1745 = vmatprep.subr.mxu0 0.0
    %1746 = vmatpush1.msra.mxu0 0.0
    %1747 = vmatprep.subr.mxu0 0.0
    %1748 = vmatpush1.msra.mxu0 0.0
    %1749 = vmatprep.subr.mxu0 0.0
    %1750 = vmatpush1.msra.mxu0 0.0
    %1751 = vmatprep.subr.mxu0 0.0
    %1752 = vmatpush1.msra.mxu0 0.0
    %1753 = vmatprep.subr.mxu0 0.0
    %1754 = vmatpush1.msra.mxu0 0.0
    %1755 = vmatprep.subr.mxu0 0.0
    %v1756 = vand.u32 %v92, 4294901760
    %1757 = vmatpush1.msra.mxu0 %v1756
    %1758 = vmatprep.subr.mxu0 0.0
    %v1759 = vand.u32 %v91, 4294901760
    %1760 = vmatpush1.msra.mxu0 %v1759
    %1761 = vmatprep.subr.mxu0 0.0
    %1762 = vmatpush2.msra.mxu0 0.0
    %1763 = vmatprep.subr.mxu0 0.0
    %1764 = vmatpush2.msra.mxu0 0.0
    %1765 = vmatprep.subr.mxu0 0.0
    %1766 = vmatpush2.msra.mxu0 0.0
    %1767 = vmatprep.subr.mxu0 0.0
    %1768 = vmatpush2.msra.mxu0 0.0
    %1769 = vmatprep.subr.mxu0 0.0
    %1770 = vmatpush2.msra.mxu0 0.0
    %1771 = vmatprep.subr.mxu0 0.0
    %1772 = vmatpush2.msra.mxu0 0.0
    %1773 = vmatprep.subr.mxu0 0.0
    %1774 = vmatpush2.msra.mxu0 0.0
    %1775 = vmatprep.subr.mxu0 0.0
    %1776 = vmatpush2.msra.mxu0 0.0
    %1777 = vmatprep.subr.mxu0 0.0
    %1778 = vmatpush2.msra.mxu0 0.0
    %1779 = vmatprep.subr.mxu0 0.0
    %1780 = vmatpush2.msra.mxu0 0.0
    %1781 = vmatprep.subr.mxu0 0.0
    %1782 = vmatpush2.msra.mxu0 0.0
    %1783 = vmatprep.subr.mxu0 0.0
    %1784 = vmatpush2.msra.mxu0 0.0
    %1785 = vmatprep.subr.mxu0 0.0
    %1786 = vmatpush2.msra.mxu0 0.0
    %1787 = vmatprep.subr.mxu0 0.0
    %1788 = vmatpush2.msra.mxu0 0.0
    %1789 = vmatprep.subr.mxu0 0.0
    %1790 = vmatpush2.msra.mxu0 0.0
    %1791 = vmatprep.subr.mxu0 0.0
    %1792 = vmatpush2.msra.mxu0 0.0
    %1793 = vmatprep.mubr.f32.mxu0 0.0
    %v1794 = vand.u32 %v113, 4294901760
    %1795 = vmatmul.mubr.f32.gmra.mxu0 %v1794
    %v1796 = vpop.f32.mrf.mxu0
    %v1797 = vadd.f32 %v1718, %v1796
    %v1798 = vpop.f32.mrf.mxu0
    %1799 = vmatprep.mubr.f32.mxu0 0.0
    %v1800 = vand.u32 %v116, 4294901760
    %1801 = vmatmul.mubr.f32.gmra.mxu0 %v1800
    %v1802 = vpop.f32.mrf.mxu0
    %v1803 = vadd.f32 %v1724, %v1802
    %v1804 = vpop.f32.mrf.mxu0
    %1805 = vdwg.mxu0
    %1806 = vmatprep.subr.mxu0 0.0
    %v1807 = vand.u32 %v110, 4294901760
    %1808 = vmatpush1.msra.mxu0 %v1807
    %1809 = vmatprep.subr.mxu0 0.0
    %v1810 = vand.u32 %v109, 4294901760
    %1811 = vmatpush1.msra.mxu0 %v1810
    %1812 = vmatprep.subr.mxu0 0.0
    %v1813 = vand.u32 %v108, 4294901760
    %1814 = vmatpush1.msra.mxu0 %v1813
    %1815 = vmatprep.subr.mxu0 0.0
    %v1816 = vand.u32 %v107, 4294901760
    %1817 = vmatpush1.msra.mxu0 %v1816
    %1818 = vmatprep.subr.mxu0 0.0
    %v1819 = vand.u32 %v106, 4294901760
    %1820 = vmatpush1.msra.mxu0 %v1819
    %1821 = vmatprep.subr.mxu0 0.0
    %v1822 = vand.u32 %v105, 4294901760
    %1823 = vmatpush1.msra.mxu0 %v1822
    %1824 = vmatprep.subr.mxu0 0.0
    %v1825 = vand.u32 %v104, 4294901760
    %1826 = vmatpush1.msra.mxu0 %v1825
    %1827 = vmatprep.subr.mxu0 0.0
    %v1828 = vand.u32 %v103, 4294901760
    %1829 = vmatpush1.msra.mxu0 %v1828
    %1830 = vmatprep.subr.mxu0 0.0
    %v1831 = vand.u32 %v102, 4294901760
    %1832 = vmatpush1.msra.mxu0 %v1831
    %1833 = vmatprep.subr.mxu0 0.0
    %v1834 = vand.u32 %v101, 4294901760
    %1835 = vmatpush1.msra.mxu0 %v1834
    %1836 = vmatprep.subr.mxu0 0.0
    %v1837 = vand.u32 %v100, 4294901760
    %1838 = vmatpush1.msra.mxu0 %v1837
    %1839 = vmatprep.subr.mxu0 0.0
    %v1840 = vand.u32 %v99, 4294901760
    %1841 = vmatpush1.msra.mxu0 %v1840
    %1842 = vmatprep.subr.mxu0 0.0
    %v1843 = vand.u32 %v98, 4294901760
    %1844 = vmatpush1.msra.mxu0 %v1843
    %1845 = vmatprep.subr.mxu0 0.0
    %v1846 = vand.u32 %v97, 4294901760
    %1847 = vmatpush1.msra.mxu0 %v1846
    %1848 = vmatprep.subr.mxu0 0.0
    %v1849 = vand.u32 %v96, 4294901760
    %1850 = vmatpush1.msra.mxu0 %v1849
    %1851 = vmatprep.subr.mxu0 0.0
    %v1852 = vand.u32 %v95, 4294901760
    %1853 = vmatpush1.msra.mxu0 %v1852
    %1854 = vmatprep.subr.mxu0 0.0
    %1855 = vmatpush2.msra.mxu0 0.0
    %1856 = vmatprep.subr.mxu0 0.0
    %1857 = vmatpush2.msra.mxu0 0.0
    %1858 = vmatprep.subr.mxu0 0.0
    %1859 = vmatpush2.msra.mxu0 0.0
    %1860 = vmatprep.subr.mxu0 0.0
    %1861 = vmatpush2.msra.mxu0 0.0
    %1862 = vmatprep.subr.mxu0 0.0
    %1863 = vmatpush2.msra.mxu0 0.0
    %1864 = vmatprep.subr.mxu0 0.0
    %1865 = vmatpush2.msra.mxu0 0.0
    %1866 = vmatprep.subr.mxu0 0.0
    %1867 = vmatpush2.msra.mxu0 0.0
    %1868 = vmatprep.subr.mxu0 0.0
    %1869 = vmatpush2.msra.mxu0 0.0
    %1870 = vmatprep.subr.mxu0 0.0
    %1871 = vmatpush2.msra.mxu0 0.0
    %1872 = vmatprep.subr.mxu0 0.0
    %1873 = vmatpush2.msra.mxu0 0.0
    %1874 = vmatprep.subr.mxu0 0.0
    %1875 = vmatpush2.msra.mxu0 0.0
    %1876 = vmatprep.subr.mxu0 0.0
    %1877 = vmatpush2.msra.mxu0 0.0
    %1878 = vmatprep.subr.mxu0 0.0
    %1879 = vmatpush2.msra.mxu0 0.0
    %1880 = vmatprep.subr.mxu0 0.0
    %1881 = vmatpush2.msra.mxu0 0.0
    %1882 = vmatprep.subr.mxu0 0.0
    %1883 = vmatpush2.msra.mxu0 0.0
    %1884 = vmatprep.subr.mxu0 0.0
    %1885 = vmatpush2.msra.mxu0 0.0
    %1886 = vmatprep.mubr.f32.mxu0 0.0
    %v1887 = vand.u32 %v1797, 4294901760
    %v1888 = vsub.f32 %v1797, %v1887
    %v1889 = vand.u32 %v1888, 4294901760
    %v1890 = vsub.f32 %v1888, %v1889
    %v1891 = vand.u32 %v1890, 4294901760
    %1892 = vmatmul.mubr.f32.gmra.mxu0 %v1891
    %v1893 = vpop.f32.mrf.mxu0
    %v1894 = vadd.f32 0.0, %v1893
    %v1895 = vpop.f32.mrf.mxu0
    %1896 = vmatprep.mubr.f32.mxu0 0.0
    %v1897 = vand.u32 %v1803, 4294901760
    %v1898 = vsub.f32 %v1803, %v1897
    %v1899 = vand.u32 %v1898, 4294901760
    %v1900 = vsub.f32 %v1898, %v1899
    %v1901 = vand.u32 %v1900, 4294901760
    %1902 = vmatmul.mubr.f32.gmra.mxu0 %v1901
    %v1903 = vpop.f32.mrf.mxu0
    %v1904 = vadd.f32 0.0, %v1903
    %v1905 = vpop.f32.mrf.mxu0
    %1906 = vdwg.mxu0
    %1907 = vmatprep.subr.mxu0 0.0
    %v1908 = vand.u32 %v110, 4294901760
    %v1909 = vsub.f32 %v110, %v1908
    %v1910 = vand.u32 %v1909, 4294901760
    %v1911 = vsub.f32 %v1909, %v1910
    %v1912 = vand.u32 %v1911, 4294901760
    %1913 = vmatpush1.msra.mxu0 %v1912
    %1914 = vmatprep.subr.mxu0 0.0
    %v1915 = vand.u32 %v109, 4294901760
    %v1916 = vsub.f32 %v109, %v1915
    %v1917 = vand.u32 %v1916, 4294901760
    %v1918 = vsub.f32 %v1916, %v1917
    %v1919 = vand.u32 %v1918, 4294901760
    %1920 = vmatpush1.msra.mxu0 %v1919
    %1921 = vmatprep.subr.mxu0 0.0
    %v1922 = vand.u32 %v108, 4294901760
    %v1923 = vsub.f32 %v108, %v1922
    %v1924 = vand.u32 %v1923, 4294901760
    %v1925 = vsub.f32 %v1923, %v1924
    %v1926 = vand.u32 %v1925, 4294901760
    %1927 = vmatpush1.msra.mxu0 %v1926
    %1928 = vmatprep.subr.mxu0 0.0
    %v1929 = vand.u32 %v107, 4294901760
    %v1930 = vsub.f32 %v107, %v1929
    %v1931 = vand.u32 %v1930, 4294901760
    %v1932 = vsub.f32 %v1930, %v1931
    %v1933 = vand.u32 %v1932, 4294901760
    %1934 = vmatpush1.msra.mxu0 %v1933
    %1935 = vmatprep.subr.mxu0 0.0
    %v1936 = vand.u32 %v106, 4294901760
    %v1937 = vsub.f32 %v106, %v1936
    %v1938 = vand.u32 %v1937, 4294901760
    %v1939 = vsub.f32 %v1937, %v1938
    %v1940 = vand.u32 %v1939, 4294901760
    %1941 = vmatpush1.msra.mxu0 %v1940
    %1942 = vmatprep.subr.mxu0 0.0
    %v1943 = vand.u32 %v105, 4294901760
    %v1944 = vsub.f32 %v105, %v1943
    %v1945 = vand.u32 %v1944, 4294901760
    %v1946 = vsub.f32 %v1944, %v1945
    %v1947 = vand.u32 %v1946, 4294901760
    %1948 = vmatpush1.msra.mxu0 %v1947
    %1949 = vmatprep.subr.mxu0 0.0
    %v1950 = vand.u32 %v104, 4294901760
    %v1951 = vsub.f32 %v104, %v1950
    %v1952 = vand.u32 %v1951, 4294901760
    %v1953 = vsub.f32 %v1951, %v1952
    %v1954 = vand.u32 %v1953, 4294901760
    %1955 = vmatpush1.msra.mxu0 %v1954
    %1956 = vmatprep.subr.mxu0 0.0
    %v1957 = vand.u32 %v103, 4294901760
    %v1958 = vsub.f32 %v103, %v1957
    %v1959 = vand.u32 %v1958, 4294901760
    %v1960 = vsub.f32 %v1958, %v1959
    %v1961 = vand.u32 %v1960, 4294901760
    %1962 = vmatpush1.msra.mxu0 %v1961
    %1963 = vmatprep.subr.mxu0 0.0
    %v1964 = vand.u32 %v102, 4294901760
    %v1965 = vsub.f32 %v102, %v1964
    %v1966 = vand.u32 %v1965, 4294901760
    %v1967 = vsub.f32 %v1965, %v1966
    %v1968 = vand.u32 %v1967, 4294901760
    %1969 = vmatpush1.msra.mxu0 %v1968
    %1970 = vmatprep.subr.mxu0 0.0
    %v1971 = vand.u32 %v101, 4294901760
    %v1972 = vsub.f32 %v101, %v1971
    %v1973 = vand.u32 %v1972, 4294901760
    %v1974 = vsub.f32 %v1972, %v1973
    %v1975 = vand.u32 %v1974, 4294901760
    %1976 = vmatpush1.msra.mxu0 %v1975
    %1977 = vmatprep.subr.mxu0 0.0
    %v1978 = vand.u32 %v100, 4294901760
    %v1979 = vsub.f32 %v100, %v1978
    %v1980 = vand.u32 %v1979, 4294901760
    %v1981 = vsub.f32 %v1979, %v1980
    %v1982 = vand.u32 %v1981, 4294901760
    %1983 = vmatpush1.msra.mxu0 %v1982
    %1984 = vmatprep.subr.mxu0 0.0
    %v1985 = vand.u32 %v99, 4294901760
    %v1986 = vsub.f32 %v99, %v1985
    %v1987 = vand.u32 %v1986, 4294901760
    %v1988 = vsub.f32 %v1986, %v1987
    %v1989 = vand.u32 %v1988, 4294901760
    %1990 = vmatpush1.msra.mxu0 %v1989
    %1991 = vmatprep.subr.mxu0 0.0
    %v1992 = vand.u32 %v98, 4294901760
    %v1993 = vsub.f32 %v98, %v1992
    %v1994 = vand.u32 %v1993, 4294901760
    %v1995 = vsub.f32 %v1993, %v1994
    %v1996 = vand.u32 %v1995, 4294901760
    %1997 = vmatpush1.msra.mxu0 %v1996
    %1998 = vmatprep.subr.mxu0 0.0
    %v1999 = vand.u32 %v97, 4294901760
    %v2000 = vsub.f32 %v97, %v1999
    %v2001 = vand.u32 %v2000, 4294901760
    %v2002 = vsub.f32 %v2000, %v2001
    %v2003 = vand.u32 %v2002, 4294901760
    %2004 = vmatpush1.msra.mxu0 %v2003
    %2005 = vmatprep.subr.mxu0 0.0
    %v2006 = vand.u32 %v96, 4294901760
    %v2007 = vsub.f32 %v96, %v2006
    %v2008 = vand.u32 %v2007, 4294901760
    %v2009 = vsub.f32 %v2007, %v2008
    %v2010 = vand.u32 %v2009, 4294901760
    %2011 = vmatpush1.msra.mxu0 %v2010
    %2012 = vmatprep.subr.mxu0 0.0
    %v2013 = vand.u32 %v95, 4294901760
    %v2014 = vsub.f32 %v95, %v2013
    %v2015 = vand.u32 %v2014, 4294901760
    %v2016 = vsub.f32 %v2014, %v2015
    %v2017 = vand.u32 %v2016, 4294901760
    %2018 = vmatpush1.msra.mxu0 %v2017
    %2019 = vmatprep.subr.mxu0 0.0
    %2020 = vmatpush2.msra.mxu0 0.0
    %2021 = vmatprep.subr.mxu0 0.0
    %2022 = vmatpush2.msra.mxu0 0.0
    %2023 = vmatprep.subr.mxu0 0.0
    %2024 = vmatpush2.msra.mxu0 0.0
    %2025 = vmatprep.subr.mxu0 0.0
    %2026 = vmatpush2.msra.mxu0 0.0
    %2027 = vmatprep.subr.mxu0 0.0
    %2028 = vmatpush2.msra.mxu0 0.0
    %2029 = vmatprep.subr.mxu0 0.0
    %2030 = vmatpush2.msra.mxu0 0.0
    %2031 = vmatprep.subr.mxu0 0.0
    %2032 = vmatpush2.msra.mxu0 0.0
    %2033 = vmatprep.subr.mxu0 0.0
    %2034 = vmatpush2.msra.mxu0 0.0
    %2035 = vmatprep.subr.mxu0 0.0
    %2036 = vmatpush2.msra.mxu0 0.0
    %2037 = vmatprep.subr.mxu0 0.0
    %2038 = vmatpush2.msra.mxu0 0.0
    %2039 = vmatprep.subr.mxu0 0.0
    %2040 = vmatpush2.msra.mxu0 0.0
    %2041 = vmatprep.subr.mxu0 0.0
    %2042 = vmatpush2.msra.mxu0 0.0
    %2043 = vmatprep.subr.mxu0 0.0
    %2044 = vmatpush2.msra.mxu0 0.0
    %2045 = vmatprep.subr.mxu0 0.0
    %2046 = vmatpush2.msra.mxu0 0.0
    %2047 = vmatprep.subr.mxu0 0.0
    %2048 = vmatpush2.msra.mxu0 0.0
    %2049 = vmatprep.subr.mxu0 0.0
    %2050 = vmatpush2.msra.mxu0 0.0
    %2051 = vmatprep.mubr.f32.mxu0 0.0
    %v2052 = vand.u32 %v1797, 4294901760
    %2053 = vmatmul.mubr.f32.gmra.mxu0 %v2052
    %v2054 = vpop.f32.mrf.mxu0
    %v2055 = vadd.f32 %v1894, %v2054
    %v2056 = vpop.f32.mrf.mxu0
    %2057 = vmatprep.mubr.f32.mxu0 0.0
    %v2058 = vand.u32 %v1803, 4294901760
    %2059 = vmatmul.mubr.f32.gmra.mxu0 %v2058
    %v2060 = vpop.f32.mrf.mxu0
    %v2061 = vadd.f32 %v1904, %v2060
    %v2062 = vpop.f32.mrf.mxu0
    %2063 = vdwg.mxu0
    %2064 = vmatprep.subr.mxu0 0.0
    %v2065 = vand.u32 %v110, 4294901760
    %v2066 = vsub.f32 %v110, %v2065
    %2067 = vmatpush1.msra.mxu0 %v2066
    %2068 = vmatprep.subr.mxu0 0.0
    %v2069 = vand.u32 %v109, 4294901760
    %v2070 = vsub.f32 %v109, %v2069
    %2071 = vmatpush1.msra.mxu0 %v2070
    %2072 = vmatprep.subr.mxu0 0.0
    %v2073 = vand.u32 %v108, 4294901760
    %v2074 = vsub.f32 %v108, %v2073
    %2075 = vmatpush1.msra.mxu0 %v2074
    %2076 = vmatprep.subr.mxu0 0.0
    %v2077 = vand.u32 %v107, 4294901760
    %v2078 = vsub.f32 %v107, %v2077
    %2079 = vmatpush1.msra.mxu0 %v2078
    %2080 = vmatprep.subr.mxu0 0.0
    %v2081 = vand.u32 %v106, 4294901760
    %v2082 = vsub.f32 %v106, %v2081
    %2083 = vmatpush1.msra.mxu0 %v2082
    %2084 = vmatprep.subr.mxu0 0.0
    %v2085 = vand.u32 %v105, 4294901760
    %v2086 = vsub.f32 %v105, %v2085
    %2087 = vmatpush1.msra.mxu0 %v2086
    %2088 = vmatprep.subr.mxu0 0.0
    %v2089 = vand.u32 %v104, 4294901760
    %v2090 = vsub.f32 %v104, %v2089
    %2091 = vmatpush1.msra.mxu0 %v2090
    %2092 = vmatprep.subr.mxu0 0.0
    %v2093 = vand.u32 %v103, 4294901760
    %v2094 = vsub.f32 %v103, %v2093
    %2095 = vmatpush1.msra.mxu0 %v2094
    %2096 = vmatprep.subr.mxu0 0.0
    %v2097 = vand.u32 %v102, 4294901760
    %v2098 = vsub.f32 %v102, %v2097
    %2099 = vmatpush1.msra.mxu0 %v2098
    %2100 = vmatprep.subr.mxu0 0.0
    %v2101 = vand.u32 %v101, 4294901760
    %v2102 = vsub.f32 %v101, %v2101
    %2103 = vmatpush1.msra.mxu0 %v2102
    %2104 = vmatprep.subr.mxu0 0.0
    %v2105 = vand.u32 %v100, 4294901760
    %v2106 = vsub.f32 %v100, %v2105
    %2107 = vmatpush1.msra.mxu0 %v2106
    %2108 = vmatprep.subr.mxu0 0.0
    %v2109 = vand.u32 %v99, 4294901760
    %v2110 = vsub.f32 %v99, %v2109
    %2111 = vmatpush1.msra.mxu0 %v2110
    %2112 = vmatprep.subr.mxu0 0.0
    %v2113 = vand.u32 %v98, 4294901760
    %v2114 = vsub.f32 %v98, %v2113
    %2115 = vmatpush1.msra.mxu0 %v2114
    %2116 = vmatprep.subr.mxu0 0.0
    %v2117 = vand.u32 %v97, 4294901760
    %v2118 = vsub.f32 %v97, %v2117
    %2119 = vmatpush1.msra.mxu0 %v2118
    %2120 = vmatprep.subr.mxu0 0.0
    %v2121 = vand.u32 %v96, 4294901760
    %v2122 = vsub.f32 %v96, %v2121
    %2123 = vmatpush1.msra.mxu0 %v2122
    %2124 = vmatprep.subr.mxu0 0.0
    %v2125 = vand.u32 %v95, 4294901760
    %v2126 = vsub.f32 %v95, %v2125
    %2127 = vmatpush1.msra.mxu0 %v2126
    %2128 = vmatprep.subr.mxu0 0.0
    %2129 = vmatpush2.msra.mxu0 0.0
    %2130 = vmatprep.subr.mxu0 0.0
    %2131 = vmatpush2.msra.mxu0 0.0
    %2132 = vmatprep.subr.mxu0 0.0
    %2133 = vmatpush2.msra.mxu0 0.0
    %2134 = vmatprep.subr.mxu0 0.0
    %2135 = vmatpush2.msra.mxu0 0.0
    %2136 = vmatprep.subr.mxu0 0.0
    %2137 = vmatpush2.msra.mxu0 0.0
    %2138 = vmatprep.subr.mxu0 0.0
    %2139 = vmatpush2.msra.mxu0 0.0
    %2140 = vmatprep.subr.mxu0 0.0
    %2141 = vmatpush2.msra.mxu0 0.0
    %2142 = vmatprep.subr.mxu0 0.0
    %2143 = vmatpush2.msra.mxu0 0.0
    %2144 = vmatprep.subr.mxu0 0.0
    %2145 = vmatpush2.msra.mxu0 0.0
    %2146 = vmatprep.subr.mxu0 0.0
    %2147 = vmatpush2.msra.mxu0 0.0
    %2148 = vmatprep.subr.mxu0 0.0
    %2149 = vmatpush2.msra.mxu0 0.0
    %2150 = vmatprep.subr.mxu0 0.0
    %2151 = vmatpush2.msra.mxu0 0.0
    %2152 = vmatprep.subr.mxu0 0.0
    %2153 = vmatpush2.msra.mxu0 0.0
    %2154 = vmatprep.subr.mxu0 0.0
    %2155 = vmatpush2.msra.mxu0 0.0
    %2156 = vmatprep.subr.mxu0 0.0
    %2157 = vmatpush2.msra.mxu0 0.0
    %2158 = vmatprep.subr.mxu0 0.0
    %2159 = vmatpush2.msra.mxu0 0.0
    %2160 = vmatprep.mubr.f32.mxu0 0.0
    %v2161 = vand.u32 %v1797, 4294901760
    %v2162 = vsub.f32 %v1797, %v2161
    %2163 = vmatmul.mubr.f32.gmra.mxu0 %v2162
    %v2164 = vpop.f32.mrf.mxu0
    %v2165 = vadd.f32 %v2055, %v2164
    %v2166 = vpop.f32.mrf.mxu0
    %2167 = vmatprep.mubr.f32.mxu0 0.0
    %v2168 = vand.u32 %v1803, 4294901760
    %v2169 = vsub.f32 %v1803, %v2168
    %2170 = vmatmul.mubr.f32.gmra.mxu0 %v2169
    %v2171 = vpop.f32.mrf.mxu0
    %v2172 = vadd.f32 %v2061, %v2171
    %v2173 = vpop.f32.mrf.mxu0
    %2174 = vdwg.mxu0
    %2175 = vmatprep.subr.mxu0 0.0
    %v2176 = vand.u32 %v110, 4294901760
    %2177 = vmatpush1.msra.mxu0 %v2176
    %2178 = vmatprep.subr.mxu0 0.0
    %v2179 = vand.u32 %v109, 4294901760
    %2180 = vmatpush1.msra.mxu0 %v2179
    %2181 = vmatprep.subr.mxu0 0.0
    %v2182 = vand.u32 %v108, 4294901760
    %2183 = vmatpush1.msra.mxu0 %v2182
    %2184 = vmatprep.subr.mxu0 0.0
    %v2185 = vand.u32 %v107, 4294901760
    %2186 = vmatpush1.msra.mxu0 %v2185
    %2187 = vmatprep.subr.mxu0 0.0
    %v2188 = vand.u32 %v106, 4294901760
    %2189 = vmatpush1.msra.mxu0 %v2188
    %2190 = vmatprep.subr.mxu0 0.0
    %v2191 = vand.u32 %v105, 4294901760
    %2192 = vmatpush1.msra.mxu0 %v2191
    %2193 = vmatprep.subr.mxu0 0.0
    %v2194 = vand.u32 %v104, 4294901760
    %2195 = vmatpush1.msra.mxu0 %v2194
    %2196 = vmatprep.subr.mxu0 0.0
    %v2197 = vand.u32 %v103, 4294901760
    %2198 = vmatpush1.msra.mxu0 %v2197
    %2199 = vmatprep.subr.mxu0 0.0
    %v2200 = vand.u32 %v102, 4294901760
    %2201 = vmatpush1.msra.mxu0 %v2200
    %2202 = vmatprep.subr.mxu0 0.0
    %v2203 = vand.u32 %v101, 4294901760
    %2204 = vmatpush1.msra.mxu0 %v2203
    %2205 = vmatprep.subr.mxu0 0.0
    %v2206 = vand.u32 %v100, 4294901760
    %2207 = vmatpush1.msra.mxu0 %v2206
    %2208 = vmatprep.subr.mxu0 0.0
    %v2209 = vand.u32 %v99, 4294901760
    %2210 = vmatpush1.msra.mxu0 %v2209
    %2211 = vmatprep.subr.mxu0 0.0
    %v2212 = vand.u32 %v98, 4294901760
    %2213 = vmatpush1.msra.mxu0 %v2212
    %2214 = vmatprep.subr.mxu0 0.0
    %v2215 = vand.u32 %v97, 4294901760
    %2216 = vmatpush1.msra.mxu0 %v2215
    %2217 = vmatprep.subr.mxu0 0.0
    %v2218 = vand.u32 %v96, 4294901760
    %2219 = vmatpush1.msra.mxu0 %v2218
    %2220 = vmatprep.subr.mxu0 0.0
    %v2221 = vand.u32 %v95, 4294901760
    %2222 = vmatpush1.msra.mxu0 %v2221
    %2223 = vmatprep.subr.mxu0 0.0
    %2224 = vmatpush2.msra.mxu0 0.0
    %2225 = vmatprep.subr.mxu0 0.0
    %2226 = vmatpush2.msra.mxu0 0.0
    %2227 = vmatprep.subr.mxu0 0.0
    %2228 = vmatpush2.msra.mxu0 0.0
    %2229 = vmatprep.subr.mxu0 0.0
    %2230 = vmatpush2.msra.mxu0 0.0
    %2231 = vmatprep.subr.mxu0 0.0
    %2232 = vmatpush2.msra.mxu0 0.0
    %2233 = vmatprep.subr.mxu0 0.0
    %2234 = vmatpush2.msra.mxu0 0.0
    %2235 = vmatprep.subr.mxu0 0.0
    %2236 = vmatpush2.msra.mxu0 0.0
    %2237 = vmatprep.subr.mxu0 0.0
    %2238 = vmatpush2.msra.mxu0 0.0
    %2239 = vmatprep.subr.mxu0 0.0
    %2240 = vmatpush2.msra.mxu0 0.0
    %2241 = vmatprep.subr.mxu0 0.0
    %2242 = vmatpush2.msra.mxu0 0.0
    %2243 = vmatprep.subr.mxu0 0.0
    %2244 = vmatpush2.msra.mxu0 0.0
    %2245 = vmatprep.subr.mxu0 0.0
    %2246 = vmatpush2.msra.mxu0 0.0
    %2247 = vmatprep.subr.mxu0 0.0
    %2248 = vmatpush2.msra.mxu0 0.0
    %2249 = vmatprep.subr.mxu0 0.0
    %2250 = vmatpush2.msra.mxu0 0.0
    %2251 = vmatprep.subr.mxu0 0.0
    %2252 = vmatpush2.msra.mxu0 0.0
    %2253 = vmatprep.subr.mxu0 0.0
    %2254 = vmatpush2.msra.mxu0 0.0
    %2255 = vmatprep.mubr.f32.mxu0 0.0
    %v2256 = vand.u32 %v1797, 4294901760
    %v2257 = vsub.f32 %v1797, %v2256
    %v2258 = vand.u32 %v2257, 4294901760
    %2259 = vmatmul.mubr.f32.gmra.mxu0 %v2258
    %v2260 = vpop.f32.mrf.mxu0
    %v2261 = vadd.f32 %v2165, %v2260
    %v2262 = vpop.f32.mrf.mxu0
    %2263 = vmatprep.mubr.f32.mxu0 0.0
    %v2264 = vand.u32 %v1803, 4294901760
    %v2265 = vsub.f32 %v1803, %v2264
    %v2266 = vand.u32 %v2265, 4294901760
    %2267 = vmatmul.mubr.f32.gmra.mxu0 %v2266
    %v2268 = vpop.f32.mrf.mxu0
    %v2269 = vadd.f32 %v2172, %v2268
    %v2270 = vpop.f32.mrf.mxu0
    %2271 = vdwg.mxu0
    %2272 = vmatprep.subr.mxu0 0.0
    %v2273 = vand.u32 %v110, 4294901760
    %v2274 = vsub.f32 %v110, %v2273
    %v2275 = vand.u32 %v2274, 4294901760
    %2276 = vmatpush1.msra.mxu0 %v2275
    %2277 = vmatprep.subr.mxu0 0.0
    %v2278 = vand.u32 %v109, 4294901760
    %v2279 = vsub.f32 %v109, %v2278
    %v2280 = vand.u32 %v2279, 4294901760
    %2281 = vmatpush1.msra.mxu0 %v2280
    %2282 = vmatprep.subr.mxu0 0.0
    %v2283 = vand.u32 %v108, 4294901760
    %v2284 = vsub.f32 %v108, %v2283
    %v2285 = vand.u32 %v2284, 4294901760
    %2286 = vmatpush1.msra.mxu0 %v2285
    %2287 = vmatprep.subr.mxu0 0.0
    %v2288 = vand.u32 %v107, 4294901760
    %v2289 = vsub.f32 %v107, %v2288
    %v2290 = vand.u32 %v2289, 4294901760
    %2291 = vmatpush1.msra.mxu0 %v2290
    %2292 = vmatprep.subr.mxu0 0.0
    %v2293 = vand.u32 %v106, 4294901760
    %v2294 = vsub.f32 %v106, %v2293
    %v2295 = vand.u32 %v2294, 4294901760
    %2296 = vmatpush1.msra.mxu0 %v2295
    %2297 = vmatprep.subr.mxu0 0.0
    %v2298 = vand.u32 %v105, 4294901760
    %v2299 = vsub.f32 %v105, %v2298
    %v2300 = vand.u32 %v2299, 4294901760
    %2301 = vmatpush1.msra.mxu0 %v2300
    %2302 = vmatprep.subr.mxu0 0.0
    %v2303 = vand.u32 %v104, 4294901760
    %v2304 = vsub.f32 %v104, %v2303
    %v2305 = vand.u32 %v2304, 4294901760
    %2306 = vmatpush1.msra.mxu0 %v2305
    %2307 = vmatprep.subr.mxu0 0.0
    %v2308 = vand.u32 %v103, 4294901760
    %v2309 = vsub.f32 %v103, %v2308
    %v2310 = vand.u32 %v2309, 4294901760
    %2311 = vmatpush1.msra.mxu0 %v2310
    %2312 = vmatprep.subr.mxu0 0.0
    %v2313 = vand.u32 %v102, 4294901760
    %v2314 = vsub.f32 %v102, %v2313
    %v2315 = vand.u32 %v2314, 4294901760
    %2316 = vmatpush1.msra.mxu0 %v2315
    %2317 = vmatprep.subr.mxu0 0.0
    %v2318 = vand.u32 %v101, 4294901760
    %v2319 = vsub.f32 %v101, %v2318
    %v2320 = vand.u32 %v2319, 4294901760
    %2321 = vmatpush1.msra.mxu0 %v2320
    %2322 = vmatprep.subr.mxu0 0.0
    %v2323 = vand.u32 %v100, 4294901760
    %v2324 = vsub.f32 %v100, %v2323
    %v2325 = vand.u32 %v2324, 4294901760
    %2326 = vmatpush1.msra.mxu0 %v2325
    %2327 = vmatprep.subr.mxu0 0.0
    %v2328 = vand.u32 %v99, 4294901760
    %v2329 = vsub.f32 %v99, %v2328
    %v2330 = vand.u32 %v2329, 4294901760
    %2331 = vmatpush1.msra.mxu0 %v2330
    %2332 = vmatprep.subr.mxu0 0.0
    %v2333 = vand.u32 %v98, 4294901760
    %v2334 = vsub.f32 %v98, %v2333
    %v2335 = vand.u32 %v2334, 4294901760
    %2336 = vmatpush1.msra.mxu0 %v2335
    %2337 = vmatprep.subr.mxu0 0.0
    %v2338 = vand.u32 %v97, 4294901760
    %v2339 = vsub.f32 %v97, %v2338
    %v2340 = vand.u32 %v2339, 4294901760
    %2341 = vmatpush1.msra.mxu0 %v2340
    %2342 = vmatprep.subr.mxu0 0.0
    %v2343 = vand.u32 %v96, 4294901760
    %v2344 = vsub.f32 %v96, %v2343
    %v2345 = vand.u32 %v2344, 4294901760
    %2346 = vmatpush1.msra.mxu0 %v2345
    %2347 = vmatprep.subr.mxu0 0.0
    %v2348 = vand.u32 %v95, 4294901760
    %v2349 = vsub.f32 %v95, %v2348
    %v2350 = vand.u32 %v2349, 4294901760
    %2351 = vmatpush1.msra.mxu0 %v2350
    %2352 = vmatprep.subr.mxu0 0.0
    %2353 = vmatpush2.msra.mxu0 0.0
    %2354 = vmatprep.subr.mxu0 0.0
    %2355 = vmatpush2.msra.mxu0 0.0
    %2356 = vmatprep.subr.mxu0 0.0
    %2357 = vmatpush2.msra.mxu0 0.0
    %2358 = vmatprep.subr.mxu0 0.0
    %2359 = vmatpush2.msra.mxu0 0.0
    %2360 = vmatprep.subr.mxu0 0.0
    %2361 = vmatpush2.msra.mxu0 0.0
    %2362 = vmatprep.subr.mxu0 0.0
    %2363 = vmatpush2.msra.mxu0 0.0
    %2364 = vmatprep.subr.mxu0 0.0
    %2365 = vmatpush2.msra.mxu0 0.0
    %2366 = vmatprep.subr.mxu0 0.0
    %2367 = vmatpush2.msra.mxu0 0.0
    %2368 = vmatprep.subr.mxu0 0.0
    %2369 = vmatpush2.msra.mxu0 0.0
    %2370 = vmatprep.subr.mxu0 0.0
    %2371 = vmatpush2.msra.mxu0 0.0
    %2372 = vmatprep.subr.mxu0 0.0
    %2373 = vmatpush2.msra.mxu0 0.0
    %2374 = vmatprep.subr.mxu0 0.0
    %2375 = vmatpush2.msra.mxu0 0.0
    %2376 = vmatprep.subr.mxu0 0.0
    %2377 = vmatpush2.msra.mxu0 0.0
    %2378 = vmatprep.subr.mxu0 0.0
    %2379 = vmatpush2.msra.mxu0 0.0
    %2380 = vmatprep.subr.mxu0 0.0
    %2381 = vmatpush2.msra.mxu0 0.0
    %2382 = vmatprep.subr.mxu0 0.0
    %2383 = vmatpush2.msra.mxu0 0.0
    %2384 = vmatprep.mubr.f32.mxu0 0.0
    %v2385 = vand.u32 %v1797, 4294901760
    %2386 = vmatmul.mubr.f32.gmra.mxu0 %v2385
    %v2387 = vpop.f32.mrf.mxu0
    %v2388 = vadd.f32 %v2261, %v2387
    %v2389 = vpop.f32.mrf.mxu0
    %2390 = vmatprep.mubr.f32.mxu0 0.0
    %v2391 = vand.u32 %v1803, 4294901760
    %2392 = vmatmul.mubr.f32.gmra.mxu0 %v2391
    %v2393 = vpop.f32.mrf.mxu0
    %v2394 = vadd.f32 %v2269, %v2393
    %v2395 = vpop.f32.mrf.mxu0
    %2396 = vdwg.mxu0
    %2397 = vmatprep.subr.mxu0 0.0
    %v2398 = vand.u32 %v110, 4294901760
    %2399 = vmatpush1.msra.mxu0 %v2398
    %2400 = vmatprep.subr.mxu0 0.0
    %v2401 = vand.u32 %v109, 4294901760
    %2402 = vmatpush1.msra.mxu0 %v2401
    %2403 = vmatprep.subr.mxu0 0.0
    %v2404 = vand.u32 %v108, 4294901760
    %2405 = vmatpush1.msra.mxu0 %v2404
    %2406 = vmatprep.subr.mxu0 0.0
    %v2407 = vand.u32 %v107, 4294901760
    %2408 = vmatpush1.msra.mxu0 %v2407
    %2409 = vmatprep.subr.mxu0 0.0
    %v2410 = vand.u32 %v106, 4294901760
    %2411 = vmatpush1.msra.mxu0 %v2410
    %2412 = vmatprep.subr.mxu0 0.0
    %v2413 = vand.u32 %v105, 4294901760
    %2414 = vmatpush1.msra.mxu0 %v2413
    %2415 = vmatprep.subr.mxu0 0.0
    %v2416 = vand.u32 %v104, 4294901760
    %2417 = vmatpush1.msra.mxu0 %v2416
    %2418 = vmatprep.subr.mxu0 0.0
    %v2419 = vand.u32 %v103, 4294901760
    %2420 = vmatpush1.msra.mxu0 %v2419
    %2421 = vmatprep.subr.mxu0 0.0
    %v2422 = vand.u32 %v102, 4294901760
    %2423 = vmatpush1.msra.mxu0 %v2422
    %2424 = vmatprep.subr.mxu0 0.0
    %v2425 = vand.u32 %v101, 4294901760
    %2426 = vmatpush1.msra.mxu0 %v2425
    %2427 = vmatprep.subr.mxu0 0.0
    %v2428 = vand.u32 %v100, 4294901760
    %2429 = vmatpush1.msra.mxu0 %v2428
    %2430 = vmatprep.subr.mxu0 0.0
    %v2431 = vand.u32 %v99, 4294901760
    %2432 = vmatpush1.msra.mxu0 %v2431
    %2433 = vmatprep.subr.mxu0 0.0
    %v2434 = vand.u32 %v98, 4294901760
    %2435 = vmatpush1.msra.mxu0 %v2434
    %2436 = vmatprep.subr.mxu0 0.0
    %v2437 = vand.u32 %v97, 4294901760
    %2438 = vmatpush1.msra.mxu0 %v2437
    %2439 = vmatprep.subr.mxu0 0.0
    %v2440 = vand.u32 %v96, 4294901760
    %2441 = vmatpush1.msra.mxu0 %v2440
    %2442 = vmatprep.subr.mxu0 0.0
    %v2443 = vand.u32 %v95, 4294901760
    %2444 = vmatpush1.msra.mxu0 %v2443
    %2445 = vmatprep.subr.mxu0 0.0
    %2446 = vmatpush2.msra.mxu0 0.0
    %2447 = vmatprep.subr.mxu0 0.0
    %2448 = vmatpush2.msra.mxu0 0.0
    %2449 = vmatprep.subr.mxu0 0.0
    %2450 = vmatpush2.msra.mxu0 0.0
    %2451 = vmatprep.subr.mxu0 0.0
    %2452 = vmatpush2.msra.mxu0 0.0
    %2453 = vmatprep.subr.mxu0 0.0
    %2454 = vmatpush2.msra.mxu0 0.0
    %2455 = vmatprep.subr.mxu0 0.0
    %2456 = vmatpush2.msra.mxu0 0.0
    %2457 = vmatprep.subr.mxu0 0.0
    %2458 = vmatpush2.msra.mxu0 0.0
    %2459 = vmatprep.subr.mxu0 0.0
    %2460 = vmatpush2.msra.mxu0 0.0
    %2461 = vmatprep.subr.mxu0 0.0
    %2462 = vmatpush2.msra.mxu0 0.0
    %2463 = vmatprep.subr.mxu0 0.0
    %2464 = vmatpush2.msra.mxu0 0.0
    %2465 = vmatprep.subr.mxu0 0.0
    %2466 = vmatpush2.msra.mxu0 0.0
    %2467 = vmatprep.subr.mxu0 0.0
    %2468 = vmatpush2.msra.mxu0 0.0
    %2469 = vmatprep.subr.mxu0 0.0
    %2470 = vmatpush2.msra.mxu0 0.0
    %2471 = vmatprep.subr.mxu0 0.0
    %2472 = vmatpush2.msra.mxu0 0.0
    %2473 = vmatprep.subr.mxu0 0.0
    %2474 = vmatpush2.msra.mxu0 0.0
    %2475 = vmatprep.subr.mxu0 0.0
    %2476 = vmatpush2.msra.mxu0 0.0
    %2477 = vmatprep.mubr.f32.mxu0 0.0
    %v2478 = vand.u32 %v1797, 4294901760
    %2479 = vmatmul.mubr.f32.gmra.mxu0 %v2478
    %v2480 = vpop.f32.mrf.mxu0
    %v2481 = vadd.f32 %v2388, %v2480
    %v2482 = vpop.f32.mrf.mxu0
    %2483 = vmatprep.mubr.f32.mxu0 0.0
    %v2484 = vand.u32 %v1803, 4294901760
    %2485 = vmatmul.mubr.f32.gmra.mxu0 %v2484
    %v2486 = vpop.f32.mrf.mxu0
    %v2487 = vadd.f32 %v2394, %v2486
    %v2488 = vpop.f32.mrf.mxu0
    %2489 = vdwg.mxu0
    %v2490 = vmul.f32 %v89, %v89
    %v2491 = vmul.f32 %v90, %v90
    %2492 = vmatprep.subr.mxu0 0.0
    %2493 = vmatpush1.msra.mxu0 0.0
    %2494 = vmatprep.subr.mxu0 0.0
    %2495 = vmatpush1.msra.mxu0 0.0
    %2496 = vmatprep.subr.mxu0 0.0
    %2497 = vmatpush1.msra.mxu0 0.0
    %2498 = vmatprep.subr.mxu0 0.0
    %2499 = vmatpush1.msra.mxu0 0.0
    %2500 = vmatprep.subr.mxu0 0.0
    %2501 = vmatpush1.msra.mxu0 0.0
    %2502 = vmatprep.subr.mxu0 0.0
    %2503 = vmatpush1.msra.mxu0 0.0
    %2504 = vmatprep.subr.mxu0 0.0
    %2505 = vmatpush1.msra.mxu0 0.0
    %2506 = vmatprep.subr.mxu0 0.0
    %2507 = vmatpush1.msra.mxu0 0.0
    %2508 = vmatprep.subr.mxu0 0.0
    %2509 = vmatpush1.msra.mxu0 0.0
    %2510 = vmatprep.subr.mxu0 0.0
    %2511 = vmatpush1.msra.mxu0 0.0
    %2512 = vmatprep.subr.mxu0 0.0
    %2513 = vmatpush1.msra.mxu0 0.0
    %2514 = vmatprep.subr.mxu0 0.0
    %2515 = vmatpush1.msra.mxu0 0.0
    %2516 = vmatprep.subr.mxu0 0.0
    %2517 = vmatpush1.msra.mxu0 0.0
    %2518 = vmatprep.subr.mxu0 0.0
    %2519 = vmatpush1.msra.mxu0 0.0
    %2520 = vmatprep.subr.mxu0 0.0
    %v2521 = vand.u32 %v2491, 4294901760
    %2522 = vmatpush1.msra.mxu0 %v2521
    %2523 = vmatprep.subr.mxu0 0.0
    %v2524 = vand.u32 %v2490, 4294901760
    %2525 = vmatpush1.msra.mxu0 %v2524
    %2526 = vmatprep.subr.mxu0 0.0
    %2527 = vmatpush2.msra.mxu0 0.0
    %2528 = vmatprep.subr.mxu0 0.0
    %2529 = vmatpush2.msra.mxu0 0.0
    %2530 = vmatprep.subr.mxu0 0.0
    %2531 = vmatpush2.msra.mxu0 0.0
    %2532 = vmatprep.subr.mxu0 0.0
    %2533 = vmatpush2.msra.mxu0 0.0
    %2534 = vmatprep.subr.mxu0 0.0
    %2535 = vmatpush2.msra.mxu0 0.0
    %2536 = vmatprep.subr.mxu0 0.0
    %2537 = vmatpush2.msra.mxu0 0.0
    %2538 = vmatprep.subr.mxu0 0.0
    %2539 = vmatpush2.msra.mxu0 0.0
    %2540 = vmatprep.subr.mxu0 0.0
    %2541 = vmatpush2.msra.mxu0 0.0
    %2542 = vmatprep.subr.mxu0 0.0
    %2543 = vmatpush2.msra.mxu0 0.0
    %2544 = vmatprep.subr.mxu0 0.0
    %2545 = vmatpush2.msra.mxu0 0.0
    %2546 = vmatprep.subr.mxu0 0.0
    %2547 = vmatpush2.msra.mxu0 0.0
    %2548 = vmatprep.subr.mxu0 0.0
    %2549 = vmatpush2.msra.mxu0 0.0
    %2550 = vmatprep.subr.mxu0 0.0
    %2551 = vmatpush2.msra.mxu0 0.0
    %2552 = vmatprep.subr.mxu0 0.0
    %2553 = vmatpush2.msra.mxu0 0.0
    %2554 = vmatprep.subr.mxu0 0.0
    %2555 = vmatpush2.msra.mxu0 0.0
    %2556 = vmatprep.subr.mxu0 0.0
    %2557 = vmatpush2.msra.mxu0 0.0
    %2558 = vmatprep.mubr.f32.mxu0 0.0
    %v2559 = vand.u32 %v113, 4294901760
    %v2560 = vsub.f32 %v113, %v2559
    %v2561 = vand.u32 %v2560, 4294901760
    %v2562 = vsub.f32 %v2560, %v2561
    %v2563 = vand.u32 %v2562, 4294901760
    %2564 = vmatmul.mubr.f32.gmra.mxu0 %v2563
    %v2565 = vpop.f32.mrf.mxu0
    %v2566 = vadd.f32 0.0, %v2565
    %v2567 = vpop.f32.mrf.mxu0
    %2568 = vmatprep.mubr.f32.mxu0 0.0
    %v2569 = vand.u32 %v116, 4294901760
    %v2570 = vsub.f32 %v116, %v2569
    %v2571 = vand.u32 %v2570, 4294901760
    %v2572 = vsub.f32 %v2570, %v2571
    %v2573 = vand.u32 %v2572, 4294901760
    %2574 = vmatmul.mubr.f32.gmra.mxu0 %v2573
    %v2575 = vpop.f32.mrf.mxu0
    %v2576 = vadd.f32 0.0, %v2575
    %v2577 = vpop.f32.mrf.mxu0
    %2578 = vdwg.mxu0
    %2579 = vmatprep.subr.mxu0 0.0
    %2580 = vmatpush1.msra.mxu0 0.0
    %2581 = vmatprep.subr.mxu0 0.0
    %2582 = vmatpush1.msra.mxu0 0.0
    %2583 = vmatprep.subr.mxu0 0.0
    %2584 = vmatpush1.msra.mxu0 0.0
    %2585 = vmatprep.subr.mxu0 0.0
    %2586 = vmatpush1.msra.mxu0 0.0
    %2587 = vmatprep.subr.mxu0 0.0
    %2588 = vmatpush1.msra.mxu0 0.0
    %2589 = vmatprep.subr.mxu0 0.0
    %2590 = vmatpush1.msra.mxu0 0.0
    %2591 = vmatprep.subr.mxu0 0.0
    %2592 = vmatpush1.msra.mxu0 0.0
    %2593 = vmatprep.subr.mxu0 0.0
    %2594 = vmatpush1.msra.mxu0 0.0
    %2595 = vmatprep.subr.mxu0 0.0
    %2596 = vmatpush1.msra.mxu0 0.0
    %2597 = vmatprep.subr.mxu0 0.0
    %2598 = vmatpush1.msra.mxu0 0.0
    %2599 = vmatprep.subr.mxu0 0.0
    %2600 = vmatpush1.msra.mxu0 0.0
    %2601 = vmatprep.subr.mxu0 0.0
    %2602 = vmatpush1.msra.mxu0 0.0
    %2603 = vmatprep.subr.mxu0 0.0
    %2604 = vmatpush1.msra.mxu0 0.0
    %2605 = vmatprep.subr.mxu0 0.0
    %2606 = vmatpush1.msra.mxu0 0.0
    %2607 = vmatprep.subr.mxu0 0.0
    %v2608 = vand.u32 %v2491, 4294901760
    %v2609 = vsub.f32 %v2491, %v2608
    %v2610 = vand.u32 %v2609, 4294901760
    %v2611 = vsub.f32 %v2609, %v2610
    %v2612 = vand.u32 %v2611, 4294901760
    %2613 = vmatpush1.msra.mxu0 %v2612
    %2614 = vmatprep.subr.mxu0 0.0
    %v2615 = vand.u32 %v2490, 4294901760
    %v2616 = vsub.f32 %v2490, %v2615
    %v2617 = vand.u32 %v2616, 4294901760
    %v2618 = vsub.f32 %v2616, %v2617
    %v2619 = vand.u32 %v2618, 4294901760
    %2620 = vmatpush1.msra.mxu0 %v2619
    %2621 = vmatprep.subr.mxu0 0.0
    %2622 = vmatpush2.msra.mxu0 0.0
    %2623 = vmatprep.subr.mxu0 0.0
    %2624 = vmatpush2.msra.mxu0 0.0
    %2625 = vmatprep.subr.mxu0 0.0
    %2626 = vmatpush2.msra.mxu0 0.0
    %2627 = vmatprep.subr.mxu0 0.0
    %2628 = vmatpush2.msra.mxu0 0.0
    %2629 = vmatprep.subr.mxu0 0.0
    %2630 = vmatpush2.msra.mxu0 0.0
    %2631 = vmatprep.subr.mxu0 0.0
    %2632 = vmatpush2.msra.mxu0 0.0
    %2633 = vmatprep.subr.mxu0 0.0
    %2634 = vmatpush2.msra.mxu0 0.0
    %2635 = vmatprep.subr.mxu0 0.0
    %2636 = vmatpush2.msra.mxu0 0.0
    %2637 = vmatprep.subr.mxu0 0.0
    %2638 = vmatpush2.msra.mxu0 0.0
    %2639 = vmatprep.subr.mxu0 0.0
    %2640 = vmatpush2.msra.mxu0 0.0
    %2641 = vmatprep.subr.mxu0 0.0
    %2642 = vmatpush2.msra.mxu0 0.0
    %2643 = vmatprep.subr.mxu0 0.0
    %2644 = vmatpush2.msra.mxu0 0.0
    %2645 = vmatprep.subr.mxu0 0.0
    %2646 = vmatpush2.msra.mxu0 0.0
    %2647 = vmatprep.subr.mxu0 0.0
    %2648 = vmatpush2.msra.mxu0 0.0
    %2649 = vmatprep.subr.mxu0 0.0
    %2650 = vmatpush2.msra.mxu0 0.0
    %2651 = vmatprep.subr.mxu0 0.0
    %2652 = vmatpush2.msra.mxu0 0.0
    %2653 = vmatprep.mubr.f32.mxu0 0.0
    %v2654 = vand.u32 %v113, 4294901760
    %2655 = vmatmul.mubr.f32.gmra.mxu0 %v2654
    %v2656 = vpop.f32.mrf.mxu0
    %v2657 = vadd.f32 %v2566, %v2656
    %v2658 = vpop.f32.mrf.mxu0
    %2659 = vmatprep.mubr.f32.mxu0 0.0
    %v2660 = vand.u32 %v116, 4294901760
    %2661 = vmatmul.mubr.f32.gmra.mxu0 %v2660
    %v2662 = vpop.f32.mrf.mxu0
    %v2663 = vadd.f32 %v2576, %v2662
    %v2664 = vpop.f32.mrf.mxu0
    %2665 = vdwg.mxu0
    %2666 = vmatprep.subr.mxu0 0.0
    %2667 = vmatpush1.msra.mxu0 0.0
    %2668 = vmatprep.subr.mxu0 0.0
    %2669 = vmatpush1.msra.mxu0 0.0
    %2670 = vmatprep.subr.mxu0 0.0
    %2671 = vmatpush1.msra.mxu0 0.0
    %2672 = vmatprep.subr.mxu0 0.0
    %2673 = vmatpush1.msra.mxu0 0.0
    %2674 = vmatprep.subr.mxu0 0.0
    %2675 = vmatpush1.msra.mxu0 0.0
    %2676 = vmatprep.subr.mxu0 0.0
    %2677 = vmatpush1.msra.mxu0 0.0
    %2678 = vmatprep.subr.mxu0 0.0
    %2679 = vmatpush1.msra.mxu0 0.0
    %2680 = vmatprep.subr.mxu0 0.0
    %2681 = vmatpush1.msra.mxu0 0.0
    %2682 = vmatprep.subr.mxu0 0.0
    %2683 = vmatpush1.msra.mxu0 0.0
    %2684 = vmatprep.subr.mxu0 0.0
    %2685 = vmatpush1.msra.mxu0 0.0
    %2686 = vmatprep.subr.mxu0 0.0
    %2687 = vmatpush1.msra.mxu0 0.0
    %2688 = vmatprep.subr.mxu0 0.0
    %2689 = vmatpush1.msra.mxu0 0.0
    %2690 = vmatprep.subr.mxu0 0.0
    %2691 = vmatpush1.msra.mxu0 0.0
    %2692 = vmatprep.subr.mxu0 0.0
    %2693 = vmatpush1.msra.mxu0 0.0
    %2694 = vmatprep.subr.mxu0 0.0
    %v2695 = vand.u32 %v2491, 4294901760
    %v2696 = vsub.f32 %v2491, %v2695
    %2697 = vmatpush1.msra.mxu0 %v2696
    %2698 = vmatprep.subr.mxu0 0.0
    %v2699 = vand.u32 %v2490, 4294901760
    %v2700 = vsub.f32 %v2490, %v2699
    %2701 = vmatpush1.msra.mxu0 %v2700
    %2702 = vmatprep.subr.mxu0 0.0
    %2703 = vmatpush2.msra.mxu0 0.0
    %2704 = vmatprep.subr.mxu0 0.0
    %2705 = vmatpush2.msra.mxu0 0.0
    %2706 = vmatprep.subr.mxu0 0.0
    %2707 = vmatpush2.msra.mxu0 0.0
    %2708 = vmatprep.subr.mxu0 0.0
    %2709 = vmatpush2.msra.mxu0 0.0
    %2710 = vmatprep.subr.mxu0 0.0
    %2711 = vmatpush2.msra.mxu0 0.0
    %2712 = vmatprep.subr.mxu0 0.0
    %2713 = vmatpush2.msra.mxu0 0.0
    %2714 = vmatprep.subr.mxu0 0.0
    %2715 = vmatpush2.msra.mxu0 0.0
    %2716 = vmatprep.subr.mxu0 0.0
    %2717 = vmatpush2.msra.mxu0 0.0
    %2718 = vmatprep.subr.mxu0 0.0
    %2719 = vmatpush2.msra.mxu0 0.0
    %2720 = vmatprep.subr.mxu0 0.0
    %2721 = vmatpush2.msra.mxu0 0.0
    %2722 = vmatprep.subr.mxu0 0.0
    %2723 = vmatpush2.msra.mxu0 0.0
    %2724 = vmatprep.subr.mxu0 0.0
    %2725 = vmatpush2.msra.mxu0 0.0
    %2726 = vmatprep.subr.mxu0 0.0
    %2727 = vmatpush2.msra.mxu0 0.0
    %2728 = vmatprep.subr.mxu0 0.0
    %2729 = vmatpush2.msra.mxu0 0.0
    %2730 = vmatprep.subr.mxu0 0.0
    %2731 = vmatpush2.msra.mxu0 0.0
    %2732 = vmatprep.subr.mxu0 0.0
    %2733 = vmatpush2.msra.mxu0 0.0
    %2734 = vmatprep.mubr.f32.mxu0 0.0
    %v2735 = vand.u32 %v113, 4294901760
    %v2736 = vsub.f32 %v113, %v2735
    %2737 = vmatmul.mubr.f32.gmra.mxu0 %v2736
    %v2738 = vpop.f32.mrf.mxu0
    %v2739 = vadd.f32 %v2657, %v2738
    %v2740 = vpop.f32.mrf.mxu0
    %2741 = vmatprep.mubr.f32.mxu0 0.0
    %v2742 = vand.u32 %v116, 4294901760
    %v2743 = vsub.f32 %v116, %v2742
    %2744 = vmatmul.mubr.f32.gmra.mxu0 %v2743
    %v2745 = vpop.f32.mrf.mxu0
    %v2746 = vadd.f32 %v2663, %v2745
    %v2747 = vpop.f32.mrf.mxu0
    %2748 = vdwg.mxu0
    %2749 = vmatprep.subr.mxu0 0.0
    %2750 = vmatpush1.msra.mxu0 0.0
    %2751 = vmatprep.subr.mxu0 0.0
    %2752 = vmatpush1.msra.mxu0 0.0
    %2753 = vmatprep.subr.mxu0 0.0
    %2754 = vmatpush1.msra.mxu0 0.0
    %2755 = vmatprep.subr.mxu0 0.0
    %2756 = vmatpush1.msra.mxu0 0.0
    %2757 = vmatprep.subr.mxu0 0.0
    %2758 = vmatpush1.msra.mxu0 0.0
    %2759 = vmatprep.subr.mxu0 0.0
    %2760 = vmatpush1.msra.mxu0 0.0
    %2761 = vmatprep.subr.mxu0 0.0
    %2762 = vmatpush1.msra.mxu0 0.0
    %2763 = vmatprep.subr.mxu0 0.0
    %2764 = vmatpush1.msra.mxu0 0.0
    %2765 = vmatprep.subr.mxu0 0.0
    %2766 = vmatpush1.msra.mxu0 0.0
    %2767 = vmatprep.subr.mxu0 0.0
    %2768 = vmatpush1.msra.mxu0 0.0
    %2769 = vmatprep.subr.mxu0 0.0
    %2770 = vmatpush1.msra.mxu0 0.0
    %2771 = vmatprep.subr.mxu0 0.0
    %2772 = vmatpush1.msra.mxu0 0.0
    %2773 = vmatprep.subr.mxu0 0.0
    %2774 = vmatpush1.msra.mxu0 0.0
    %2775 = vmatprep.subr.mxu0 0.0
    %2776 = vmatpush1.msra.mxu0 0.0
    %2777 = vmatprep.subr.mxu0 0.0
    %v2778 = vand.u32 %v2491, 4294901760
    %2779 = vmatpush1.msra.mxu0 %v2778
    %2780 = vmatprep.subr.mxu0 0.0
    %v2781 = vand.u32 %v2490, 4294901760
    %2782 = vmatpush1.msra.mxu0 %v2781
    %2783 = vmatprep.subr.mxu0 0.0
    %2784 = vmatpush2.msra.mxu0 0.0
    %2785 = vmatprep.subr.mxu0 0.0
    %2786 = vmatpush2.msra.mxu0 0.0
    %2787 = vmatprep.subr.mxu0 0.0
    %2788 = vmatpush2.msra.mxu0 0.0
    %2789 = vmatprep.subr.mxu0 0.0
    %2790 = vmatpush2.msra.mxu0 0.0
    %2791 = vmatprep.subr.mxu0 0.0
    %2792 = vmatpush2.msra.mxu0 0.0
    %2793 = vmatprep.subr.mxu0 0.0
    %2794 = vmatpush2.msra.mxu0 0.0
    %2795 = vmatprep.subr.mxu0 0.0
    %2796 = vmatpush2.msra.mxu0 0.0
    %2797 = vmatprep.subr.mxu0 0.0
    %2798 = vmatpush2.msra.mxu0 0.0
    %2799 = vmatprep.subr.mxu0 0.0
    %2800 = vmatpush2.msra.mxu0 0.0
    %2801 = vmatprep.subr.mxu0 0.0
    %2802 = vmatpush2.msra.mxu0 0.0
    %2803 = vmatprep.subr.mxu0 0.0
    %2804 = vmatpush2.msra.mxu0 0.0
    %2805 = vmatprep.subr.mxu0 0.0
    %2806 = vmatpush2.msra.mxu0 0.0
    %2807 = vmatprep.subr.mxu0 0.0
    %2808 = vmatpush2.msra.mxu0 0.0
    %2809 = vmatprep.subr.mxu0 0.0
    %2810 = vmatpush2.msra.mxu0 0.0
    %2811 = vmatprep.subr.mxu0 0.0
    %2812 = vmatpush2.msra.mxu0 0.0
    %2813 = vmatprep.subr.mxu0 0.0
    %2814 = vmatpush2.msra.mxu0 0.0
    %2815 = vmatprep.mubr.f32.mxu0 0.0
    %v2816 = vand.u32 %v113, 4294901760
    %v2817 = vsub.f32 %v113, %v2816
    %v2818 = vand.u32 %v2817, 4294901760
    %2819 = vmatmul.mubr.f32.gmra.mxu0 %v2818
    %v2820 = vpop.f32.mrf.mxu0
    %v2821 = vadd.f32 %v2739, %v2820
    %v2822 = vpop.f32.mrf.mxu0
    %2823 = vmatprep.mubr.f32.mxu0 0.0
    %v2824 = vand.u32 %v116, 4294901760
    %v2825 = vsub.f32 %v116, %v2824
    %v2826 = vand.u32 %v2825, 4294901760
    %2827 = vmatmul.mubr.f32.gmra.mxu0 %v2826
    %v2828 = vpop.f32.mrf.mxu0
    %v2829 = vadd.f32 %v2746, %v2828
    %v2830 = vpop.f32.mrf.mxu0
    %2831 = vdwg.mxu0
    %2832 = vmatprep.subr.mxu0 0.0
    %2833 = vmatpush1.msra.mxu0 0.0
    %2834 = vmatprep.subr.mxu0 0.0
    %2835 = vmatpush1.msra.mxu0 0.0
    %2836 = vmatprep.subr.mxu0 0.0
    %2837 = vmatpush1.msra.mxu0 0.0
    %2838 = vmatprep.subr.mxu0 0.0
    %2839 = vmatpush1.msra.mxu0 0.0
    %2840 = vmatprep.subr.mxu0 0.0
    %2841 = vmatpush1.msra.mxu0 0.0
    %2842 = vmatprep.subr.mxu0 0.0
    %2843 = vmatpush1.msra.mxu0 0.0
    %2844 = vmatprep.subr.mxu0 0.0
    %2845 = vmatpush1.msra.mxu0 0.0
    %2846 = vmatprep.subr.mxu0 0.0
    %2847 = vmatpush1.msra.mxu0 0.0
    %2848 = vmatprep.subr.mxu0 0.0
    %2849 = vmatpush1.msra.mxu0 0.0
    %2850 = vmatprep.subr.mxu0 0.0
    %2851 = vmatpush1.msra.mxu0 0.0
    %2852 = vmatprep.subr.mxu0 0.0
    %2853 = vmatpush1.msra.mxu0 0.0
    %2854 = vmatprep.subr.mxu0 0.0
    %2855 = vmatpush1.msra.mxu0 0.0
    %2856 = vmatprep.subr.mxu0 0.0
    %2857 = vmatpush1.msra.mxu0 0.0
    %2858 = vmatprep.subr.mxu0 0.0
    %2859 = vmatpush1.msra.mxu0 0.0
    %2860 = vmatprep.subr.mxu0 0.0
    %v2861 = vand.u32 %v2491, 4294901760
    %v2862 = vsub.f32 %v2491, %v2861
    %v2863 = vand.u32 %v2862, 4294901760
    %2864 = vmatpush1.msra.mxu0 %v2863
    %2865 = vmatprep.subr.mxu0 0.0
    %v2866 = vand.u32 %v2490, 4294901760
    %v2867 = vsub.f32 %v2490, %v2866
    %v2868 = vand.u32 %v2867, 4294901760
    %2869 = vmatpush1.msra.mxu0 %v2868
    %2870 = vmatprep.subr.mxu0 0.0
    %2871 = vmatpush2.msra.mxu0 0.0
    %2872 = vmatprep.subr.mxu0 0.0
    %2873 = vmatpush2.msra.mxu0 0.0
    %2874 = vmatprep.subr.mxu0 0.0
    %2875 = vmatpush2.msra.mxu0 0.0
    %2876 = vmatprep.subr.mxu0 0.0
    %2877 = vmatpush2.msra.mxu0 0.0
    %2878 = vmatprep.subr.mxu0 0.0
    %2879 = vmatpush2.msra.mxu0 0.0
    %2880 = vmatprep.subr.mxu0 0.0
    %2881 = vmatpush2.msra.mxu0 0.0
    %2882 = vmatprep.subr.mxu0 0.0
    %2883 = vmatpush2.msra.mxu0 0.0
    %2884 = vmatprep.subr.mxu0 0.0
    %2885 = vmatpush2.msra.mxu0 0.0
    %2886 = vmatprep.subr.mxu0 0.0
    %2887 = vmatpush2.msra.mxu0 0.0
    %2888 = vmatprep.subr.mxu0 0.0
    %2889 = vmatpush2.msra.mxu0 0.0
    %2890 = vmatprep.subr.mxu0 0.0
    %2891 = vmatpush2.msra.mxu0 0.0
    %2892 = vmatprep.subr.mxu0 0.0
    %2893 = vmatpush2.msra.mxu0 0.0
    %2894 = vmatprep.subr.mxu0 0.0
    %2895 = vmatpush2.msra.mxu0 0.0
    %2896 = vmatprep.subr.mxu0 0.0
    %2897 = vmatpush2.msra.mxu0 0.0
    %2898 = vmatprep.subr.mxu0 0.0
    %2899 = vmatpush2.msra.mxu0 0.0
    %2900 = vmatprep.subr.mxu0 0.0
    %2901 = vmatpush2.msra.mxu0 0.0
    %2902 = vmatprep.mubr.f32.mxu0 0.0
    %v2903 = vand.u32 %v113, 4294901760
    %2904 = vmatmul.mubr.f32.gmra.mxu0 %v2903
    %v2905 = vpop.f32.mrf.mxu0
    %v2906 = vadd.f32 %v2821, %v2905
    %v2907 = vpop.f32.mrf.mxu0
    %2908 = vmatprep.mubr.f32.mxu0 0.0
    %v2909 = vand.u32 %v116, 4294901760
    %2910 = vmatmul.mubr.f32.gmra.mxu0 %v2909
    %v2911 = vpop.f32.mrf.mxu0
    %v2912 = vadd.f32 %v2829, %v2911
    %v2913 = vpop.f32.mrf.mxu0
    %2914 = vdwg.mxu0
    %2915 = vmatprep.subr.mxu0 0.0
    %2916 = vmatpush1.msra.mxu0 0.0
    %2917 = vmatprep.subr.mxu0 0.0
    %2918 = vmatpush1.msra.mxu0 0.0
    %2919 = vmatprep.subr.mxu0 0.0
    %2920 = vmatpush1.msra.mxu0 0.0
    %2921 = vmatprep.subr.mxu0 0.0
    %2922 = vmatpush1.msra.mxu0 0.0
    %2923 = vmatprep.subr.mxu0 0.0
    %2924 = vmatpush1.msra.mxu0 0.0
    %2925 = vmatprep.subr.mxu0 0.0
    %2926 = vmatpush1.msra.mxu0 0.0
    %2927 = vmatprep.subr.mxu0 0.0
    %2928 = vmatpush1.msra.mxu0 0.0
    %2929 = vmatprep.subr.mxu0 0.0
    %2930 = vmatpush1.msra.mxu0 0.0
    %2931 = vmatprep.subr.mxu0 0.0
    %2932 = vmatpush1.msra.mxu0 0.0
    %2933 = vmatprep.subr.mxu0 0.0
    %2934 = vmatpush1.msra.mxu0 0.0
    %2935 = vmatprep.subr.mxu0 0.0
    %2936 = vmatpush1.msra.mxu0 0.0
    %2937 = vmatprep.subr.mxu0 0.0
    %2938 = vmatpush1.msra.mxu0 0.0
    %2939 = vmatprep.subr.mxu0 0.0
    %2940 = vmatpush1.msra.mxu0 0.0
    %2941 = vmatprep.subr.mxu0 0.0
    %2942 = vmatpush1.msra.mxu0 0.0
    %2943 = vmatprep.subr.mxu0 0.0
    %v2944 = vand.u32 %v2491, 4294901760
    %2945 = vmatpush1.msra.mxu0 %v2944
    %2946 = vmatprep.subr.mxu0 0.0
    %v2947 = vand.u32 %v2490, 4294901760
    %2948 = vmatpush1.msra.mxu0 %v2947
    %2949 = vmatprep.subr.mxu0 0.0
    %2950 = vmatpush2.msra.mxu0 0.0
    %2951 = vmatprep.subr.mxu0 0.0
    %2952 = vmatpush2.msra.mxu0 0.0
    %2953 = vmatprep.subr.mxu0 0.0
    %2954 = vmatpush2.msra.mxu0 0.0
    %2955 = vmatprep.subr.mxu0 0.0
    %2956 = vmatpush2.msra.mxu0 0.0
    %2957 = vmatprep.subr.mxu0 0.0
    %2958 = vmatpush2.msra.mxu0 0.0
    %2959 = vmatprep.subr.mxu0 0.0
    %2960 = vmatpush2.msra.mxu0 0.0
    %2961 = vmatprep.subr.mxu0 0.0
    %2962 = vmatpush2.msra.mxu0 0.0
    %2963 = vmatprep.subr.mxu0 0.0
    %2964 = vmatpush2.msra.mxu0 0.0
    %2965 = vmatprep.subr.mxu0 0.0
    %2966 = vmatpush2.msra.mxu0 0.0
    %2967 = vmatprep.subr.mxu0 0.0
    %2968 = vmatpush2.msra.mxu0 0.0
    %2969 = vmatprep.subr.mxu0 0.0
    %2970 = vmatpush2.msra.mxu0 0.0
    %2971 = vmatprep.subr.mxu0 0.0
    %2972 = vmatpush2.msra.mxu0 0.0
    %2973 = vmatprep.subr.mxu0 0.0
    %2974 = vmatpush2.msra.mxu0 0.0
    %2975 = vmatprep.subr.mxu0 0.0
    %2976 = vmatpush2.msra.mxu0 0.0
    %2977 = vmatprep.subr.mxu0 0.0
    %2978 = vmatpush2.msra.mxu0 0.0
    %2979 = vmatprep.subr.mxu0 0.0
    %2980 = vmatpush2.msra.mxu0 0.0
    %2981 = vmatprep.mubr.f32.mxu0 0.0
    %v2982 = vand.u32 %v113, 4294901760
    %2983 = vmatmul.mubr.f32.gmra.mxu0 %v2982
    %v2984 = vpop.f32.mrf.mxu0
    %v2985 = vadd.f32 %v2906, %v2984
    %v2986 = vpop.f32.mrf.mxu0
    %2987 = vmatprep.mubr.f32.mxu0 0.0
    %v2988 = vand.u32 %v116, 4294901760
    %2989 = vmatmul.mubr.f32.gmra.mxu0 %v2988
    %v2990 = vpop.f32.mrf.mxu0
    %v2991 = vadd.f32 %v2912, %v2990
    %v2992 = vpop.f32.mrf.mxu0
    %2993 = vdwg.mxu0
    %2994 = vmatprep.subr.mxu0 0.0
    %v2995 = vand.u32 %v110, 4294901760
    %2996 = vmatpush1.msra.mxu0 %v2995
    %2997 = vmatprep.subr.mxu0 0.0
    %v2998 = vand.u32 %v109, 4294901760
    %2999 = vmatpush1.msra.mxu0 %v2998
    %3000 = vmatprep.subr.mxu0 0.0
    %v3001 = vand.u32 %v108, 4294901760
    %3002 = vmatpush1.msra.mxu0 %v3001
    %3003 = vmatprep.subr.mxu0 0.0
    %v3004 = vand.u32 %v107, 4294901760
    %3005 = vmatpush1.msra.mxu0 %v3004
    %3006 = vmatprep.subr.mxu0 0.0
    %v3007 = vand.u32 %v106, 4294901760
    %3008 = vmatpush1.msra.mxu0 %v3007
    %3009 = vmatprep.subr.mxu0 0.0
    %v3010 = vand.u32 %v105, 4294901760
    %3011 = vmatpush1.msra.mxu0 %v3010
    %3012 = vmatprep.subr.mxu0 0.0
    %v3013 = vand.u32 %v104, 4294901760
    %3014 = vmatpush1.msra.mxu0 %v3013
    %3015 = vmatprep.subr.mxu0 0.0
    %v3016 = vand.u32 %v103, 4294901760
    %3017 = vmatpush1.msra.mxu0 %v3016
    %3018 = vmatprep.subr.mxu0 0.0
    %v3019 = vand.u32 %v102, 4294901760
    %3020 = vmatpush1.msra.mxu0 %v3019
    %3021 = vmatprep.subr.mxu0 0.0
    %v3022 = vand.u32 %v101, 4294901760
    %3023 = vmatpush1.msra.mxu0 %v3022
    %3024 = vmatprep.subr.mxu0 0.0
    %v3025 = vand.u32 %v100, 4294901760
    %3026 = vmatpush1.msra.mxu0 %v3025
    %3027 = vmatprep.subr.mxu0 0.0
    %v3028 = vand.u32 %v99, 4294901760
    %3029 = vmatpush1.msra.mxu0 %v3028
    %3030 = vmatprep.subr.mxu0 0.0
    %v3031 = vand.u32 %v98, 4294901760
    %3032 = vmatpush1.msra.mxu0 %v3031
    %3033 = vmatprep.subr.mxu0 0.0
    %v3034 = vand.u32 %v97, 4294901760
    %3035 = vmatpush1.msra.mxu0 %v3034
    %3036 = vmatprep.subr.mxu0 0.0
    %v3037 = vand.u32 %v96, 4294901760
    %3038 = vmatpush1.msra.mxu0 %v3037
    %3039 = vmatprep.subr.mxu0 0.0
    %v3040 = vand.u32 %v95, 4294901760
    %3041 = vmatpush1.msra.mxu0 %v3040
    %3042 = vmatprep.subr.mxu0 0.0
    %3043 = vmatpush2.msra.mxu0 0.0
    %3044 = vmatprep.subr.mxu0 0.0
    %3045 = vmatpush2.msra.mxu0 0.0
    %3046 = vmatprep.subr.mxu0 0.0
    %3047 = vmatpush2.msra.mxu0 0.0
    %3048 = vmatprep.subr.mxu0 0.0
    %3049 = vmatpush2.msra.mxu0 0.0
    %3050 = vmatprep.subr.mxu0 0.0
    %3051 = vmatpush2.msra.mxu0 0.0
    %3052 = vmatprep.subr.mxu0 0.0
    %3053 = vmatpush2.msra.mxu0 0.0
    %3054 = vmatprep.subr.mxu0 0.0
    %3055 = vmatpush2.msra.mxu0 0.0
    %3056 = vmatprep.subr.mxu0 0.0
    %3057 = vmatpush2.msra.mxu0 0.0
    %3058 = vmatprep.subr.mxu0 0.0
    %3059 = vmatpush2.msra.mxu0 0.0
    %3060 = vmatprep.subr.mxu0 0.0
    %3061 = vmatpush2.msra.mxu0 0.0
    %3062 = vmatprep.subr.mxu0 0.0
    %3063 = vmatpush2.msra.mxu0 0.0
    %3064 = vmatprep.subr.mxu0 0.0
    %3065 = vmatpush2.msra.mxu0 0.0
    %3066 = vmatprep.subr.mxu0 0.0
    %3067 = vmatpush2.msra.mxu0 0.0
    %3068 = vmatprep.subr.mxu0 0.0
    %3069 = vmatpush2.msra.mxu0 0.0
    %3070 = vmatprep.subr.mxu0 0.0
    %3071 = vmatpush2.msra.mxu0 0.0
    %3072 = vmatprep.subr.mxu0 0.0
    %3073 = vmatpush2.msra.mxu0 0.0
    %3074 = vmatprep.mubr.f32.mxu0 0.0
    %v3075 = vand.u32 %v2985, 4294901760
    %v3076 = vsub.f32 %v2985, %v3075
    %v3077 = vand.u32 %v3076, 4294901760
    %v3078 = vsub.f32 %v3076, %v3077
    %v3079 = vand.u32 %v3078, 4294901760
    %3080 = vmatmul.mubr.f32.gmra.mxu0 %v3079
    %v3081 = vpop.f32.mrf.mxu0
    %v3082 = vadd.f32 0.0, %v3081
    %v3083 = vpop.f32.mrf.mxu0
    %3084 = vmatprep.mubr.f32.mxu0 0.0
    %v3085 = vand.u32 %v2991, 4294901760
    %v3086 = vsub.f32 %v2991, %v3085
    %v3087 = vand.u32 %v3086, 4294901760
    %v3088 = vsub.f32 %v3086, %v3087
    %v3089 = vand.u32 %v3088, 4294901760
    %3090 = vmatmul.mubr.f32.gmra.mxu0 %v3089
    %v3091 = vpop.f32.mrf.mxu0
    %v3092 = vadd.f32 0.0, %v3091
    %v3093 = vpop.f32.mrf.mxu0
    %3094 = vdwg.mxu0
    %3095 = vmatprep.subr.mxu0 0.0
    %v3096 = vand.u32 %v110, 4294901760
    %v3097 = vsub.f32 %v110, %v3096
    %v3098 = vand.u32 %v3097, 4294901760
    %v3099 = vsub.f32 %v3097, %v3098
    %v3100 = vand.u32 %v3099, 4294901760
    %3101 = vmatpush1.msra.mxu0 %v3100
    %3102 = vmatprep.subr.mxu0 0.0
    %v3103 = vand.u32 %v109, 4294901760
    %v3104 = vsub.f32 %v109, %v3103
    %v3105 = vand.u32 %v3104, 4294901760
    %v3106 = vsub.f32 %v3104, %v3105
    %v3107 = vand.u32 %v3106, 4294901760
    %3108 = vmatpush1.msra.mxu0 %v3107
    %3109 = vmatprep.subr.mxu0 0.0
    %v3110 = vand.u32 %v108, 4294901760
    %v3111 = vsub.f32 %v108, %v3110
    %v3112 = vand.u32 %v3111, 4294901760
    %v3113 = vsub.f32 %v3111, %v3112
    %v3114 = vand.u32 %v3113, 4294901760
    %3115 = vmatpush1.msra.mxu0 %v3114
    %3116 = vmatprep.subr.mxu0 0.0
    %v3117 = vand.u32 %v107, 4294901760
    %v3118 = vsub.f32 %v107, %v3117
    %v3119 = vand.u32 %v3118, 4294901760
    %v3120 = vsub.f32 %v3118, %v3119
    %v3121 = vand.u32 %v3120, 4294901760
    %3122 = vmatpush1.msra.mxu0 %v3121
    %3123 = vmatprep.subr.mxu0 0.0
    %v3124 = vand.u32 %v106, 4294901760
    %v3125 = vsub.f32 %v106, %v3124
    %v3126 = vand.u32 %v3125, 4294901760
    %v3127 = vsub.f32 %v3125, %v3126
    %v3128 = vand.u32 %v3127, 4294901760
    %3129 = vmatpush1.msra.mxu0 %v3128
    %3130 = vmatprep.subr.mxu0 0.0
    %v3131 = vand.u32 %v105, 4294901760
    %v3132 = vsub.f32 %v105, %v3131
    %v3133 = vand.u32 %v3132, 4294901760
    %v3134 = vsub.f32 %v3132, %v3133
    %v3135 = vand.u32 %v3134, 4294901760
    %3136 = vmatpush1.msra.mxu0 %v3135
    %3137 = vmatprep.subr.mxu0 0.0
    %v3138 = vand.u32 %v104, 4294901760
    %v3139 = vsub.f32 %v104, %v3138
    %v3140 = vand.u32 %v3139, 4294901760
    %v3141 = vsub.f32 %v3139, %v3140
    %v3142 = vand.u32 %v3141, 4294901760
    %3143 = vmatpush1.msra.mxu0 %v3142
    %3144 = vmatprep.subr.mxu0 0.0
    %v3145 = vand.u32 %v103, 4294901760
    %v3146 = vsub.f32 %v103, %v3145
    %v3147 = vand.u32 %v3146, 4294901760
    %v3148 = vsub.f32 %v3146, %v3147
    %v3149 = vand.u32 %v3148, 4294901760
    %3150 = vmatpush1.msra.mxu0 %v3149
    %3151 = vmatprep.subr.mxu0 0.0
    %v3152 = vand.u32 %v102, 4294901760
    %v3153 = vsub.f32 %v102, %v3152
    %v3154 = vand.u32 %v3153, 4294901760
    %v3155 = vsub.f32 %v3153, %v3154
    %v3156 = vand.u32 %v3155, 4294901760
    %3157 = vmatpush1.msra.mxu0 %v3156
    %3158 = vmatprep.subr.mxu0 0.0
    %v3159 = vand.u32 %v101, 4294901760
    %v3160 = vsub.f32 %v101, %v3159
    %v3161 = vand.u32 %v3160, 4294901760
    %v3162 = vsub.f32 %v3160, %v3161
    %v3163 = vand.u32 %v3162, 4294901760
    %3164 = vmatpush1.msra.mxu0 %v3163
    %3165 = vmatprep.subr.mxu0 0.0
    %v3166 = vand.u32 %v100, 4294901760
    %v3167 = vsub.f32 %v100, %v3166
    %v3168 = vand.u32 %v3167, 4294901760
    %v3169 = vsub.f32 %v3167, %v3168
    %v3170 = vand.u32 %v3169, 4294901760
    %3171 = vmatpush1.msra.mxu0 %v3170
    %3172 = vmatprep.subr.mxu0 0.0
    %v3173 = vand.u32 %v99, 4294901760
    %v3174 = vsub.f32 %v99, %v3173
    %v3175 = vand.u32 %v3174, 4294901760
    %v3176 = vsub.f32 %v3174, %v3175
    %v3177 = vand.u32 %v3176, 4294901760
    %3178 = vmatpush1.msra.mxu0 %v3177
    %3179 = vmatprep.subr.mxu0 0.0
    %v3180 = vand.u32 %v98, 4294901760
    %v3181 = vsub.f32 %v98, %v3180
    %v3182 = vand.u32 %v3181, 4294901760
    %v3183 = vsub.f32 %v3181, %v3182
    %v3184 = vand.u32 %v3183, 4294901760
    %3185 = vmatpush1.msra.mxu0 %v3184
    %3186 = vmatprep.subr.mxu0 0.0
    %v3187 = vand.u32 %v97, 4294901760
    %v3188 = vsub.f32 %v97, %v3187
    %v3189 = vand.u32 %v3188, 4294901760
    %v3190 = vsub.f32 %v3188, %v3189
    %v3191 = vand.u32 %v3190, 4294901760
    %3192 = vmatpush1.msra.mxu0 %v3191
    %3193 = vmatprep.subr.mxu0 0.0
    %v3194 = vand.u32 %v96, 4294901760
    %v3195 = vsub.f32 %v96, %v3194
    %v3196 = vand.u32 %v3195, 4294901760
    %v3197 = vsub.f32 %v3195, %v3196
    %v3198 = vand.u32 %v3197, 4294901760
    %3199 = vmatpush1.msra.mxu0 %v3198
    %3200 = vmatprep.subr.mxu0 0.0
    %v3201 = vand.u32 %v95, 4294901760
    %v3202 = vsub.f32 %v95, %v3201
    %v3203 = vand.u32 %v3202, 4294901760
    %v3204 = vsub.f32 %v3202, %v3203
    %v3205 = vand.u32 %v3204, 4294901760
    %3206 = vmatpush1.msra.mxu0 %v3205
    %3207 = vmatprep.subr.mxu0 0.0
    %3208 = vmatpush2.msra.mxu0 0.0
    %3209 = vmatprep.subr.mxu0 0.0
    %3210 = vmatpush2.msra.mxu0 0.0
    %3211 = vmatprep.subr.mxu0 0.0
    %3212 = vmatpush2.msra.mxu0 0.0
    %3213 = vmatprep.subr.mxu0 0.0
    %3214 = vmatpush2.msra.mxu0 0.0
    %3215 = vmatprep.subr.mxu0 0.0
    %3216 = vmatpush2.msra.mxu0 0.0
    %3217 = vmatprep.subr.mxu0 0.0
    %3218 = vmatpush2.msra.mxu0 0.0
    %3219 = vmatprep.subr.mxu0 0.0
    %3220 = vmatpush2.msra.mxu0 0.0
    %3221 = vmatprep.subr.mxu0 0.0
    %3222 = vmatpush2.msra.mxu0 0.0
    %3223 = vmatprep.subr.mxu0 0.0
    %3224 = vmatpush2.msra.mxu0 0.0
    %3225 = vmatprep.subr.mxu0 0.0
    %3226 = vmatpush2.msra.mxu0 0.0
    %3227 = vmatprep.subr.mxu0 0.0
    %3228 = vmatpush2.msra.mxu0 0.0
    %3229 = vmatprep.subr.mxu0 0.0
    %3230 = vmatpush2.msra.mxu0 0.0
    %3231 = vmatprep.subr.mxu0 0.0
    %3232 = vmatpush2.msra.mxu0 0.0
    %3233 = vmatprep.subr.mxu0 0.0
    %3234 = vmatpush2.msra.mxu0 0.0
    %3235 = vmatprep.subr.mxu0 0.0
    %3236 = vmatpush2.msra.mxu0 0.0
    %3237 = vmatprep.subr.mxu0 0.0
    %3238 = vmatpush2.msra.mxu0 0.0
    %3239 = vmatprep.mubr.f32.mxu0 0.0
    %v3240 = vand.u32 %v2985, 4294901760
    %3241 = vmatmul.mubr.f32.gmra.mxu0 %v3240
    %v3242 = vpop.f32.mrf.mxu0
    %v3243 = vadd.f32 %v3082, %v3242
    %v3244 = vpop.f32.mrf.mxu0
    %3245 = vmatprep.mubr.f32.mxu0 0.0
    %v3246 = vand.u32 %v2991, 4294901760
    %3247 = vmatmul.mubr.f32.gmra.mxu0 %v3246
    %v3248 = vpop.f32.mrf.mxu0
    %v3249 = vadd.f32 %v3092, %v3248
    %v3250 = vpop.f32.mrf.mxu0
    %3251 = vdwg.mxu0
    %3252 = vmatprep.subr.mxu0 0.0
    %v3253 = vand.u32 %v110, 4294901760
    %v3254 = vsub.f32 %v110, %v3253
    %3255 = vmatpush1.msra.mxu0 %v3254
    %3256 = vmatprep.subr.mxu0 0.0
    %v3257 = vand.u32 %v109, 4294901760
    %v3258 = vsub.f32 %v109, %v3257
    %3259 = vmatpush1.msra.mxu0 %v3258
    %3260 = vmatprep.subr.mxu0 0.0
    %v3261 = vand.u32 %v108, 4294901760
    %v3262 = vsub.f32 %v108, %v3261
    %3263 = vmatpush1.msra.mxu0 %v3262
    %3264 = vmatprep.subr.mxu0 0.0
    %v3265 = vand.u32 %v107, 4294901760
    %v3266 = vsub.f32 %v107, %v3265
    %3267 = vmatpush1.msra.mxu0 %v3266
    %3268 = vmatprep.subr.mxu0 0.0
    %v3269 = vand.u32 %v106, 4294901760
    %v3270 = vsub.f32 %v106, %v3269
    %3271 = vmatpush1.msra.mxu0 %v3270
    %3272 = vmatprep.subr.mxu0 0.0
    %v3273 = vand.u32 %v105, 4294901760
    %v3274 = vsub.f32 %v105, %v3273
    %3275 = vmatpush1.msra.mxu0 %v3274
    %3276 = vmatprep.subr.mxu0 0.0
    %v3277 = vand.u32 %v104, 4294901760
    %v3278 = vsub.f32 %v104, %v3277
    %3279 = vmatpush1.msra.mxu0 %v3278
    %3280 = vmatprep.subr.mxu0 0.0
    %v3281 = vand.u32 %v103, 4294901760
    %v3282 = vsub.f32 %v103, %v3281
    %3283 = vmatpush1.msra.mxu0 %v3282
    %3284 = vmatprep.subr.mxu0 0.0
    %v3285 = vand.u32 %v102, 4294901760
    %v3286 = vsub.f32 %v102, %v3285
    %3287 = vmatpush1.msra.mxu0 %v3286
    %3288 = vmatprep.subr.mxu0 0.0
    %v3289 = vand.u32 %v101, 4294901760
    %v3290 = vsub.f32 %v101, %v3289
    %3291 = vmatpush1.msra.mxu0 %v3290
    %3292 = vmatprep.subr.mxu0 0.0
    %v3293 = vand.u32 %v100, 4294901760
    %v3294 = vsub.f32 %v100, %v3293
    %3295 = vmatpush1.msra.mxu0 %v3294
    %3296 = vmatprep.subr.mxu0 0.0
    %v3297 = vand.u32 %v99, 4294901760
    %v3298 = vsub.f32 %v99, %v3297
    %3299 = vmatpush1.msra.mxu0 %v3298
    %3300 = vmatprep.subr.mxu0 0.0
    %v3301 = vand.u32 %v98, 4294901760
    %v3302 = vsub.f32 %v98, %v3301
    %3303 = vmatpush1.msra.mxu0 %v3302
    %3304 = vmatprep.subr.mxu0 0.0
    %v3305 = vand.u32 %v97, 4294901760
    %v3306 = vsub.f32 %v97, %v3305
    %3307 = vmatpush1.msra.mxu0 %v3306
    %3308 = vmatprep.subr.mxu0 0.0
    %v3309 = vand.u32 %v96, 4294901760
    %v3310 = vsub.f32 %v96, %v3309
    %3311 = vmatpush1.msra.mxu0 %v3310
    %3312 = vmatprep.subr.mxu0 0.0
    %v3313 = vand.u32 %v95, 4294901760
    %v3314 = vsub.f32 %v95, %v3313
    %3315 = vmatpush1.msra.mxu0 %v3314
    %3316 = vmatprep.subr.mxu0 0.0
    %3317 = vmatpush2.msra.mxu0 0.0
    %3318 = vmatprep.subr.mxu0 0.0
    %3319 = vmatpush2.msra.mxu0 0.0
    %3320 = vmatprep.subr.mxu0 0.0
    %3321 = vmatpush2.msra.mxu0 0.0
    %3322 = vmatprep.subr.mxu0 0.0
    %3323 = vmatpush2.msra.mxu0 0.0
    %3324 = vmatprep.subr.mxu0 0.0
    %3325 = vmatpush2.msra.mxu0 0.0
    %3326 = vmatprep.subr.mxu0 0.0
    %3327 = vmatpush2.msra.mxu0 0.0
    %3328 = vmatprep.subr.mxu0 0.0
    %3329 = vmatpush2.msra.mxu0 0.0
    %3330 = vmatprep.subr.mxu0 0.0
    %3331 = vmatpush2.msra.mxu0 0.0
    %3332 = vmatprep.subr.mxu0 0.0
    %3333 = vmatpush2.msra.mxu0 0.0
    %3334 = vmatprep.subr.mxu0 0.0
    %3335 = vmatpush2.msra.mxu0 0.0
    %3336 = vmatprep.subr.mxu0 0.0
    %3337 = vmatpush2.msra.mxu0 0.0
    %3338 = vmatprep.subr.mxu0 0.0
    %3339 = vmatpush2.msra.mxu0 0.0
    %3340 = vmatprep.subr.mxu0 0.0
    %3341 = vmatpush2.msra.mxu0 0.0
    %3342 = vmatprep.subr.mxu0 0.0
    %3343 = vmatpush2.msra.mxu0 0.0
    %3344 = vmatprep.subr.mxu0 0.0
    %3345 = vmatpush2.msra.mxu0 0.0
    %3346 = vmatprep.subr.mxu0 0.0
    %3347 = vmatpush2.msra.mxu0 0.0
    %3348 = vmatprep.mubr.f32.mxu0 0.0
    %v3349 = vand.u32 %v2985, 4294901760
    %v3350 = vsub.f32 %v2985, %v3349
    %3351 = vmatmul.mubr.f32.gmra.mxu0 %v3350
    %v3352 = vpop.f32.mrf.mxu0
    %v3353 = vadd.f32 %v3243, %v3352
    %v3354 = vpop.f32.mrf.mxu0
    %3355 = vmatprep.mubr.f32.mxu0 0.0
    %v3356 = vand.u32 %v2991, 4294901760
    %v3357 = vsub.f32 %v2991, %v3356
    %3358 = vmatmul.mubr.f32.gmra.mxu0 %v3357
    %v3359 = vpop.f32.mrf.mxu0
    %v3360 = vadd.f32 %v3249, %v3359
    %v3361 = vpop.f32.mrf.mxu0
    %3362 = vdwg.mxu0
    %3363 = vmatprep.subr.mxu0 0.0
    %v3364 = vand.u32 %v110, 4294901760
    %3365 = vmatpush1.msra.mxu0 %v3364
    %3366 = vmatprep.subr.mxu0 0.0
    %v3367 = vand.u32 %v109, 4294901760
    %3368 = vmatpush1.msra.mxu0 %v3367
    %3369 = vmatprep.subr.mxu0 0.0
    %v3370 = vand.u32 %v108, 4294901760
    %3371 = vmatpush1.msra.mxu0 %v3370
    %3372 = vmatprep.subr.mxu0 0.0
    %v3373 = vand.u32 %v107, 4294901760
    %3374 = vmatpush1.msra.mxu0 %v3373
    %3375 = vmatprep.subr.mxu0 0.0
    %v3376 = vand.u32 %v106, 4294901760
    %3377 = vmatpush1.msra.mxu0 %v3376
    %3378 = vmatprep.subr.mxu0 0.0
    %v3379 = vand.u32 %v105, 4294901760
    %3380 = vmatpush1.msra.mxu0 %v3379
    %3381 = vmatprep.subr.mxu0 0.0
    %v3382 = vand.u32 %v104, 4294901760
    %3383 = vmatpush1.msra.mxu0 %v3382
    %3384 = vmatprep.subr.mxu0 0.0
    %v3385 = vand.u32 %v103, 4294901760
    %3386 = vmatpush1.msra.mxu0 %v3385
    %3387 = vmatprep.subr.mxu0 0.0
    %v3388 = vand.u32 %v102, 4294901760
    %3389 = vmatpush1.msra.mxu0 %v3388
    %3390 = vmatprep.subr.mxu0 0.0
    %v3391 = vand.u32 %v101, 4294901760
    %3392 = vmatpush1.msra.mxu0 %v3391
    %3393 = vmatprep.subr.mxu0 0.0
    %v3394 = vand.u32 %v100, 4294901760
    %3395 = vmatpush1.msra.mxu0 %v3394
    %3396 = vmatprep.subr.mxu0 0.0
    %v3397 = vand.u32 %v99, 4294901760
    %3398 = vmatpush1.msra.mxu0 %v3397
    %3399 = vmatprep.subr.mxu0 0.0
    %v3400 = vand.u32 %v98, 4294901760
    %3401 = vmatpush1.msra.mxu0 %v3400
    %3402 = vmatprep.subr.mxu0 0.0
    %v3403 = vand.u32 %v97, 4294901760
    %3404 = vmatpush1.msra.mxu0 %v3403
    %3405 = vmatprep.subr.mxu0 0.0
    %v3406 = vand.u32 %v96, 4294901760
    %3407 = vmatpush1.msra.mxu0 %v3406
    %3408 = vmatprep.subr.mxu0 0.0
    %v3409 = vand.u32 %v95, 4294901760
    %3410 = vmatpush1.msra.mxu0 %v3409
    %3411 = vmatprep.subr.mxu0 0.0
    %3412 = vmatpush2.msra.mxu0 0.0
    %3413 = vmatprep.subr.mxu0 0.0
    %3414 = vmatpush2.msra.mxu0 0.0
    %3415 = vmatprep.subr.mxu0 0.0
    %3416 = vmatpush2.msra.mxu0 0.0
    %3417 = vmatprep.subr.mxu0 0.0
    %3418 = vmatpush2.msra.mxu0 0.0
    %3419 = vmatprep.subr.mxu0 0.0
    %3420 = vmatpush2.msra.mxu0 0.0
    %3421 = vmatprep.subr.mxu0 0.0
    %3422 = vmatpush2.msra.mxu0 0.0
    %3423 = vmatprep.subr.mxu0 0.0
    %3424 = vmatpush2.msra.mxu0 0.0
    %3425 = vmatprep.subr.mxu0 0.0
    %3426 = vmatpush2.msra.mxu0 0.0
    %3427 = vmatprep.subr.mxu0 0.0
    %3428 = vmatpush2.msra.mxu0 0.0
    %3429 = vmatprep.subr.mxu0 0.0
    %3430 = vmatpush2.msra.mxu0 0.0
    %3431 = vmatprep.subr.mxu0 0.0
    %3432 = vmatpush2.msra.mxu0 0.0
    %3433 = vmatprep.subr.mxu0 0.0
    %3434 = vmatpush2.msra.mxu0 0.0
    %3435 = vmatprep.subr.mxu0 0.0
    %3436 = vmatpush2.msra.mxu0 0.0
    %3437 = vmatprep.subr.mxu0 0.0
    %3438 = vmatpush2.msra.mxu0 0.0
    %3439 = vmatprep.subr.mxu0 0.0
    %3440 = vmatpush2.msra.mxu0 0.0
    %3441 = vmatprep.subr.mxu0 0.0
    %3442 = vmatpush2.msra.mxu0 0.0
    %3443 = vmatprep.mubr.f32.mxu0 0.0
    %v3444 = vand.u32 %v2985, 4294901760
    %v3445 = vsub.f32 %v2985, %v3444
    %v3446 = vand.u32 %v3445, 4294901760
    %3447 = vmatmul.mubr.f32.gmra.mxu0 %v3446
    %v3448 = vpop.f32.mrf.mxu0
    %v3449 = vadd.f32 %v3353, %v3448
    %v3450 = vpop.f32.mrf.mxu0
    %3451 = vmatprep.mubr.f32.mxu0 0.0
    %v3452 = vand.u32 %v2991, 4294901760
    %v3453 = vsub.f32 %v2991, %v3452
    %v3454 = vand.u32 %v3453, 4294901760
    %3455 = vmatmul.mubr.f32.gmra.mxu0 %v3454
    %v3456 = vpop.f32.mrf.mxu0
    %v3457 = vadd.f32 %v3360, %v3456
    %v3458 = vpop.f32.mrf.mxu0
    %3459 = vdwg.mxu0
    %3460 = vmatprep.subr.mxu0 0.0
    %v3461 = vand.u32 %v110, 4294901760
    %v3462 = vsub.f32 %v110, %v3461
    %v3463 = vand.u32 %v3462, 4294901760
    %3464 = vmatpush1.msra.mxu0 %v3463
    %3465 = vmatprep.subr.mxu0 0.0
    %v3466 = vand.u32 %v109, 4294901760
    %v3467 = vsub.f32 %v109, %v3466
    %v3468 = vand.u32 %v3467, 4294901760
    %3469 = vmatpush1.msra.mxu0 %v3468
    %3470 = vmatprep.subr.mxu0 0.0
    %v3471 = vand.u32 %v108, 4294901760
    %v3472 = vsub.f32 %v108, %v3471
    %v3473 = vand.u32 %v3472, 4294901760
    %3474 = vmatpush1.msra.mxu0 %v3473
    %3475 = vmatprep.subr.mxu0 0.0
    %v3476 = vand.u32 %v107, 4294901760
    %v3477 = vsub.f32 %v107, %v3476
    %v3478 = vand.u32 %v3477, 4294901760
    %3479 = vmatpush1.msra.mxu0 %v3478
    %3480 = vmatprep.subr.mxu0 0.0
    %v3481 = vand.u32 %v106, 4294901760
    %v3482 = vsub.f32 %v106, %v3481
    %v3483 = vand.u32 %v3482, 4294901760
    %3484 = vmatpush1.msra.mxu0 %v3483
    %3485 = vmatprep.subr.mxu0 0.0
    %v3486 = vand.u32 %v105, 4294901760
    %v3487 = vsub.f32 %v105, %v3486
    %v3488 = vand.u32 %v3487, 4294901760
    %3489 = vmatpush1.msra.mxu0 %v3488
    %3490 = vmatprep.subr.mxu0 0.0
    %v3491 = vand.u32 %v104, 4294901760
    %v3492 = vsub.f32 %v104, %v3491
    %v3493 = vand.u32 %v3492, 4294901760
    %3494 = vmatpush1.msra.mxu0 %v3493
    %3495 = vmatprep.subr.mxu0 0.0
    %v3496 = vand.u32 %v103, 4294901760
    %v3497 = vsub.f32 %v103, %v3496
    %v3498 = vand.u32 %v3497, 4294901760
    %3499 = vmatpush1.msra.mxu0 %v3498
    %3500 = vmatprep.subr.mxu0 0.0
    %v3501 = vand.u32 %v102, 4294901760
    %v3502 = vsub.f32 %v102, %v3501
    %v3503 = vand.u32 %v3502, 4294901760
    %3504 = vmatpush1.msra.mxu0 %v3503
    %3505 = vmatprep.subr.mxu0 0.0
    %v3506 = vand.u32 %v101, 4294901760
    %v3507 = vsub.f32 %v101, %v3506
    %v3508 = vand.u32 %v3507, 4294901760
    %3509 = vmatpush1.msra.mxu0 %v3508
    %3510 = vmatprep.subr.mxu0 0.0
    %v3511 = vand.u32 %v100, 4294901760
    %v3512 = vsub.f32 %v100, %v3511
    %v3513 = vand.u32 %v3512, 4294901760
    %3514 = vmatpush1.msra.mxu0 %v3513
    %3515 = vmatprep.subr.mxu0 0.0
    %v3516 = vand.u32 %v99, 4294901760
    %v3517 = vsub.f32 %v99, %v3516
    %v3518 = vand.u32 %v3517, 4294901760
    %3519 = vmatpush1.msra.mxu0 %v3518
    %3520 = vmatprep.subr.mxu0 0.0
    %v3521 = vand.u32 %v98, 4294901760
    %v3522 = vsub.f32 %v98, %v3521
    %v3523 = vand.u32 %v3522, 4294901760
    %3524 = vmatpush1.msra.mxu0 %v3523
    %3525 = vmatprep.subr.mxu0 0.0
    %v3526 = vand.u32 %v97, 4294901760
    %v3527 = vsub.f32 %v97, %v3526
    %v3528 = vand.u32 %v3527, 4294901760
    %3529 = vmatpush1.msra.mxu0 %v3528
    %3530 = vmatprep.subr.mxu0 0.0
    %v3531 = vand.u32 %v96, 4294901760
    %v3532 = vsub.f32 %v96, %v3531
    %v3533 = vand.u32 %v3532, 4294901760
    %3534 = vmatpush1.msra.mxu0 %v3533
    %3535 = vmatprep.subr.mxu0 0.0
    %v3536 = vand.u32 %v95, 4294901760
    %v3537 = vsub.f32 %v95, %v3536
    %v3538 = vand.u32 %v3537, 4294901760
    %3539 = vmatpush1.msra.mxu0 %v3538
    %3540 = vmatprep.subr.mxu0 0.0
    %3541 = vmatpush2.msra.mxu0 0.0
    %3542 = vmatprep.subr.mxu0 0.0
    %3543 = vmatpush2.msra.mxu0 0.0
    %3544 = vmatprep.subr.mxu0 0.0
    %3545 = vmatpush2.msra.mxu0 0.0
    %3546 = vmatprep.subr.mxu0 0.0
    %3547 = vmatpush2.msra.mxu0 0.0
    %3548 = vmatprep.subr.mxu0 0.0
    %3549 = vmatpush2.msra.mxu0 0.0
    %3550 = vmatprep.subr.mxu0 0.0
    %3551 = vmatpush2.msra.mxu0 0.0
    %3552 = vmatprep.subr.mxu0 0.0
    %3553 = vmatpush2.msra.mxu0 0.0
    %3554 = vmatprep.subr.mxu0 0.0
    %3555 = vmatpush2.msra.mxu0 0.0
    %3556 = vmatprep.subr.mxu0 0.0
    %3557 = vmatpush2.msra.mxu0 0.0
    %3558 = vmatprep.subr.mxu0 0.0
    %3559 = vmatpush2.msra.mxu0 0.0
    %3560 = vmatprep.subr.mxu0 0.0
    %3561 = vmatpush2.msra.mxu0 0.0
    %3562 = vmatprep.subr.mxu0 0.0
    %3563 = vmatpush2.msra.mxu0 0.0
    %3564 = vmatprep.subr.mxu0 0.0
    %3565 = vmatpush2.msra.mxu0 0.0
    %3566 = vmatprep.subr.mxu0 0.0
    %3567 = vmatpush2.msra.mxu0 0.0
    %3568 = vmatprep.subr.mxu0 0.0
    %3569 = vmatpush2.msra.mxu0 0.0
    %3570 = vmatprep.subr.mxu0 0.0
    %3571 = vmatpush2.msra.mxu0 0.0
    %3572 = vmatprep.mubr.f32.mxu0 0.0
    %v3573 = vand.u32 %v2985, 4294901760
    %3574 = vmatmul.mubr.f32.gmra.mxu0 %v3573
    %v3575 = vpop.f32.mrf.mxu0
    %v3576 = vadd.f32 %v3449, %v3575
    %v3577 = vpop.f32.mrf.mxu0
    %3578 = vmatprep.mubr.f32.mxu0 0.0
    %v3579 = vand.u32 %v2991, 4294901760
    %3580 = vmatmul.mubr.f32.gmra.mxu0 %v3579
    %v3581 = vpop.f32.mrf.mxu0
    %v3582 = vadd.f32 %v3457, %v3581
    %v3583 = vpop.f32.mrf.mxu0
    %3584 = vdwg.mxu0
    %3585 = vmatprep.subr.mxu0 0.0
    %v3586 = vand.u32 %v110, 4294901760
    %3587 = vmatpush1.msra.mxu0 %v3586
    %3588 = vmatprep.subr.mxu0 0.0
    %v3589 = vand.u32 %v109, 4294901760
    %3590 = vmatpush1.msra.mxu0 %v3589
    %3591 = vmatprep.subr.mxu0 0.0
    %v3592 = vand.u32 %v108, 4294901760
    %3593 = vmatpush1.msra.mxu0 %v3592
    %3594 = vmatprep.subr.mxu0 0.0
    %v3595 = vand.u32 %v107, 4294901760
    %3596 = vmatpush1.msra.mxu0 %v3595
    %3597 = vmatprep.subr.mxu0 0.0
    %v3598 = vand.u32 %v106, 4294901760
    %3599 = vmatpush1.msra.mxu0 %v3598
    %3600 = vmatprep.subr.mxu0 0.0
    %v3601 = vand.u32 %v105, 4294901760
    %3602 = vmatpush1.msra.mxu0 %v3601
    %3603 = vmatprep.subr.mxu0 0.0
    %v3604 = vand.u32 %v104, 4294901760
    %3605 = vmatpush1.msra.mxu0 %v3604
    %3606 = vmatprep.subr.mxu0 0.0
    %v3607 = vand.u32 %v103, 4294901760
    %3608 = vmatpush1.msra.mxu0 %v3607
    %3609 = vmatprep.subr.mxu0 0.0
    %v3610 = vand.u32 %v102, 4294901760
    %3611 = vmatpush1.msra.mxu0 %v3610
    %3612 = vmatprep.subr.mxu0 0.0
    %v3613 = vand.u32 %v101, 4294901760
    %3614 = vmatpush1.msra.mxu0 %v3613
    %3615 = vmatprep.subr.mxu0 0.0
    %v3616 = vand.u32 %v100, 4294901760
    %3617 = vmatpush1.msra.mxu0 %v3616
    %3618 = vmatprep.subr.mxu0 0.0
    %v3619 = vand.u32 %v99, 4294901760
    %3620 = vmatpush1.msra.mxu0 %v3619
    %3621 = vmatprep.subr.mxu0 0.0
    %v3622 = vand.u32 %v98, 4294901760
    %3623 = vmatpush1.msra.mxu0 %v3622
    %3624 = vmatprep.subr.mxu0 0.0
    %v3625 = vand.u32 %v97, 4294901760
    %3626 = vmatpush1.msra.mxu0 %v3625
    %3627 = vmatprep.subr.mxu0 0.0
    %v3628 = vand.u32 %v96, 4294901760
    %3629 = vmatpush1.msra.mxu0 %v3628
    %3630 = vmatprep.subr.mxu0 0.0
    %v3631 = vand.u32 %v95, 4294901760
    %3632 = vmatpush1.msra.mxu0 %v3631
    %3633 = vmatprep.subr.mxu0 0.0
    %3634 = vmatpush2.msra.mxu0 0.0
    %3635 = vmatprep.subr.mxu0 0.0
    %3636 = vmatpush2.msra.mxu0 0.0
    %3637 = vmatprep.subr.mxu0 0.0
    %3638 = vmatpush2.msra.mxu0 0.0
    %3639 = vmatprep.subr.mxu0 0.0
    %3640 = vmatpush2.msra.mxu0 0.0
    %3641 = vmatprep.subr.mxu0 0.0
    %3642 = vmatpush2.msra.mxu0 0.0
    %3643 = vmatprep.subr.mxu0 0.0
    %3644 = vmatpush2.msra.mxu0 0.0
    %3645 = vmatprep.subr.mxu0 0.0
    %3646 = vmatpush2.msra.mxu0 0.0
    %3647 = vmatprep.subr.mxu0 0.0
    %3648 = vmatpush2.msra.mxu0 0.0
    %3649 = vmatprep.subr.mxu0 0.0
    %3650 = vmatpush2.msra.mxu0 0.0
    %3651 = vmatprep.subr.mxu0 0.0
    %3652 = vmatpush2.msra.mxu0 0.0
    %3653 = vmatprep.subr.mxu0 0.0
    %3654 = vmatpush2.msra.mxu0 0.0
    %3655 = vmatprep.subr.mxu0 0.0
    %3656 = vmatpush2.msra.mxu0 0.0
    %3657 = vmatprep.subr.mxu0 0.0
    %3658 = vmatpush2.msra.mxu0 0.0
    %3659 = vmatprep.subr.mxu0 0.0
    %3660 = vmatpush2.msra.mxu0 0.0
    %3661 = vmatprep.subr.mxu0 0.0
    %3662 = vmatpush2.msra.mxu0 0.0
    %3663 = vmatprep.subr.mxu0 0.0
    %3664 = vmatpush2.msra.mxu0 0.0
    %3665 = vmatprep.mubr.f32.mxu0 0.0
    %v3666 = vand.u32 %v2985, 4294901760
    %3667 = vmatmul.mubr.f32.gmra.mxu0 %v3666
    %v3668 = vpop.f32.mrf.mxu0
    %v3669 = vadd.f32 %v3576, %v3668
    %v3670 = vpop.f32.mrf.mxu0
    %3671 = vmatprep.mubr.f32.mxu0 0.0
    %v3672 = vand.u32 %v2991, 4294901760
    %3673 = vmatmul.mubr.f32.gmra.mxu0 %v3672
    %v3674 = vpop.f32.mrf.mxu0
    %v3675 = vadd.f32 %v3582, %v3674
    %v3676 = vpop.f32.mrf.mxu0
    %3677 = vdwg.mxu0
    %v3678 = vmul.f32 %v91, %v91
    %v3679 = vmul.f32 %v92, %v92
    %3680 = vmatprep.subr.mxu0 0.0
    %3681 = vmatpush1.msra.mxu0 0.0
    %3682 = vmatprep.subr.mxu0 0.0
    %3683 = vmatpush1.msra.mxu0 0.0
    %3684 = vmatprep.subr.mxu0 0.0
    %3685 = vmatpush1.msra.mxu0 0.0
    %3686 = vmatprep.subr.mxu0 0.0
    %3687 = vmatpush1.msra.mxu0 0.0
    %3688 = vmatprep.subr.mxu0 0.0
    %3689 = vmatpush1.msra.mxu0 0.0
    %3690 = vmatprep.subr.mxu0 0.0
    %3691 = vmatpush1.msra.mxu0 0.0
    %3692 = vmatprep.subr.mxu0 0.0
    %3693 = vmatpush1.msra.mxu0 0.0
    %3694 = vmatprep.subr.mxu0 0.0
    %3695 = vmatpush1.msra.mxu0 0.0
    %3696 = vmatprep.subr.mxu0 0.0
    %3697 = vmatpush1.msra.mxu0 0.0
    %3698 = vmatprep.subr.mxu0 0.0
    %3699 = vmatpush1.msra.mxu0 0.0
    %3700 = vmatprep.subr.mxu0 0.0
    %3701 = vmatpush1.msra.mxu0 0.0
    %3702 = vmatprep.subr.mxu0 0.0
    %3703 = vmatpush1.msra.mxu0 0.0
    %3704 = vmatprep.subr.mxu0 0.0
    %3705 = vmatpush1.msra.mxu0 0.0
    %3706 = vmatprep.subr.mxu0 0.0
    %3707 = vmatpush1.msra.mxu0 0.0
    %3708 = vmatprep.subr.mxu0 0.0
    %v3709 = vand.u32 %v3679, 4294901760
    %3710 = vmatpush1.msra.mxu0 %v3709
    %3711 = vmatprep.subr.mxu0 0.0
    %v3712 = vand.u32 %v3678, 4294901760
    %3713 = vmatpush1.msra.mxu0 %v3712
    %3714 = vmatprep.subr.mxu0 0.0
    %3715 = vmatpush2.msra.mxu0 0.0
    %3716 = vmatprep.subr.mxu0 0.0
    %3717 = vmatpush2.msra.mxu0 0.0
    %3718 = vmatprep.subr.mxu0 0.0
    %3719 = vmatpush2.msra.mxu0 0.0
    %3720 = vmatprep.subr.mxu0 0.0
    %3721 = vmatpush2.msra.mxu0 0.0
    %3722 = vmatprep.subr.mxu0 0.0
    %3723 = vmatpush2.msra.mxu0 0.0
    %3724 = vmatprep.subr.mxu0 0.0
    %3725 = vmatpush2.msra.mxu0 0.0
    %3726 = vmatprep.subr.mxu0 0.0
    %3727 = vmatpush2.msra.mxu0 0.0
    %3728 = vmatprep.subr.mxu0 0.0
    %3729 = vmatpush2.msra.mxu0 0.0
    %3730 = vmatprep.subr.mxu0 0.0
    %3731 = vmatpush2.msra.mxu0 0.0
    %3732 = vmatprep.subr.mxu0 0.0
    %3733 = vmatpush2.msra.mxu0 0.0
    %3734 = vmatprep.subr.mxu0 0.0
    %3735 = vmatpush2.msra.mxu0 0.0
    %3736 = vmatprep.subr.mxu0 0.0
    %3737 = vmatpush2.msra.mxu0 0.0
    %3738 = vmatprep.subr.mxu0 0.0
    %3739 = vmatpush2.msra.mxu0 0.0
    %3740 = vmatprep.subr.mxu0 0.0
    %3741 = vmatpush2.msra.mxu0 0.0
    %3742 = vmatprep.subr.mxu0 0.0
    %3743 = vmatpush2.msra.mxu0 0.0
    %3744 = vmatprep.subr.mxu0 0.0
    %3745 = vmatpush2.msra.mxu0 0.0
    %3746 = vmatprep.mubr.f32.mxu0 0.0
    %v3747 = vand.u32 %v113, 4294901760
    %v3748 = vsub.f32 %v113, %v3747
    %v3749 = vand.u32 %v3748, 4294901760
    %v3750 = vsub.f32 %v3748, %v3749
    %v3751 = vand.u32 %v3750, 4294901760
    %3752 = vmatmul.mubr.f32.gmra.mxu0 %v3751
    %v3753 = vpop.f32.mrf.mxu0
    %v3754 = vadd.f32 0.0, %v3753
    %v3755 = vpop.f32.mrf.mxu0
    %3756 = vmatprep.mubr.f32.mxu0 0.0
    %v3757 = vand.u32 %v116, 4294901760
    %v3758 = vsub.f32 %v116, %v3757
    %v3759 = vand.u32 %v3758, 4294901760
    %v3760 = vsub.f32 %v3758, %v3759
    %v3761 = vand.u32 %v3760, 4294901760
    %3762 = vmatmul.mubr.f32.gmra.mxu0 %v3761
    %v3763 = vpop.f32.mrf.mxu0
    %v3764 = vadd.f32 0.0, %v3763
    %v3765 = vpop.f32.mrf.mxu0
    %3766 = vdwg.mxu0
    %3767 = vmatprep.subr.mxu0 0.0
    %3768 = vmatpush1.msra.mxu0 0.0
    %3769 = vmatprep.subr.mxu0 0.0
    %3770 = vmatpush1.msra.mxu0 0.0
    %3771 = vmatprep.subr.mxu0 0.0
    %3772 = vmatpush1.msra.mxu0 0.0
    %3773 = vmatprep.subr.mxu0 0.0
    %3774 = vmatpush1.msra.mxu0 0.0
    %3775 = vmatprep.subr.mxu0 0.0
    %3776 = vmatpush1.msra.mxu0 0.0
    %3777 = vmatprep.subr.mxu0 0.0
    %3778 = vmatpush1.msra.mxu0 0.0
    %3779 = vmatprep.subr.mxu0 0.0
    %3780 = vmatpush1.msra.mxu0 0.0
    %3781 = vmatprep.subr.mxu0 0.0
    %3782 = vmatpush1.msra.mxu0 0.0
    %3783 = vmatprep.subr.mxu0 0.0
    %3784 = vmatpush1.msra.mxu0 0.0
    %3785 = vmatprep.subr.mxu0 0.0
    %3786 = vmatpush1.msra.mxu0 0.0
    %3787 = vmatprep.subr.mxu0 0.0
    %3788 = vmatpush1.msra.mxu0 0.0
    %3789 = vmatprep.subr.mxu0 0.0
    %3790 = vmatpush1.msra.mxu0 0.0
    %3791 = vmatprep.subr.mxu0 0.0
    %3792 = vmatpush1.msra.mxu0 0.0
    %3793 = vmatprep.subr.mxu0 0.0
    %3794 = vmatpush1.msra.mxu0 0.0
    %3795 = vmatprep.subr.mxu0 0.0
    %v3796 = vand.u32 %v3679, 4294901760
    %v3797 = vsub.f32 %v3679, %v3796
    %v3798 = vand.u32 %v3797, 4294901760
    %v3799 = vsub.f32 %v3797, %v3798
    %v3800 = vand.u32 %v3799, 4294901760
    %3801 = vmatpush1.msra.mxu0 %v3800
    %3802 = vmatprep.subr.mxu0 0.0
    %v3803 = vand.u32 %v3678, 4294901760
    %v3804 = vsub.f32 %v3678, %v3803
    %v3805 = vand.u32 %v3804, 4294901760
    %v3806 = vsub.f32 %v3804, %v3805
    %v3807 = vand.u32 %v3806, 4294901760
    %3808 = vmatpush1.msra.mxu0 %v3807
    %3809 = vmatprep.subr.mxu0 0.0
    %3810 = vmatpush2.msra.mxu0 0.0
    %3811 = vmatprep.subr.mxu0 0.0
    %3812 = vmatpush2.msra.mxu0 0.0
    %3813 = vmatprep.subr.mxu0 0.0
    %3814 = vmatpush2.msra.mxu0 0.0
    %3815 = vmatprep.subr.mxu0 0.0
    %3816 = vmatpush2.msra.mxu0 0.0
    %3817 = vmatprep.subr.mxu0 0.0
    %3818 = vmatpush2.msra.mxu0 0.0
    %3819 = vmatprep.subr.mxu0 0.0
    %3820 = vmatpush2.msra.mxu0 0.0
    %3821 = vmatprep.subr.mxu0 0.0
    %3822 = vmatpush2.msra.mxu0 0.0
    %3823 = vmatprep.subr.mxu0 0.0
    %3824 = vmatpush2.msra.mxu0 0.0
    %3825 = vmatprep.subr.mxu0 0.0
    %3826 = vmatpush2.msra.mxu0 0.0
    %3827 = vmatprep.subr.mxu0 0.0
    %3828 = vmatpush2.msra.mxu0 0.0
    %3829 = vmatprep.subr.mxu0 0.0
    %3830 = vmatpush2.msra.mxu0 0.0
    %3831 = vmatprep.subr.mxu0 0.0
    %3832 = vmatpush2.msra.mxu0 0.0
    %3833 = vmatprep.subr.mxu0 0.0
    %3834 = vmatpush2.msra.mxu0 0.0
    %3835 = vmatprep.subr.mxu0 0.0
    %3836 = vmatpush2.msra.mxu0 0.0
    %3837 = vmatprep.subr.mxu0 0.0
    %3838 = vmatpush2.msra.mxu0 0.0
    %3839 = vmatprep.subr.mxu0 0.0
    %3840 = vmatpush2.msra.mxu0 0.0
    %3841 = vmatprep.mubr.f32.mxu0 0.0
    %v3842 = vand.u32 %v113, 4294901760
    %3843 = vmatmul.mubr.f32.gmra.mxu0 %v3842
    %v3844 = vpop.f32.mrf.mxu0
    %v3845 = vadd.f32 %v3754, %v3844
    %v3846 = vpop.f32.mrf.mxu0
    %3847 = vmatprep.mubr.f32.mxu0 0.0
    %v3848 = vand.u32 %v116, 4294901760
    %3849 = vmatmul.mubr.f32.gmra.mxu0 %v3848
    %v3850 = vpop.f32.mrf.mxu0
    %v3851 = vadd.f32 %v3764, %v3850
    %v3852 = vpop.f32.mrf.mxu0
    %3853 = vdwg.mxu0
    %3854 = vmatprep.subr.mxu0 0.0
    %3855 = vmatpush1.msra.mxu0 0.0
    %3856 = vmatprep.subr.mxu0 0.0
    %3857 = vmatpush1.msra.mxu0 0.0
    %3858 = vmatprep.subr.mxu0 0.0
    %3859 = vmatpush1.msra.mxu0 0.0
    %3860 = vmatprep.subr.mxu0 0.0
    %3861 = vmatpush1.msra.mxu0 0.0
    %3862 = vmatprep.subr.mxu0 0.0
    %3863 = vmatpush1.msra.mxu0 0.0
    %3864 = vmatprep.subr.mxu0 0.0
    %3865 = vmatpush1.msra.mxu0 0.0
    %3866 = vmatprep.subr.mxu0 0.0
    %3867 = vmatpush1.msra.mxu0 0.0
    %3868 = vmatprep.subr.mxu0 0.0
    %3869 = vmatpush1.msra.mxu0 0.0
    %3870 = vmatprep.subr.mxu0 0.0
    %3871 = vmatpush1.msra.mxu0 0.0
    %3872 = vmatprep.subr.mxu0 0.0
    %3873 = vmatpush1.msra.mxu0 0.0
    %3874 = vmatprep.subr.mxu0 0.0
    %3875 = vmatpush1.msra.mxu0 0.0
    %3876 = vmatprep.subr.mxu0 0.0
    %3877 = vmatpush1.msra.mxu0 0.0
    %3878 = vmatprep.subr.mxu0 0.0
    %3879 = vmatpush1.msra.mxu0 0.0
    %3880 = vmatprep.subr.mxu0 0.0
    %3881 = vmatpush1.msra.mxu0 0.0
    %3882 = vmatprep.subr.mxu0 0.0
    %v3883 = vand.u32 %v3679, 4294901760
    %v3884 = vsub.f32 %v3679, %v3883
    %3885 = vmatpush1.msra.mxu0 %v3884
    %3886 = vmatprep.subr.mxu0 0.0
    %v3887 = vand.u32 %v3678, 4294901760
    %v3888 = vsub.f32 %v3678, %v3887
    %3889 = vmatpush1.msra.mxu0 %v3888
    %3890 = vmatprep.subr.mxu0 0.0
    %3891 = vmatpush2.msra.mxu0 0.0
    %3892 = vmatprep.subr.mxu0 0.0
    %3893 = vmatpush2.msra.mxu0 0.0
    %3894 = vmatprep.subr.mxu0 0.0
    %3895 = vmatpush2.msra.mxu0 0.0
    %3896 = vmatprep.subr.mxu0 0.0
    %3897 = vmatpush2.msra.mxu0 0.0
    %3898 = vmatprep.subr.mxu0 0.0
    %3899 = vmatpush2.msra.mxu0 0.0
    %3900 = vmatprep.subr.mxu0 0.0
    %3901 = vmatpush2.msra.mxu0 0.0
    %3902 = vmatprep.subr.mxu0 0.0
    %3903 = vmatpush2.msra.mxu0 0.0
    %3904 = vmatprep.subr.mxu0 0.0
    %3905 = vmatpush2.msra.mxu0 0.0
    %3906 = vmatprep.subr.mxu0 0.0
    %3907 = vmatpush2.msra.mxu0 0.0
    %3908 = vmatprep.subr.mxu0 0.0
    %3909 = vmatpush2.msra.mxu0 0.0
    %3910 = vmatprep.subr.mxu0 0.0
    %3911 = vmatpush2.msra.mxu0 0.0
    %3912 = vmatprep.subr.mxu0 0.0
    %3913 = vmatpush2.msra.mxu0 0.0
    %3914 = vmatprep.subr.mxu0 0.0
    %3915 = vmatpush2.msra.mxu0 0.0
    %3916 = vmatprep.subr.mxu0 0.0
    %3917 = vmatpush2.msra.mxu0 0.0
    %3918 = vmatprep.subr.mxu0 0.0
    %3919 = vmatpush2.msra.mxu0 0.0
    %3920 = vmatprep.subr.mxu0 0.0
    %3921 = vmatpush2.msra.mxu0 0.0
    %3922 = vmatprep.mubr.f32.mxu0 0.0
    %v3923 = vand.u32 %v113, 4294901760
    %v3924 = vsub.f32 %v113, %v3923
    %3925 = vmatmul.mubr.f32.gmra.mxu0 %v3924
    %v3926 = vpop.f32.mrf.mxu0
    %v3927 = vadd.f32 %v3845, %v3926
    %v3928 = vpop.f32.mrf.mxu0
    %3929 = vmatprep.mubr.f32.mxu0 0.0
    %v3930 = vand.u32 %v116, 4294901760
    %v3931 = vsub.f32 %v116, %v3930
    %3932 = vmatmul.mubr.f32.gmra.mxu0 %v3931
    %v3933 = vpop.f32.mrf.mxu0
    %v3934 = vadd.f32 %v3851, %v3933
    %v3935 = vpop.f32.mrf.mxu0
    %3936 = vdwg.mxu0
    %3937 = vmatprep.subr.mxu0 0.0
    %3938 = vmatpush1.msra.mxu0 0.0
    %3939 = vmatprep.subr.mxu0 0.0
    %3940 = vmatpush1.msra.mxu0 0.0
    %3941 = vmatprep.subr.mxu0 0.0
    %3942 = vmatpush1.msra.mxu0 0.0
    %3943 = vmatprep.subr.mxu0 0.0
    %3944 = vmatpush1.msra.mxu0 0.0
    %3945 = vmatprep.subr.mxu0 0.0
    %3946 = vmatpush1.msra.mxu0 0.0
    %3947 = vmatprep.subr.mxu0 0.0
    %3948 = vmatpush1.msra.mxu0 0.0
    %3949 = vmatprep.subr.mxu0 0.0
    %3950 = vmatpush1.msra.mxu0 0.0
    %3951 = vmatprep.subr.mxu0 0.0
    %3952 = vmatpush1.msra.mxu0 0.0
    %3953 = vmatprep.subr.mxu0 0.0
    %3954 = vmatpush1.msra.mxu0 0.0
    %3955 = vmatprep.subr.mxu0 0.0
    %3956 = vmatpush1.msra.mxu0 0.0
    %3957 = vmatprep.subr.mxu0 0.0
    %3958 = vmatpush1.msra.mxu0 0.0
    %3959 = vmatprep.subr.mxu0 0.0
    %3960 = vmatpush1.msra.mxu0 0.0
    %3961 = vmatprep.subr.mxu0 0.0
    %3962 = vmatpush1.msra.mxu0 0.0
    %3963 = vmatprep.subr.mxu0 0.0
    %3964 = vmatpush1.msra.mxu0 0.0
    %3965 = vmatprep.subr.mxu0 0.0
    %v3966 = vand.u32 %v3679, 4294901760
    %3967 = vmatpush1.msra.mxu0 %v3966
    %3968 = vmatprep.subr.mxu0 0.0
    %v3969 = vand.u32 %v3678, 4294901760
    %3970 = vmatpush1.msra.mxu0 %v3969
    %3971 = vmatprep.subr.mxu0 0.0
    %3972 = vmatpush2.msra.mxu0 0.0
    %3973 = vmatprep.subr.mxu0 0.0
    %3974 = vmatpush2.msra.mxu0 0.0
    %3975 = vmatprep.subr.mxu0 0.0
    %3976 = vmatpush2.msra.mxu0 0.0
    %3977 = vmatprep.subr.mxu0 0.0
    %3978 = vmatpush2.msra.mxu0 0.0
    %3979 = vmatprep.subr.mxu0 0.0
    %3980 = vmatpush2.msra.mxu0 0.0
    %3981 = vmatprep.subr.mxu0 0.0
    %3982 = vmatpush2.msra.mxu0 0.0
    %3983 = vmatprep.subr.mxu0 0.0
    %3984 = vmatpush2.msra.mxu0 0.0
    %3985 = vmatprep.subr.mxu0 0.0
    %3986 = vmatpush2.msra.mxu0 0.0
    %3987 = vmatprep.subr.mxu0 0.0
    %3988 = vmatpush2.msra.mxu0 0.0
    %3989 = vmatprep.subr.mxu0 0.0
    %3990 = vmatpush2.msra.mxu0 0.0
    %3991 = vmatprep.subr.mxu0 0.0
    %3992 = vmatpush2.msra.mxu0 0.0
    %3993 = vmatprep.subr.mxu0 0.0
    %3994 = vmatpush2.msra.mxu0 0.0
    %3995 = vmatprep.subr.mxu0 0.0
    %3996 = vmatpush2.msra.mxu0 0.0
    %3997 = vmatprep.subr.mxu0 0.0
    %3998 = vmatpush2.msra.mxu0 0.0
    %3999 = vmatprep.subr.mxu0 0.0
    %4000 = vmatpush2.msra.mxu0 0.0
    %4001 = vmatprep.subr.mxu0 0.0
    %4002 = vmatpush2.msra.mxu0 0.0
    %4003 = vmatprep.mubr.f32.mxu0 0.0
    %v4004 = vand.u32 %v113, 4294901760
    %v4005 = vsub.f32 %v113, %v4004
    %v4006 = vand.u32 %v4005, 4294901760
    %4007 = vmatmul.mubr.f32.gmra.mxu0 %v4006
    %v4008 = vpop.f32.mrf.mxu0
    %v4009 = vadd.f32 %v3927, %v4008
    %v4010 = vpop.f32.mrf.mxu0
    %4011 = vmatprep.mubr.f32.mxu0 0.0
    %v4012 = vand.u32 %v116, 4294901760
    %v4013 = vsub.f32 %v116, %v4012
    %v4014 = vand.u32 %v4013, 4294901760
    %4015 = vmatmul.mubr.f32.gmra.mxu0 %v4014
    %v4016 = vpop.f32.mrf.mxu0
    %v4017 = vadd.f32 %v3934, %v4016
    %v4018 = vpop.f32.mrf.mxu0
    %4019 = vdwg.mxu0
    %4020 = vmatprep.subr.mxu0 0.0
    %4021 = vmatpush1.msra.mxu0 0.0
    %4022 = vmatprep.subr.mxu0 0.0
    %4023 = vmatpush1.msra.mxu0 0.0
    %4024 = vmatprep.subr.mxu0 0.0
    %4025 = vmatpush1.msra.mxu0 0.0
    %4026 = vmatprep.subr.mxu0 0.0
    %4027 = vmatpush1.msra.mxu0 0.0
    %4028 = vmatprep.subr.mxu0 0.0
    %4029 = vmatpush1.msra.mxu0 0.0
    %4030 = vmatprep.subr.mxu0 0.0
    %4031 = vmatpush1.msra.mxu0 0.0
    %4032 = vmatprep.subr.mxu0 0.0
    %4033 = vmatpush1.msra.mxu0 0.0
    %4034 = vmatprep.subr.mxu0 0.0
    %4035 = vmatpush1.msra.mxu0 0.0
    %4036 = vmatprep.subr.mxu0 0.0
    %4037 = vmatpush1.msra.mxu0 0.0
    %4038 = vmatprep.subr.mxu0 0.0
    %4039 = vmatpush1.msra.mxu0 0.0
    %4040 = vmatprep.subr.mxu0 0.0
    %4041 = vmatpush1.msra.mxu0 0.0
    %4042 = vmatprep.subr.mxu0 0.0
    %4043 = vmatpush1.msra.mxu0 0.0
    %4044 = vmatprep.subr.mxu0 0.0
    %4045 = vmatpush1.msra.mxu0 0.0
    %4046 = vmatprep.subr.mxu0 0.0
    %4047 = vmatpush1.msra.mxu0 0.0
    %4048 = vmatprep.subr.mxu0 0.0
    %v4049 = vand.u32 %v3679, 4294901760
    %v4050 = vsub.f32 %v3679, %v4049
    %v4051 = vand.u32 %v4050, 4294901760
    %4052 = vmatpush1.msra.mxu0 %v4051
    %4053 = vmatprep.subr.mxu0 0.0
    %v4054 = vand.u32 %v3678, 4294901760
    %v4055 = vsub.f32 %v3678, %v4054
    %v4056 = vand.u32 %v4055, 4294901760
    %4057 = vmatpush1.msra.mxu0 %v4056
    %4058 = vmatprep.subr.mxu0 0.0
    %4059 = vmatpush2.msra.mxu0 0.0
    %4060 = vmatprep.subr.mxu0 0.0
    %4061 = vmatpush2.msra.mxu0 0.0
    %4062 = vmatprep.subr.mxu0 0.0
    %4063 = vmatpush2.msra.mxu0 0.0
    %4064 = vmatprep.subr.mxu0 0.0
    %4065 = vmatpush2.msra.mxu0 0.0
    %4066 = vmatprep.subr.mxu0 0.0
    %4067 = vmatpush2.msra.mxu0 0.0
    %4068 = vmatprep.subr.mxu0 0.0
    %4069 = vmatpush2.msra.mxu0 0.0
    %4070 = vmatprep.subr.mxu0 0.0
    %4071 = vmatpush2.msra.mxu0 0.0
    %4072 = vmatprep.subr.mxu0 0.0
    %4073 = vmatpush2.msra.mxu0 0.0
    %4074 = vmatprep.subr.mxu0 0.0
    %4075 = vmatpush2.msra.mxu0 0.0
    %4076 = vmatprep.subr.mxu0 0.0
    %4077 = vmatpush2.msra.mxu0 0.0
    %4078 = vmatprep.subr.mxu0 0.0
    %4079 = vmatpush2.msra.mxu0 0.0
    %4080 = vmatprep.subr.mxu0 0.0
    %4081 = vmatpush2.msra.mxu0 0.0
    %4082 = vmatprep.subr.mxu0 0.0
    %4083 = vmatpush2.msra.mxu0 0.0
    %4084 = vmatprep.subr.mxu0 0.0
    %4085 = vmatpush2.msra.mxu0 0.0
    %4086 = vmatprep.subr.mxu0 0.0
    %4087 = vmatpush2.msra.mxu0 0.0
    %4088 = vmatprep.subr.mxu0 0.0
    %4089 = vmatpush2.msra.mxu0 0.0
    %4090 = vmatprep.mubr.f32.mxu0 0.0
    %v4091 = vand.u32 %v113, 4294901760
    %4092 = vmatmul.mubr.f32.gmra.mxu0 %v4091
    %v4093 = vpop.f32.mrf.mxu0
    %v4094 = vadd.f32 %v4009, %v4093
    %v4095 = vpop.f32.mrf.mxu0
    %4096 = vmatprep.mubr.f32.mxu0 0.0
    %v4097 = vand.u32 %v116, 4294901760
    %4098 = vmatmul.mubr.f32.gmra.mxu0 %v4097
    %v4099 = vpop.f32.mrf.mxu0
    %v4100 = vadd.f32 %v4017, %v4099
    %v4101 = vpop.f32.mrf.mxu0
    %4102 = vdwg.mxu0
    %4103 = vmatprep.subr.mxu0 0.0
    %4104 = vmatpush1.msra.mxu0 0.0
    %4105 = vmatprep.subr.mxu0 0.0
    %4106 = vmatpush1.msra.mxu0 0.0
    %4107 = vmatprep.subr.mxu0 0.0
    %4108 = vmatpush1.msra.mxu0 0.0
    %4109 = vmatprep.subr.mxu0 0.0
    %4110 = vmatpush1.msra.mxu0 0.0
    %4111 = vmatprep.subr.mxu0 0.0
    %4112 = vmatpush1.msra.mxu0 0.0
    %4113 = vmatprep.subr.mxu0 0.0
    %4114 = vmatpush1.msra.mxu0 0.0
    %4115 = vmatprep.subr.mxu0 0.0
    %4116 = vmatpush1.msra.mxu0 0.0
    %4117 = vmatprep.subr.mxu0 0.0
    %4118 = vmatpush1.msra.mxu0 0.0
    %4119 = vmatprep.subr.mxu0 0.0
    %4120 = vmatpush1.msra.mxu0 0.0
    %4121 = vmatprep.subr.mxu0 0.0
    %4122 = vmatpush1.msra.mxu0 0.0
    %4123 = vmatprep.subr.mxu0 0.0
    %4124 = vmatpush1.msra.mxu0 0.0
    %4125 = vmatprep.subr.mxu0 0.0
    %4126 = vmatpush1.msra.mxu0 0.0
    %4127 = vmatprep.subr.mxu0 0.0
    %4128 = vmatpush1.msra.mxu0 0.0
    %4129 = vmatprep.subr.mxu0 0.0
    %4130 = vmatpush1.msra.mxu0 0.0
    %4131 = vmatprep.subr.mxu0 0.0
    %v4132 = vand.u32 %v3679, 4294901760
    %4133 = vmatpush1.msra.mxu0 %v4132
    %4134 = vmatprep.subr.mxu0 0.0
    %v4135 = vand.u32 %v3678, 4294901760
    %4136 = vmatpush1.msra.mxu0 %v4135
    %4137 = vmatprep.subr.mxu0 0.0
    %4138 = vmatpush2.msra.mxu0 0.0
    %4139 = vmatprep.subr.mxu0 0.0
    %4140 = vmatpush2.msra.mxu0 0.0
    %4141 = vmatprep.subr.mxu0 0.0
    %4142 = vmatpush2.msra.mxu0 0.0
    %4143 = vmatprep.subr.mxu0 0.0
    %4144 = vmatpush2.msra.mxu0 0.0
    %4145 = vmatprep.subr.mxu0 0.0
    %4146 = vmatpush2.msra.mxu0 0.0
    %4147 = vmatprep.subr.mxu0 0.0
    %4148 = vmatpush2.msra.mxu0 0.0
    %4149 = vmatprep.subr.mxu0 0.0
    %4150 = vmatpush2.msra.mxu0 0.0
    %4151 = vmatprep.subr.mxu0 0.0
    %4152 = vmatpush2.msra.mxu0 0.0
    %4153 = vmatprep.subr.mxu0 0.0
    %4154 = vmatpush2.msra.mxu0 0.0
    %4155 = vmatprep.subr.mxu0 0.0
    %4156 = vmatpush2.msra.mxu0 0.0
    %4157 = vmatprep.subr.mxu0 0.0
    %4158 = vmatpush2.msra.mxu0 0.0
    %4159 = vmatprep.subr.mxu0 0.0
    %4160 = vmatpush2.msra.mxu0 0.0
    %4161 = vmatprep.subr.mxu0 0.0
    %4162 = vmatpush2.msra.mxu0 0.0
    %4163 = vmatprep.subr.mxu0 0.0
    %4164 = vmatpush2.msra.mxu0 0.0
    %4165 = vmatprep.subr.mxu0 0.0
    %4166 = vmatpush2.msra.mxu0 0.0
    %4167 = vmatprep.subr.mxu0 0.0
    %4168 = vmatpush2.msra.mxu0 0.0
    %4169 = vmatprep.mubr.f32.mxu0 0.0
    %v4170 = vand.u32 %v113, 4294901760
    %4171 = vmatmul.mubr.f32.gmra.mxu0 %v4170
    %v4172 = vpop.f32.mrf.mxu0
    %v4173 = vadd.f32 %v4094, %v4172
    %v4174 = vpop.f32.mrf.mxu0
    %4175 = vmatprep.mubr.f32.mxu0 0.0
    %v4176 = vand.u32 %v116, 4294901760
    %4177 = vmatmul.mubr.f32.gmra.mxu0 %v4176
    %v4178 = vpop.f32.mrf.mxu0
    %v4179 = vadd.f32 %v4100, %v4178
    %v4180 = vpop.f32.mrf.mxu0
    %4181 = vdwg.mxu0
    %4182 = vmatprep.subr.mxu0 0.0
    %v4183 = vand.u32 %v110, 4294901760
    %4184 = vmatpush1.msra.mxu0 %v4183
    %4185 = vmatprep.subr.mxu0 0.0
    %v4186 = vand.u32 %v109, 4294901760
    %4187 = vmatpush1.msra.mxu0 %v4186
    %4188 = vmatprep.subr.mxu0 0.0
    %v4189 = vand.u32 %v108, 4294901760
    %4190 = vmatpush1.msra.mxu0 %v4189
    %4191 = vmatprep.subr.mxu0 0.0
    %v4192 = vand.u32 %v107, 4294901760
    %4193 = vmatpush1.msra.mxu0 %v4192
    %4194 = vmatprep.subr.mxu0 0.0
    %v4195 = vand.u32 %v106, 4294901760
    %4196 = vmatpush1.msra.mxu0 %v4195
    %4197 = vmatprep.subr.mxu0 0.0
    %v4198 = vand.u32 %v105, 4294901760
    %4199 = vmatpush1.msra.mxu0 %v4198
    %4200 = vmatprep.subr.mxu0 0.0
    %v4201 = vand.u32 %v104, 4294901760
    %4202 = vmatpush1.msra.mxu0 %v4201
    %4203 = vmatprep.subr.mxu0 0.0
    %v4204 = vand.u32 %v103, 4294901760
    %4205 = vmatpush1.msra.mxu0 %v4204
    %4206 = vmatprep.subr.mxu0 0.0
    %v4207 = vand.u32 %v102, 4294901760
    %4208 = vmatpush1.msra.mxu0 %v4207
    %4209 = vmatprep.subr.mxu0 0.0
    %v4210 = vand.u32 %v101, 4294901760
    %4211 = vmatpush1.msra.mxu0 %v4210
    %4212 = vmatprep.subr.mxu0 0.0
    %v4213 = vand.u32 %v100, 4294901760
    %4214 = vmatpush1.msra.mxu0 %v4213
    %4215 = vmatprep.subr.mxu0 0.0
    %v4216 = vand.u32 %v99, 4294901760
    %4217 = vmatpush1.msra.mxu0 %v4216
    %4218 = vmatprep.subr.mxu0 0.0
    %v4219 = vand.u32 %v98, 4294901760
    %4220 = vmatpush1.msra.mxu0 %v4219
    %4221 = vmatprep.subr.mxu0 0.0
    %v4222 = vand.u32 %v97, 4294901760
    %4223 = vmatpush1.msra.mxu0 %v4222
    %4224 = vmatprep.subr.mxu0 0.0
    %v4225 = vand.u32 %v96, 4294901760
    %4226 = vmatpush1.msra.mxu0 %v4225
    %4227 = vmatprep.subr.mxu0 0.0
    %v4228 = vand.u32 %v95, 4294901760
    %4229 = vmatpush1.msra.mxu0 %v4228
    %4230 = vmatprep.subr.mxu0 0.0
    %4231 = vmatpush2.msra.mxu0 0.0
    %4232 = vmatprep.subr.mxu0 0.0
    %4233 = vmatpush2.msra.mxu0 0.0
    %4234 = vmatprep.subr.mxu0 0.0
    %4235 = vmatpush2.msra.mxu0 0.0
    %4236 = vmatprep.subr.mxu0 0.0
    %4237 = vmatpush2.msra.mxu0 0.0
    %4238 = vmatprep.subr.mxu0 0.0
    %4239 = vmatpush2.msra.mxu0 0.0
    %4240 = vmatprep.subr.mxu0 0.0
    %4241 = vmatpush2.msra.mxu0 0.0
    %4242 = vmatprep.subr.mxu0 0.0
    %4243 = vmatpush2.msra.mxu0 0.0
    %4244 = vmatprep.subr.mxu0 0.0
    %4245 = vmatpush2.msra.mxu0 0.0
    %4246 = vmatprep.subr.mxu0 0.0
    %4247 = vmatpush2.msra.mxu0 0.0
    %4248 = vmatprep.subr.mxu0 0.0
    %4249 = vmatpush2.msra.mxu0 0.0
    %4250 = vmatprep.subr.mxu0 0.0
    %4251 = vmatpush2.msra.mxu0 0.0
    %4252 = vmatprep.subr.mxu0 0.0
    %4253 = vmatpush2.msra.mxu0 0.0
    %4254 = vmatprep.subr.mxu0 0.0
    %4255 = vmatpush2.msra.mxu0 0.0
    %4256 = vmatprep.subr.mxu0 0.0
    %4257 = vmatpush2.msra.mxu0 0.0
    %4258 = vmatprep.subr.mxu0 0.0
    %4259 = vmatpush2.msra.mxu0 0.0
    %4260 = vmatprep.subr.mxu0 0.0
    %4261 = vmatpush2.msra.mxu0 0.0
    %4262 = vmatprep.mubr.f32.mxu0 0.0
    %v4263 = vand.u32 %v4173, 4294901760
    %v4264 = vsub.f32 %v4173, %v4263
    %v4265 = vand.u32 %v4264, 4294901760
    %v4266 = vsub.f32 %v4264, %v4265
    %v4267 = vand.u32 %v4266, 4294901760
    %4268 = vmatmul.mubr.f32.gmra.mxu0 %v4267
    %v4269 = vpop.f32.mrf.mxu0
    %v4270 = vadd.f32 0.0, %v4269
    %v4271 = vpop.f32.mrf.mxu0
    %4272 = vmatprep.mubr.f32.mxu0 0.0
    %v4273 = vand.u32 %v4179, 4294901760
    %v4274 = vsub.f32 %v4179, %v4273
    %v4275 = vand.u32 %v4274, 4294901760
    %v4276 = vsub.f32 %v4274, %v4275
    %v4277 = vand.u32 %v4276, 4294901760
    %4278 = vmatmul.mubr.f32.gmra.mxu0 %v4277
    %v4279 = vpop.f32.mrf.mxu0
    %v4280 = vadd.f32 0.0, %v4279
    %v4281 = vpop.f32.mrf.mxu0
    %4282 = vdwg.mxu0
    %4283 = vmatprep.subr.mxu0 0.0
    %v4284 = vand.u32 %v110, 4294901760
    %v4285 = vsub.f32 %v110, %v4284
    %v4286 = vand.u32 %v4285, 4294901760
    %v4287 = vsub.f32 %v4285, %v4286
    %v4288 = vand.u32 %v4287, 4294901760
    %4289 = vmatpush1.msra.mxu0 %v4288
    %4290 = vmatprep.subr.mxu0 0.0
    %v4291 = vand.u32 %v109, 4294901760
    %v4292 = vsub.f32 %v109, %v4291
    %v4293 = vand.u32 %v4292, 4294901760
    %v4294 = vsub.f32 %v4292, %v4293
    %v4295 = vand.u32 %v4294, 4294901760
    %4296 = vmatpush1.msra.mxu0 %v4295
    %4297 = vmatprep.subr.mxu0 0.0
    %v4298 = vand.u32 %v108, 4294901760
    %v4299 = vsub.f32 %v108, %v4298
    %v4300 = vand.u32 %v4299, 4294901760
    %v4301 = vsub.f32 %v4299, %v4300
    %v4302 = vand.u32 %v4301, 4294901760
    %4303 = vmatpush1.msra.mxu0 %v4302
    %4304 = vmatprep.subr.mxu0 0.0
    %v4305 = vand.u32 %v107, 4294901760
    %v4306 = vsub.f32 %v107, %v4305
    %v4307 = vand.u32 %v4306, 4294901760
    %v4308 = vsub.f32 %v4306, %v4307
    %v4309 = vand.u32 %v4308, 4294901760
    %4310 = vmatpush1.msra.mxu0 %v4309
    %4311 = vmatprep.subr.mxu0 0.0
    %v4312 = vand.u32 %v106, 4294901760
    %v4313 = vsub.f32 %v106, %v4312
    %v4314 = vand.u32 %v4313, 4294901760
    %v4315 = vsub.f32 %v4313, %v4314
    %v4316 = vand.u32 %v4315, 4294901760
    %4317 = vmatpush1.msra.mxu0 %v4316
    %4318 = vmatprep.subr.mxu0 0.0
    %v4319 = vand.u32 %v105, 4294901760
    %v4320 = vsub.f32 %v105, %v4319
    %v4321 = vand.u32 %v4320, 4294901760
    %v4322 = vsub.f32 %v4320, %v4321
    %v4323 = vand.u32 %v4322, 4294901760
    %4324 = vmatpush1.msra.mxu0 %v4323
    %4325 = vmatprep.subr.mxu0 0.0
    %v4326 = vand.u32 %v104, 4294901760
    %v4327 = vsub.f32 %v104, %v4326
    %v4328 = vand.u32 %v4327, 4294901760
    %v4329 = vsub.f32 %v4327, %v4328
    %v4330 = vand.u32 %v4329, 4294901760
    %4331 = vmatpush1.msra.mxu0 %v4330
    %4332 = vmatprep.subr.mxu0 0.0
    %v4333 = vand.u32 %v103, 4294901760
    %v4334 = vsub.f32 %v103, %v4333
    %v4335 = vand.u32 %v4334, 4294901760
    %v4336 = vsub.f32 %v4334, %v4335
    %v4337 = vand.u32 %v4336, 4294901760
    %4338 = vmatpush1.msra.mxu0 %v4337
    %4339 = vmatprep.subr.mxu0 0.0
    %v4340 = vand.u32 %v102, 4294901760
    %v4341 = vsub.f32 %v102, %v4340
    %v4342 = vand.u32 %v4341, 4294901760
    %v4343 = vsub.f32 %v4341, %v4342
    %v4344 = vand.u32 %v4343, 4294901760
    %4345 = vmatpush1.msra.mxu0 %v4344
    %4346 = vmatprep.subr.mxu0 0.0
    %v4347 = vand.u32 %v101, 4294901760
    %v4348 = vsub.f32 %v101, %v4347
    %v4349 = vand.u32 %v4348, 4294901760
    %v4350 = vsub.f32 %v4348, %v4349
    %v4351 = vand.u32 %v4350, 4294901760
    %4352 = vmatpush1.msra.mxu0 %v4351
    %4353 = vmatprep.subr.mxu0 0.0
    %v4354 = vand.u32 %v100, 4294901760
    %v4355 = vsub.f32 %v100, %v4354
    %v4356 = vand.u32 %v4355, 4294901760
    %v4357 = vsub.f32 %v4355, %v4356
    %v4358 = vand.u32 %v4357, 4294901760
    %4359 = vmatpush1.msra.mxu0 %v4358
    %4360 = vmatprep.subr.mxu0 0.0
    %v4361 = vand.u32 %v99, 4294901760
    %v4362 = vsub.f32 %v99, %v4361
    %v4363 = vand.u32 %v4362, 4294901760
    %v4364 = vsub.f32 %v4362, %v4363
    %v4365 = vand.u32 %v4364, 4294901760
    %4366 = vmatpush1.msra.mxu0 %v4365
    %4367 = vmatprep.subr.mxu0 0.0
    %v4368 = vand.u32 %v98, 4294901760
    %v4369 = vsub.f32 %v98, %v4368
    %v4370 = vand.u32 %v4369, 4294901760
    %v4371 = vsub.f32 %v4369, %v4370
    %v4372 = vand.u32 %v4371, 4294901760
    %4373 = vmatpush1.msra.mxu0 %v4372
    %4374 = vmatprep.subr.mxu0 0.0
    %v4375 = vand.u32 %v97, 4294901760
    %v4376 = vsub.f32 %v97, %v4375
    %v4377 = vand.u32 %v4376, 4294901760
    %v4378 = vsub.f32 %v4376, %v4377
    %v4379 = vand.u32 %v4378, 4294901760
    %4380 = vmatpush1.msra.mxu0 %v4379
    %4381 = vmatprep.subr.mxu0 0.0
    %v4382 = vand.u32 %v96, 4294901760
    %v4383 = vsub.f32 %v96, %v4382
    %v4384 = vand.u32 %v4383, 4294901760
    %v4385 = vsub.f32 %v4383, %v4384
    %v4386 = vand.u32 %v4385, 4294901760
    %4387 = vmatpush1.msra.mxu0 %v4386
    %4388 = vmatprep.subr.mxu0 0.0
    %v4389 = vand.u32 %v95, 4294901760
    %v4390 = vsub.f32 %v95, %v4389
    %v4391 = vand.u32 %v4390, 4294901760
    %v4392 = vsub.f32 %v4390, %v4391
    %v4393 = vand.u32 %v4392, 4294901760
    %4394 = vmatpush1.msra.mxu0 %v4393
    %4395 = vmatprep.subr.mxu0 0.0
    %4396 = vmatpush2.msra.mxu0 0.0
    %4397 = vmatprep.subr.mxu0 0.0
    %4398 = vmatpush2.msra.mxu0 0.0
    %4399 = vmatprep.subr.mxu0 0.0
    %4400 = vmatpush2.msra.mxu0 0.0
    %4401 = vmatprep.subr.mxu0 0.0
    %4402 = vmatpush2.msra.mxu0 0.0
    %4403 = vmatprep.subr.mxu0 0.0
    %4404 = vmatpush2.msra.mxu0 0.0
    %4405 = vmatprep.subr.mxu0 0.0
    %4406 = vmatpush2.msra.mxu0 0.0
    %4407 = vmatprep.subr.mxu0 0.0
    %4408 = vmatpush2.msra.mxu0 0.0
    %4409 = vmatprep.subr.mxu0 0.0
    %4410 = vmatpush2.msra.mxu0 0.0
    %4411 = vmatprep.subr.mxu0 0.0
    %4412 = vmatpush2.msra.mxu0 0.0
    %4413 = vmatprep.subr.mxu0 0.0
    %4414 = vmatpush2.msra.mxu0 0.0
    %4415 = vmatprep.subr.mxu0 0.0
    %4416 = vmatpush2.msra.mxu0 0.0
    %4417 = vmatprep.subr.mxu0 0.0
    %4418 = vmatpush2.msra.mxu0 0.0
    %4419 = vmatprep.subr.mxu0 0.0
    %4420 = vmatpush2.msra.mxu0 0.0
    %4421 = vmatprep.subr.mxu0 0.0
    %4422 = vmatpush2.msra.mxu0 0.0
    %4423 = vmatprep.subr.mxu0 0.0
    %4424 = vmatpush2.msra.mxu0 0.0
    %4425 = vmatprep.subr.mxu0 0.0
    %4426 = vmatpush2.msra.mxu0 0.0
    %4427 = vmatprep.mubr.f32.mxu0 0.0
    %v4428 = vand.u32 %v4173, 4294901760
    %4429 = vmatmul.mubr.f32.gmra.mxu0 %v4428
    %v4430 = vpop.f32.mrf.mxu0
    %v4431 = vadd.f32 %v4270, %v4430
    %v4432 = vpop.f32.mrf.mxu0
    %4433 = vmatprep.mubr.f32.mxu0 0.0
    %v4434 = vand.u32 %v4179, 4294901760
    %4435 = vmatmul.mubr.f32.gmra.mxu0 %v4434
    %v4436 = vpop.f32.mrf.mxu0
    %v4437 = vadd.f32 %v4280, %v4436
    %v4438 = vpop.f32.mrf.mxu0
    %4439 = vdwg.mxu0
    %4440 = vmatprep.subr.mxu0 0.0
    %v4441 = vand.u32 %v110, 4294901760
    %v4442 = vsub.f32 %v110, %v4441
    %4443 = vmatpush1.msra.mxu0 %v4442
    %4444 = vmatprep.subr.mxu0 0.0
    %v4445 = vand.u32 %v109, 4294901760
    %v4446 = vsub.f32 %v109, %v4445
    %4447 = vmatpush1.msra.mxu0 %v4446
    %4448 = vmatprep.subr.mxu0 0.0
    %v4449 = vand.u32 %v108, 4294901760
    %v4450 = vsub.f32 %v108, %v4449
    %4451 = vmatpush1.msra.mxu0 %v4450
    %4452 = vmatprep.subr.mxu0 0.0
    %v4453 = vand.u32 %v107, 4294901760
    %v4454 = vsub.f32 %v107, %v4453
    %4455 = vmatpush1.msra.mxu0 %v4454
    %4456 = vmatprep.subr.mxu0 0.0
    %v4457 = vand.u32 %v106, 4294901760
    %v4458 = vsub.f32 %v106, %v4457
    %4459 = vmatpush1.msra.mxu0 %v4458
    %4460 = vmatprep.subr.mxu0 0.0
    %v4461 = vand.u32 %v105, 4294901760
    %v4462 = vsub.f32 %v105, %v4461
    %4463 = vmatpush1.msra.mxu0 %v4462
    %4464 = vmatprep.subr.mxu0 0.0
    %v4465 = vand.u32 %v104, 4294901760
    %v4466 = vsub.f32 %v104, %v4465
    %4467 = vmatpush1.msra.mxu0 %v4466
    %4468 = vmatprep.subr.mxu0 0.0
    %v4469 = vand.u32 %v103, 4294901760
    %v4470 = vsub.f32 %v103, %v4469
    %4471 = vmatpush1.msra.mxu0 %v4470
    %4472 = vmatprep.subr.mxu0 0.0
    %v4473 = vand.u32 %v102, 4294901760
    %v4474 = vsub.f32 %v102, %v4473
    %4475 = vmatpush1.msra.mxu0 %v4474
    %4476 = vmatprep.subr.mxu0 0.0
    %v4477 = vand.u32 %v101, 4294901760
    %v4478 = vsub.f32 %v101, %v4477
    %4479 = vmatpush1.msra.mxu0 %v4478
    %4480 = vmatprep.subr.mxu0 0.0
    %v4481 = vand.u32 %v100, 4294901760
    %v4482 = vsub.f32 %v100, %v4481
    %4483 = vmatpush1.msra.mxu0 %v4482
    %4484 = vmatprep.subr.mxu0 0.0
    %v4485 = vand.u32 %v99, 4294901760
    %v4486 = vsub.f32 %v99, %v4485
    %4487 = vmatpush1.msra.mxu0 %v4486
    %4488 = vmatprep.subr.mxu0 0.0
    %v4489 = vand.u32 %v98, 4294901760
    %v4490 = vsub.f32 %v98, %v4489
    %4491 = vmatpush1.msra.mxu0 %v4490
    %4492 = vmatprep.subr.mxu0 0.0
    %v4493 = vand.u32 %v97, 4294901760
    %v4494 = vsub.f32 %v97, %v4493
    %4495 = vmatpush1.msra.mxu0 %v4494
    %4496 = vmatprep.subr.mxu0 0.0
    %v4497 = vand.u32 %v96, 4294901760
    %v4498 = vsub.f32 %v96, %v4497
    %4499 = vmatpush1.msra.mxu0 %v4498
    %4500 = vmatprep.subr.mxu0 0.0
    %v4501 = vand.u32 %v95, 4294901760
    %v4502 = vsub.f32 %v95, %v4501
    %4503 = vmatpush1.msra.mxu0 %v4502
    %4504 = vmatprep.subr.mxu0 0.0
    %4505 = vmatpush2.msra.mxu0 0.0
    %4506 = vmatprep.subr.mxu0 0.0
    %4507 = vmatpush2.msra.mxu0 0.0
    %4508 = vmatprep.subr.mxu0 0.0
    %4509 = vmatpush2.msra.mxu0 0.0
    %4510 = vmatprep.subr.mxu0 0.0
    %4511 = vmatpush2.msra.mxu0 0.0
    %4512 = vmatprep.subr.mxu0 0.0
    %4513 = vmatpush2.msra.mxu0 0.0
    %4514 = vmatprep.subr.mxu0 0.0
    %4515 = vmatpush2.msra.mxu0 0.0
    %4516 = vmatprep.subr.mxu0 0.0
    %4517 = vmatpush2.msra.mxu0 0.0
    %4518 = vmatprep.subr.mxu0 0.0
    %4519 = vmatpush2.msra.mxu0 0.0
    %4520 = vmatprep.subr.mxu0 0.0
    %4521 = vmatpush2.msra.mxu0 0.0
    %4522 = vmatprep.subr.mxu0 0.0
    %4523 = vmatpush2.msra.mxu0 0.0
    %4524 = vmatprep.subr.mxu0 0.0
    %4525 = vmatpush2.msra.mxu0 0.0
    %4526 = vmatprep.subr.mxu0 0.0
    %4527 = vmatpush2.msra.mxu0 0.0
    %4528 = vmatprep.subr.mxu0 0.0
    %4529 = vmatpush2.msra.mxu0 0.0
    %4530 = vmatprep.subr.mxu0 0.0
    %4531 = vmatpush2.msra.mxu0 0.0
    %4532 = vmatprep.subr.mxu0 0.0
    %4533 = vmatpush2.msra.mxu0 0.0
    %4534 = vmatprep.subr.mxu0 0.0
    %4535 = vmatpush2.msra.mxu0 0.0
    %4536 = vmatprep.mubr.f32.mxu0 0.0
    %v4537 = vand.u32 %v4173, 4294901760
    %v4538 = vsub.f32 %v4173, %v4537
    %4539 = vmatmul.mubr.f32.gmra.mxu0 %v4538
    %v4540 = vpop.f32.mrf.mxu0
    %v4541 = vadd.f32 %v4431, %v4540
    %v4542 = vpop.f32.mrf.mxu0
    %4543 = vmatprep.mubr.f32.mxu0 0.0
    %v4544 = vand.u32 %v4179, 4294901760
    %v4545 = vsub.f32 %v4179, %v4544
    %4546 = vmatmul.mubr.f32.gmra.mxu0 %v4545
    %v4547 = vpop.f32.mrf.mxu0
    %v4548 = vadd.f32 %v4437, %v4547
    %v4549 = vpop.f32.mrf.mxu0
    %4550 = vdwg.mxu0
    %4551 = vmatprep.subr.mxu0 0.0
    %v4552 = vand.u32 %v110, 4294901760
    %4553 = vmatpush1.msra.mxu0 %v4552
    %4554 = vmatprep.subr.mxu0 0.0
    %v4555 = vand.u32 %v109, 4294901760
    %4556 = vmatpush1.msra.mxu0 %v4555
    %4557 = vmatprep.subr.mxu0 0.0
    %v4558 = vand.u32 %v108, 4294901760
    %4559 = vmatpush1.msra.mxu0 %v4558
    %4560 = vmatprep.subr.mxu0 0.0
    %v4561 = vand.u32 %v107, 4294901760
    %4562 = vmatpush1.msra.mxu0 %v4561
    %4563 = vmatprep.subr.mxu0 0.0
    %v4564 = vand.u32 %v106, 4294901760
    %4565 = vmatpush1.msra.mxu0 %v4564
    %4566 = vmatprep.subr.mxu0 0.0
    %v4567 = vand.u32 %v105, 4294901760
    %4568 = vmatpush1.msra.mxu0 %v4567
    %4569 = vmatprep.subr.mxu0 0.0
    %v4570 = vand.u32 %v104, 4294901760
    %4571 = vmatpush1.msra.mxu0 %v4570
    %4572 = vmatprep.subr.mxu0 0.0
    %v4573 = vand.u32 %v103, 4294901760
    %4574 = vmatpush1.msra.mxu0 %v4573
    %4575 = vmatprep.subr.mxu0 0.0
    %v4576 = vand.u32 %v102, 4294901760
    %4577 = vmatpush1.msra.mxu0 %v4576
    %4578 = vmatprep.subr.mxu0 0.0
    %v4579 = vand.u32 %v101, 4294901760
    %4580 = vmatpush1.msra.mxu0 %v4579
    %4581 = vmatprep.subr.mxu0 0.0
    %v4582 = vand.u32 %v100, 4294901760
    %4583 = vmatpush1.msra.mxu0 %v4582
    %4584 = vmatprep.subr.mxu0 0.0
    %v4585 = vand.u32 %v99, 4294901760
    %4586 = vmatpush1.msra.mxu0 %v4585
    %4587 = vmatprep.subr.mxu0 0.0
    %v4588 = vand.u32 %v98, 4294901760
    %4589 = vmatpush1.msra.mxu0 %v4588
    %4590 = vmatprep.subr.mxu0 0.0
    %v4591 = vand.u32 %v97, 4294901760
    %4592 = vmatpush1.msra.mxu0 %v4591
    %4593 = vmatprep.subr.mxu0 0.0
    %v4594 = vand.u32 %v96, 4294901760
    %4595 = vmatpush1.msra.mxu0 %v4594
    %4596 = vmatprep.subr.mxu0 0.0
    %v4597 = vand.u32 %v95, 4294901760
    %4598 = vmatpush1.msra.mxu0 %v4597
    %4599 = vmatprep.subr.mxu0 0.0
    %4600 = vmatpush2.msra.mxu0 0.0
    %4601 = vmatprep.subr.mxu0 0.0
    %4602 = vmatpush2.msra.mxu0 0.0
    %4603 = vmatprep.subr.mxu0 0.0
    %4604 = vmatpush2.msra.mxu0 0.0
    %4605 = vmatprep.subr.mxu0 0.0
    %4606 = vmatpush2.msra.mxu0 0.0
    %4607 = vmatprep.subr.mxu0 0.0
    %4608 = vmatpush2.msra.mxu0 0.0
    %4609 = vmatprep.subr.mxu0 0.0
    %4610 = vmatpush2.msra.mxu0 0.0
    %4611 = vmatprep.subr.mxu0 0.0
    %4612 = vmatpush2.msra.mxu0 0.0
    %4613 = vmatprep.subr.mxu0 0.0
    %4614 = vmatpush2.msra.mxu0 0.0
    %4615 = vmatprep.subr.mxu0 0.0
    %4616 = vmatpush2.msra.mxu0 0.0
    %4617 = vmatprep.subr.mxu0 0.0
    %4618 = vmatpush2.msra.mxu0 0.0
    %4619 = vmatprep.subr.mxu0 0.0
    %4620 = vmatpush2.msra.mxu0 0.0
    %4621 = vmatprep.subr.mxu0 0.0
    %4622 = vmatpush2.msra.mxu0 0.0
    %4623 = vmatprep.subr.mxu0 0.0
    %4624 = vmatpush2.msra.mxu0 0.0
    %4625 = vmatprep.subr.mxu0 0.0
    %4626 = vmatpush2.msra.mxu0 0.0
    %4627 = vmatprep.subr.mxu0 0.0
    %4628 = vmatpush2.msra.mxu0 0.0
    %4629 = vmatprep.subr.mxu0 0.0
    %4630 = vmatpush2.msra.mxu0 0.0
    %4631 = vmatprep.mubr.f32.mxu0 0.0
    %v4632 = vand.u32 %v4173, 4294901760
    %v4633 = vsub.f32 %v4173, %v4632
    %v4634 = vand.u32 %v4633, 4294901760
    %4635 = vmatmul.mubr.f32.gmra.mxu0 %v4634
    %v4636 = vpop.f32.mrf.mxu0
    %v4637 = vadd.f32 %v4541, %v4636
    %v4638 = vpop.f32.mrf.mxu0
    %4639 = vmatprep.mubr.f32.mxu0 0.0
    %v4640 = vand.u32 %v4179, 4294901760
    %v4641 = vsub.f32 %v4179, %v4640
    %v4642 = vand.u32 %v4641, 4294901760
    %4643 = vmatmul.mubr.f32.gmra.mxu0 %v4642
    %v4644 = vpop.f32.mrf.mxu0
    %v4645 = vadd.f32 %v4548, %v4644
    %v4646 = vpop.f32.mrf.mxu0
    %4647 = vdwg.mxu0
    %4648 = vmatprep.subr.mxu0 0.0
    %v4649 = vand.u32 %v110, 4294901760
    %v4650 = vsub.f32 %v110, %v4649
    %v4651 = vand.u32 %v4650, 4294901760
    %4652 = vmatpush1.msra.mxu0 %v4651
    %4653 = vmatprep.subr.mxu0 0.0
    %v4654 = vand.u32 %v109, 4294901760
    %v4655 = vsub.f32 %v109, %v4654
    %v4656 = vand.u32 %v4655, 4294901760
    %4657 = vmatpush1.msra.mxu0 %v4656
    %4658 = vmatprep.subr.mxu0 0.0
    %v4659 = vand.u32 %v108, 4294901760
    %v4660 = vsub.f32 %v108, %v4659
    %v4661 = vand.u32 %v4660, 4294901760
    %4662 = vmatpush1.msra.mxu0 %v4661
    %4663 = vmatprep.subr.mxu0 0.0
    %v4664 = vand.u32 %v107, 4294901760
    %v4665 = vsub.f32 %v107, %v4664
    %v4666 = vand.u32 %v4665, 4294901760
    %4667 = vmatpush1.msra.mxu0 %v4666
    %4668 = vmatprep.subr.mxu0 0.0
    %v4669 = vand.u32 %v106, 4294901760
    %v4670 = vsub.f32 %v106, %v4669
    %v4671 = vand.u32 %v4670, 4294901760
    %4672 = vmatpush1.msra.mxu0 %v4671
    %4673 = vmatprep.subr.mxu0 0.0
    %v4674 = vand.u32 %v105, 4294901760
    %v4675 = vsub.f32 %v105, %v4674
    %v4676 = vand.u32 %v4675, 4294901760
    %4677 = vmatpush1.msra.mxu0 %v4676
    %4678 = vmatprep.subr.mxu0 0.0
    %v4679 = vand.u32 %v104, 4294901760
    %v4680 = vsub.f32 %v104, %v4679
    %v4681 = vand.u32 %v4680, 4294901760
    %4682 = vmatpush1.msra.mxu0 %v4681
    %4683 = vmatprep.subr.mxu0 0.0
    %v4684 = vand.u32 %v103, 4294901760
    %v4685 = vsub.f32 %v103, %v4684
    %v4686 = vand.u32 %v4685, 4294901760
    %4687 = vmatpush1.msra.mxu0 %v4686
    %4688 = vmatprep.subr.mxu0 0.0
    %v4689 = vand.u32 %v102, 4294901760
    %v4690 = vsub.f32 %v102, %v4689
    %v4691 = vand.u32 %v4690, 4294901760
    %4692 = vmatpush1.msra.mxu0 %v4691
    %4693 = vmatprep.subr.mxu0 0.0
    %v4694 = vand.u32 %v101, 4294901760
    %v4695 = vsub.f32 %v101, %v4694
    %v4696 = vand.u32 %v4695, 4294901760
    %4697 = vmatpush1.msra.mxu0 %v4696
    %4698 = vmatprep.subr.mxu0 0.0
    %v4699 = vand.u32 %v100, 4294901760
    %v4700 = vsub.f32 %v100, %v4699
    %v4701 = vand.u32 %v4700, 4294901760
    %4702 = vmatpush1.msra.mxu0 %v4701
    %4703 = vmatprep.subr.mxu0 0.0
    %v4704 = vand.u32 %v99, 4294901760
    %v4705 = vsub.f32 %v99, %v4704
    %v4706 = vand.u32 %v4705, 4294901760
    %4707 = vmatpush1.msra.mxu0 %v4706
    %4708 = vmatprep.subr.mxu0 0.0
    %v4709 = vand.u32 %v98, 4294901760
    %v4710 = vsub.f32 %v98, %v4709
    %v4711 = vand.u32 %v4710, 4294901760
    %4712 = vmatpush1.msra.mxu0 %v4711
    %4713 = vmatprep.subr.mxu0 0.0
    %v4714 = vand.u32 %v97, 4294901760
    %v4715 = vsub.f32 %v97, %v4714
    %v4716 = vand.u32 %v4715, 4294901760
    %4717 = vmatpush1.msra.mxu0 %v4716
    %4718 = vmatprep.subr.mxu0 0.0
    %v4719 = vand.u32 %v96, 4294901760
    %v4720 = vsub.f32 %v96, %v4719
    %v4721 = vand.u32 %v4720, 4294901760
    %4722 = vmatpush1.msra.mxu0 %v4721
    %4723 = vmatprep.subr.mxu0 0.0
    %v4724 = vand.u32 %v95, 4294901760
    %v4725 = vsub.f32 %v95, %v4724
    %v4726 = vand.u32 %v4725, 4294901760
    %4727 = vmatpush1.msra.mxu0 %v4726
    %4728 = vmatprep.subr.mxu0 0.0
    %4729 = vmatpush2.msra.mxu0 0.0
    %4730 = vmatprep.subr.mxu0 0.0
    %4731 = vmatpush2.msra.mxu0 0.0
    %4732 = vmatprep.subr.mxu0 0.0
    %4733 = vmatpush2.msra.mxu0 0.0
    %4734 = vmatprep.subr.mxu0 0.0
    %4735 = vmatpush2.msra.mxu0 0.0
    %4736 = vmatprep.subr.mxu0 0.0
    %4737 = vmatpush2.msra.mxu0 0.0
    %4738 = vmatprep.subr.mxu0 0.0
    %4739 = vmatpush2.msra.mxu0 0.0
    %4740 = vmatprep.subr.mxu0 0.0
    %4741 = vmatpush2.msra.mxu0 0.0
    %4742 = vmatprep.subr.mxu0 0.0
    %4743 = vmatpush2.msra.mxu0 0.0
    %4744 = vmatprep.subr.mxu0 0.0
    %4745 = vmatpush2.msra.mxu0 0.0
    %4746 = vmatprep.subr.mxu0 0.0
    %4747 = vmatpush2.msra.mxu0 0.0
    %4748 = vmatprep.subr.mxu0 0.0
    %4749 = vmatpush2.msra.mxu0 0.0
    %4750 = vmatprep.subr.mxu0 0.0
    %4751 = vmatpush2.msra.mxu0 0.0
    %4752 = vmatprep.subr.mxu0 0.0
    %4753 = vmatpush2.msra.mxu0 0.0
    %4754 = vmatprep.subr.mxu0 0.0
    %4755 = vmatpush2.msra.mxu0 0.0
    %4756 = vmatprep.subr.mxu0 0.0
    %4757 = vmatpush2.msra.mxu0 0.0
    %4758 = vmatprep.subr.mxu0 0.0
    %4759 = vmatpush2.msra.mxu0 0.0
    %4760 = vmatprep.mubr.f32.mxu0 0.0
    %v4761 = vand.u32 %v4173, 4294901760
    %4762 = vmatmul.mubr.f32.gmra.mxu0 %v4761
    %v4763 = vpop.f32.mrf.mxu0
    %v4764 = vadd.f32 %v4637, %v4763
    %v4765 = vpop.f32.mrf.mxu0
    %4766 = vmatprep.mubr.f32.mxu0 0.0
    %v4767 = vand.u32 %v4179, 4294901760
    %4768 = vmatmul.mubr.f32.gmra.mxu0 %v4767
    %v4769 = vpop.f32.mrf.mxu0
    %v4770 = vadd.f32 %v4645, %v4769
    %v4771 = vpop.f32.mrf.mxu0
    %4772 = vdwg.mxu0
    %4773 = vmatprep.subr.mxu0 0.0
    %v4774 = vand.u32 %v110, 4294901760
    %4775 = vmatpush1.msra.mxu0 %v4774
    %4776 = vmatprep.subr.mxu0 0.0
    %v4777 = vand.u32 %v109, 4294901760
    %4778 = vmatpush1.msra.mxu0 %v4777
    %4779 = vmatprep.subr.mxu0 0.0
    %v4780 = vand.u32 %v108, 4294901760
    %4781 = vmatpush1.msra.mxu0 %v4780
    %4782 = vmatprep.subr.mxu0 0.0
    %v4783 = vand.u32 %v107, 4294901760
    %4784 = vmatpush1.msra.mxu0 %v4783
    %4785 = vmatprep.subr.mxu0 0.0
    %v4786 = vand.u32 %v106, 4294901760
    %4787 = vmatpush1.msra.mxu0 %v4786
    %4788 = vmatprep.subr.mxu0 0.0
    %v4789 = vand.u32 %v105, 4294901760
    %4790 = vmatpush1.msra.mxu0 %v4789
    %4791 = vmatprep.subr.mxu0 0.0
    %v4792 = vand.u32 %v104, 4294901760
    %4793 = vmatpush1.msra.mxu0 %v4792
    %4794 = vmatprep.subr.mxu0 0.0
    %v4795 = vand.u32 %v103, 4294901760
    %4796 = vmatpush1.msra.mxu0 %v4795
    %4797 = vmatprep.subr.mxu0 0.0
    %v4798 = vand.u32 %v102, 4294901760
    %4799 = vmatpush1.msra.mxu0 %v4798
    %4800 = vmatprep.subr.mxu0 0.0
    %v4801 = vand.u32 %v101, 4294901760
    %4802 = vmatpush1.msra.mxu0 %v4801
    %4803 = vmatprep.subr.mxu0 0.0
    %v4804 = vand.u32 %v100, 4294901760
    %4805 = vmatpush1.msra.mxu0 %v4804
    %4806 = vmatprep.subr.mxu0 0.0
    %v4807 = vand.u32 %v99, 4294901760
    %4808 = vmatpush1.msra.mxu0 %v4807
    %4809 = vmatprep.subr.mxu0 0.0
    %v4810 = vand.u32 %v98, 4294901760
    %4811 = vmatpush1.msra.mxu0 %v4810
    %4812 = vmatprep.subr.mxu0 0.0
    %v4813 = vand.u32 %v97, 4294901760
    %4814 = vmatpush1.msra.mxu0 %v4813
    %4815 = vmatprep.subr.mxu0 0.0
    %v4816 = vand.u32 %v96, 4294901760
    %4817 = vmatpush1.msra.mxu0 %v4816
    %4818 = vmatprep.subr.mxu0 0.0
    %v4819 = vand.u32 %v95, 4294901760
    %4820 = vmatpush1.msra.mxu0 %v4819
    %4821 = vmatprep.subr.mxu0 0.0
    %4822 = vmatpush2.msra.mxu0 0.0
    %4823 = vmatprep.subr.mxu0 0.0
    %4824 = vmatpush2.msra.mxu0 0.0
    %4825 = vmatprep.subr.mxu0 0.0
    %4826 = vmatpush2.msra.mxu0 0.0
    %4827 = vmatprep.subr.mxu0 0.0
    %4828 = vmatpush2.msra.mxu0 0.0
    %4829 = vmatprep.subr.mxu0 0.0
    %4830 = vmatpush2.msra.mxu0 0.0
    %4831 = vmatprep.subr.mxu0 0.0
    %4832 = vmatpush2.msra.mxu0 0.0
    %4833 = vmatprep.subr.mxu0 0.0
    %4834 = vmatpush2.msra.mxu0 0.0
    %4835 = vmatprep.subr.mxu0 0.0
    %4836 = vmatpush2.msra.mxu0 0.0
    %4837 = vmatprep.subr.mxu0 0.0
    %4838 = vmatpush2.msra.mxu0 0.0
    %4839 = vmatprep.subr.mxu0 0.0
    %4840 = vmatpush2.msra.mxu0 0.0
    %4841 = vmatprep.subr.mxu0 0.0
    %4842 = vmatpush2.msra.mxu0 0.0
    %4843 = vmatprep.subr.mxu0 0.0
    %4844 = vmatpush2.msra.mxu0 0.0
    %4845 = vmatprep.subr.mxu0 0.0
    %4846 = vmatpush2.msra.mxu0 0.0
    %4847 = vmatprep.subr.mxu0 0.0
    %4848 = vmatpush2.msra.mxu0 0.0
    %4849 = vmatprep.subr.mxu0 0.0
    %4850 = vmatpush2.msra.mxu0 0.0
    %4851 = vmatprep.subr.mxu0 0.0
    %4852 = vmatpush2.msra.mxu0 0.0
    %4853 = vmatprep.mubr.f32.mxu0 0.0
    %v4854 = vand.u32 %v4173, 4294901760
    %4855 = vmatmul.mubr.f32.gmra.mxu0 %v4854
    %v4856 = vpop.f32.mrf.mxu0
    %v4857 = vadd.f32 %v4764, %v4856
    %v4858 = vpop.f32.mrf.mxu0
    %4859 = vmatprep.mubr.f32.mxu0 0.0
    %v4860 = vand.u32 %v4179, 4294901760
    %4861 = vmatmul.mubr.f32.gmra.mxu0 %v4860
    %v4862 = vpop.f32.mrf.mxu0
    %v4863 = vadd.f32 %v4770, %v4862
    %v4864 = vpop.f32.mrf.mxu0
    %4865 = vdwg.mxu0
    %v4866 = vmul.f32 %v89, %v91
    %v4867 = vmul.f32 %v90, %v92
    %4868 = vmatprep.subr.mxu0 0.0
    %4869 = vmatpush1.msra.mxu0 0.0
    %4870 = vmatprep.subr.mxu0 0.0
    %4871 = vmatpush1.msra.mxu0 0.0
    %4872 = vmatprep.subr.mxu0 0.0
    %4873 = vmatpush1.msra.mxu0 0.0
    %4874 = vmatprep.subr.mxu0 0.0
    %4875 = vmatpush1.msra.mxu0 0.0
    %4876 = vmatprep.subr.mxu0 0.0
    %4877 = vmatpush1.msra.mxu0 0.0
    %4878 = vmatprep.subr.mxu0 0.0
    %4879 = vmatpush1.msra.mxu0 0.0
    %4880 = vmatprep.subr.mxu0 0.0
    %4881 = vmatpush1.msra.mxu0 0.0
    %4882 = vmatprep.subr.mxu0 0.0
    %4883 = vmatpush1.msra.mxu0 0.0
    %4884 = vmatprep.subr.mxu0 0.0
    %4885 = vmatpush1.msra.mxu0 0.0
    %4886 = vmatprep.subr.mxu0 0.0
    %4887 = vmatpush1.msra.mxu0 0.0
    %4888 = vmatprep.subr.mxu0 0.0
    %4889 = vmatpush1.msra.mxu0 0.0
    %4890 = vmatprep.subr.mxu0 0.0
    %4891 = vmatpush1.msra.mxu0 0.0
    %4892 = vmatprep.subr.mxu0 0.0
    %4893 = vmatpush1.msra.mxu0 0.0
    %4894 = vmatprep.subr.mxu0 0.0
    %4895 = vmatpush1.msra.mxu0 0.0
    %4896 = vmatprep.subr.mxu0 0.0
    %v4897 = vand.u32 %v4867, 4294901760
    %4898 = vmatpush1.msra.mxu0 %v4897
    %4899 = vmatprep.subr.mxu0 0.0
    %v4900 = vand.u32 %v4866, 4294901760
    %4901 = vmatpush1.msra.mxu0 %v4900
    %4902 = vmatprep.subr.mxu0 0.0
    %4903 = vmatpush2.msra.mxu0 0.0
    %4904 = vmatprep.subr.mxu0 0.0
    %4905 = vmatpush2.msra.mxu0 0.0
    %4906 = vmatprep.subr.mxu0 0.0
    %4907 = vmatpush2.msra.mxu0 0.0
    %4908 = vmatprep.subr.mxu0 0.0
    %4909 = vmatpush2.msra.mxu0 0.0
    %4910 = vmatprep.subr.mxu0 0.0
    %4911 = vmatpush2.msra.mxu0 0.0
    %4912 = vmatprep.subr.mxu0 0.0
    %4913 = vmatpush2.msra.mxu0 0.0
    %4914 = vmatprep.subr.mxu0 0.0
    %4915 = vmatpush2.msra.mxu0 0.0
    %4916 = vmatprep.subr.mxu0 0.0
    %4917 = vmatpush2.msra.mxu0 0.0
    %4918 = vmatprep.subr.mxu0 0.0
    %4919 = vmatpush2.msra.mxu0 0.0
    %4920 = vmatprep.subr.mxu0 0.0
    %4921 = vmatpush2.msra.mxu0 0.0
    %4922 = vmatprep.subr.mxu0 0.0
    %4923 = vmatpush2.msra.mxu0 0.0
    %4924 = vmatprep.subr.mxu0 0.0
    %4925 = vmatpush2.msra.mxu0 0.0
    %4926 = vmatprep.subr.mxu0 0.0
    %4927 = vmatpush2.msra.mxu0 0.0
    %4928 = vmatprep.subr.mxu0 0.0
    %4929 = vmatpush2.msra.mxu0 0.0
    %4930 = vmatprep.subr.mxu0 0.0
    %4931 = vmatpush2.msra.mxu0 0.0
    %4932 = vmatprep.subr.mxu0 0.0
    %4933 = vmatpush2.msra.mxu0 0.0
    %4934 = vmatprep.mubr.f32.mxu0 0.0
    %v4935 = vand.u32 %v113, 4294901760
    %v4936 = vsub.f32 %v113, %v4935
    %v4937 = vand.u32 %v4936, 4294901760
    %v4938 = vsub.f32 %v4936, %v4937
    %v4939 = vand.u32 %v4938, 4294901760
    %4940 = vmatmul.mubr.f32.gmra.mxu0 %v4939
    %v4941 = vpop.f32.mrf.mxu0
    %v4942 = vadd.f32 0.0, %v4941
    %v4943 = vpop.f32.mrf.mxu0
    %4944 = vmatprep.mubr.f32.mxu0 0.0
    %v4945 = vand.u32 %v116, 4294901760
    %v4946 = vsub.f32 %v116, %v4945
    %v4947 = vand.u32 %v4946, 4294901760
    %v4948 = vsub.f32 %v4946, %v4947
    %v4949 = vand.u32 %v4948, 4294901760
    %4950 = vmatmul.mubr.f32.gmra.mxu0 %v4949
    %v4951 = vpop.f32.mrf.mxu0
    %v4952 = vadd.f32 0.0, %v4951
    %v4953 = vpop.f32.mrf.mxu0
    %4954 = vdwg.mxu0
    %4955 = vmatprep.subr.mxu0 0.0
    %4956 = vmatpush1.msra.mxu0 0.0
    %4957 = vmatprep.subr.mxu0 0.0
    %4958 = vmatpush1.msra.mxu0 0.0
    %4959 = vmatprep.subr.mxu0 0.0
    %4960 = vmatpush1.msra.mxu0 0.0
    %4961 = vmatprep.subr.mxu0 0.0
    %4962 = vmatpush1.msra.mxu0 0.0
    %4963 = vmatprep.subr.mxu0 0.0
    %4964 = vmatpush1.msra.mxu0 0.0
    %4965 = vmatprep.subr.mxu0 0.0
    %4966 = vmatpush1.msra.mxu0 0.0
    %4967 = vmatprep.subr.mxu0 0.0
    %4968 = vmatpush1.msra.mxu0 0.0
    %4969 = vmatprep.subr.mxu0 0.0
    %4970 = vmatpush1.msra.mxu0 0.0
    %4971 = vmatprep.subr.mxu0 0.0
    %4972 = vmatpush1.msra.mxu0 0.0
    %4973 = vmatprep.subr.mxu0 0.0
    %4974 = vmatpush1.msra.mxu0 0.0
    %4975 = vmatprep.subr.mxu0 0.0
    %4976 = vmatpush1.msra.mxu0 0.0
    %4977 = vmatprep.subr.mxu0 0.0
    %4978 = vmatpush1.msra.mxu0 0.0
    %4979 = vmatprep.subr.mxu0 0.0
    %4980 = vmatpush1.msra.mxu0 0.0
    %4981 = vmatprep.subr.mxu0 0.0
    %4982 = vmatpush1.msra.mxu0 0.0
    %4983 = vmatprep.subr.mxu0 0.0
    %v4984 = vand.u32 %v4867, 4294901760
    %v4985 = vsub.f32 %v4867, %v4984
    %v4986 = vand.u32 %v4985, 4294901760
    %v4987 = vsub.f32 %v4985, %v4986
    %v4988 = vand.u32 %v4987, 4294901760
    %4989 = vmatpush1.msra.mxu0 %v4988
    %4990 = vmatprep.subr.mxu0 0.0
    %v4991 = vand.u32 %v4866, 4294901760
    %v4992 = vsub.f32 %v4866, %v4991
    %v4993 = vand.u32 %v4992, 4294901760
    %v4994 = vsub.f32 %v4992, %v4993
    %v4995 = vand.u32 %v4994, 4294901760
    %4996 = vmatpush1.msra.mxu0 %v4995
    %4997 = vmatprep.subr.mxu0 0.0
    %4998 = vmatpush2.msra.mxu0 0.0
    %4999 = vmatprep.subr.mxu0 0.0
    %5000 = vmatpush2.msra.mxu0 0.0
    %5001 = vmatprep.subr.mxu0 0.0
    %5002 = vmatpush2.msra.mxu0 0.0
    %5003 = vmatprep.subr.mxu0 0.0
    %5004 = vmatpush2.msra.mxu0 0.0
    %5005 = vmatprep.subr.mxu0 0.0
    %5006 = vmatpush2.msra.mxu0 0.0
    %5007 = vmatprep.subr.mxu0 0.0
    %5008 = vmatpush2.msra.mxu0 0.0
    %5009 = vmatprep.subr.mxu0 0.0
    %5010 = vmatpush2.msra.mxu0 0.0
    %5011 = vmatprep.subr.mxu0 0.0
    %5012 = vmatpush2.msra.mxu0 0.0
    %5013 = vmatprep.subr.mxu0 0.0
    %5014 = vmatpush2.msra.mxu0 0.0
    %5015 = vmatprep.subr.mxu0 0.0
    %5016 = vmatpush2.msra.mxu0 0.0
    %5017 = vmatprep.subr.mxu0 0.0
    %5018 = vmatpush2.msra.mxu0 0.0
    %5019 = vmatprep.subr.mxu0 0.0
    %5020 = vmatpush2.msra.mxu0 0.0
    %5021 = vmatprep.subr.mxu0 0.0
    %5022 = vmatpush2.msra.mxu0 0.0
    %5023 = vmatprep.subr.mxu0 0.0
    %5024 = vmatpush2.msra.mxu0 0.0
    %5025 = vmatprep.subr.mxu0 0.0
    %5026 = vmatpush2.msra.mxu0 0.0
    %5027 = vmatprep.subr.mxu0 0.0
    %5028 = vmatpush2.msra.mxu0 0.0
    %5029 = vmatprep.mubr.f32.mxu0 0.0
    %v5030 = vand.u32 %v113, 4294901760
    %5031 = vmatmul.mubr.f32.gmra.mxu0 %v5030
    %v5032 = vpop.f32.mrf.mxu0
    %v5033 = vadd.f32 %v4942, %v5032
    %v5034 = vpop.f32.mrf.mxu0
    %5035 = vmatprep.mubr.f32.mxu0 0.0
    %v5036 = vand.u32 %v116, 4294901760
    %5037 = vmatmul.mubr.f32.gmra.mxu0 %v5036
    %v5038 = vpop.f32.mrf.mxu0
    %v5039 = vadd.f32 %v4952, %v5038
    %v5040 = vpop.f32.mrf.mxu0
    %5041 = vdwg.mxu0
    %5042 = vmatprep.subr.mxu0 0.0
    %5043 = vmatpush1.msra.mxu0 0.0
    %5044 = vmatprep.subr.mxu0 0.0
    %5045 = vmatpush1.msra.mxu0 0.0
    %5046 = vmatprep.subr.mxu0 0.0
    %5047 = vmatpush1.msra.mxu0 0.0
    %5048 = vmatprep.subr.mxu0 0.0
    %5049 = vmatpush1.msra.mxu0 0.0
    %5050 = vmatprep.subr.mxu0 0.0
    %5051 = vmatpush1.msra.mxu0 0.0
    %5052 = vmatprep.subr.mxu0 0.0
    %5053 = vmatpush1.msra.mxu0 0.0
    %5054 = vmatprep.subr.mxu0 0.0
    %5055 = vmatpush1.msra.mxu0 0.0
    %5056 = vmatprep.subr.mxu0 0.0
    %5057 = vmatpush1.msra.mxu0 0.0
    %5058 = vmatprep.subr.mxu0 0.0
    %5059 = vmatpush1.msra.mxu0 0.0
    %5060 = vmatprep.subr.mxu0 0.0
    %5061 = vmatpush1.msra.mxu0 0.0
    %5062 = vmatprep.subr.mxu0 0.0
    %5063 = vmatpush1.msra.mxu0 0.0
    %5064 = vmatprep.subr.mxu0 0.0
    %5065 = vmatpush1.msra.mxu0 0.0
    %5066 = vmatprep.subr.mxu0 0.0
    %5067 = vmatpush1.msra.mxu0 0.0
    %5068 = vmatprep.subr.mxu0 0.0
    %5069 = vmatpush1.msra.mxu0 0.0
    %5070 = vmatprep.subr.mxu0 0.0
    %v5071 = vand.u32 %v4867, 4294901760
    %v5072 = vsub.f32 %v4867, %v5071
    %5073 = vmatpush1.msra.mxu0 %v5072
    %5074 = vmatprep.subr.mxu0 0.0
    %v5075 = vand.u32 %v4866, 4294901760
    %v5076 = vsub.f32 %v4866, %v5075
    %5077 = vmatpush1.msra.mxu0 %v5076
    %5078 = vmatprep.subr.mxu0 0.0
    %5079 = vmatpush2.msra.mxu0 0.0
    %5080 = vmatprep.subr.mxu0 0.0
    %5081 = vmatpush2.msra.mxu0 0.0
    %5082 = vmatprep.subr.mxu0 0.0
    %5083 = vmatpush2.msra.mxu0 0.0
    %5084 = vmatprep.subr.mxu0 0.0
    %5085 = vmatpush2.msra.mxu0 0.0
    %5086 = vmatprep.subr.mxu0 0.0
    %5087 = vmatpush2.msra.mxu0 0.0
    %5088 = vmatprep.subr.mxu0 0.0
    %5089 = vmatpush2.msra.mxu0 0.0
    %5090 = vmatprep.subr.mxu0 0.0
    %5091 = vmatpush2.msra.mxu0 0.0
    %5092 = vmatprep.subr.mxu0 0.0
    %5093 = vmatpush2.msra.mxu0 0.0
    %5094 = vmatprep.subr.mxu0 0.0
    %5095 = vmatpush2.msra.mxu0 0.0
    %5096 = vmatprep.subr.mxu0 0.0
    %5097 = vmatpush2.msra.mxu0 0.0
    %5098 = vmatprep.subr.mxu0 0.0
    %5099 = vmatpush2.msra.mxu0 0.0
    %5100 = vmatprep.subr.mxu0 0.0
    %5101 = vmatpush2.msra.mxu0 0.0
    %5102 = vmatprep.subr.mxu0 0.0
    %5103 = vmatpush2.msra.mxu0 0.0
    %5104 = vmatprep.subr.mxu0 0.0
    %5105 = vmatpush2.msra.mxu0 0.0
    %5106 = vmatprep.subr.mxu0 0.0
    %5107 = vmatpush2.msra.mxu0 0.0
    %5108 = vmatprep.subr.mxu0 0.0
    %5109 = vmatpush2.msra.mxu0 0.0
    %5110 = vmatprep.mubr.f32.mxu0 0.0
    %v5111 = vand.u32 %v113, 4294901760
    %v5112 = vsub.f32 %v113, %v5111
    %5113 = vmatmul.mubr.f32.gmra.mxu0 %v5112
    %v5114 = vpop.f32.mrf.mxu0
    %v5115 = vadd.f32 %v5033, %v5114
    %v5116 = vpop.f32.mrf.mxu0
    %5117 = vmatprep.mubr.f32.mxu0 0.0
    %v5118 = vand.u32 %v116, 4294901760
    %v5119 = vsub.f32 %v116, %v5118
    %5120 = vmatmul.mubr.f32.gmra.mxu0 %v5119
    %v5121 = vpop.f32.mrf.mxu0
    %v5122 = vadd.f32 %v5039, %v5121
    %v5123 = vpop.f32.mrf.mxu0
    %5124 = vdwg.mxu0
    %5125 = vmatprep.subr.mxu0 0.0
    %5126 = vmatpush1.msra.mxu0 0.0
    %5127 = vmatprep.subr.mxu0 0.0
    %5128 = vmatpush1.msra.mxu0 0.0
    %5129 = vmatprep.subr.mxu0 0.0
    %5130 = vmatpush1.msra.mxu0 0.0
    %5131 = vmatprep.subr.mxu0 0.0
    %5132 = vmatpush1.msra.mxu0 0.0
    %5133 = vmatprep.subr.mxu0 0.0
    %5134 = vmatpush1.msra.mxu0 0.0
    %5135 = vmatprep.subr.mxu0 0.0
    %5136 = vmatpush1.msra.mxu0 0.0
    %5137 = vmatprep.subr.mxu0 0.0
    %5138 = vmatpush1.msra.mxu0 0.0
    %5139 = vmatprep.subr.mxu0 0.0
    %5140 = vmatpush1.msra.mxu0 0.0
    %5141 = vmatprep.subr.mxu0 0.0
    %5142 = vmatpush1.msra.mxu0 0.0
    %5143 = vmatprep.subr.mxu0 0.0
    %5144 = vmatpush1.msra.mxu0 0.0
    %5145 = vmatprep.subr.mxu0 0.0
    %5146 = vmatpush1.msra.mxu0 0.0
    %5147 = vmatprep.subr.mxu0 0.0
    %5148 = vmatpush1.msra.mxu0 0.0
    %5149 = vmatprep.subr.mxu0 0.0
    %5150 = vmatpush1.msra.mxu0 0.0
    %5151 = vmatprep.subr.mxu0 0.0
    %5152 = vmatpush1.msra.mxu0 0.0
    %5153 = vmatprep.subr.mxu0 0.0
    %v5154 = vand.u32 %v4867, 4294901760
    %5155 = vmatpush1.msra.mxu0 %v5154
    %5156 = vmatprep.subr.mxu0 0.0
    %v5157 = vand.u32 %v4866, 4294901760
    %5158 = vmatpush1.msra.mxu0 %v5157
    %5159 = vmatprep.subr.mxu0 0.0
    %5160 = vmatpush2.msra.mxu0 0.0
    %5161 = vmatprep.subr.mxu0 0.0
    %5162 = vmatpush2.msra.mxu0 0.0
    %5163 = vmatprep.subr.mxu0 0.0
    %5164 = vmatpush2.msra.mxu0 0.0
    %5165 = vmatprep.subr.mxu0 0.0
    %5166 = vmatpush2.msra.mxu0 0.0
    %5167 = vmatprep.subr.mxu0 0.0
    %5168 = vmatpush2.msra.mxu0 0.0
    %5169 = vmatprep.subr.mxu0 0.0
    %5170 = vmatpush2.msra.mxu0 0.0
    %5171 = vmatprep.subr.mxu0 0.0
    %5172 = vmatpush2.msra.mxu0 0.0
    %5173 = vmatprep.subr.mxu0 0.0
    %5174 = vmatpush2.msra.mxu0 0.0
    %5175 = vmatprep.subr.mxu0 0.0
    %5176 = vmatpush2.msra.mxu0 0.0
    %5177 = vmatprep.subr.mxu0 0.0
    %5178 = vmatpush2.msra.mxu0 0.0
    %5179 = vmatprep.subr.mxu0 0.0
    %5180 = vmatpush2.msra.mxu0 0.0
    %5181 = vmatprep.subr.mxu0 0.0
    %5182 = vmatpush2.msra.mxu0 0.0
    %5183 = vmatprep.subr.mxu0 0.0
    %5184 = vmatpush2.msra.mxu0 0.0
    %5185 = vmatprep.subr.mxu0 0.0
    %5186 = vmatpush2.msra.mxu0 0.0
    %5187 = vmatprep.subr.mxu0 0.0
    %5188 = vmatpush2.msra.mxu0 0.0
    %5189 = vmatprep.subr.mxu0 0.0
    %5190 = vmatpush2.msra.mxu0 0.0
    %5191 = vmatprep.mubr.f32.mxu0 0.0
    %v5192 = vand.u32 %v113, 4294901760
    %v5193 = vsub.f32 %v113, %v5192
    %v5194 = vand.u32 %v5193, 4294901760
    %5195 = vmatmul.mubr.f32.gmra.mxu0 %v5194
    %v5196 = vpop.f32.mrf.mxu0
    %v5197 = vadd.f32 %v5115, %v5196
    %v5198 = vpop.f32.mrf.mxu0
    %5199 = vmatprep.mubr.f32.mxu0 0.0
    %v5200 = vand.u32 %v116, 4294901760
    %v5201 = vsub.f32 %v116, %v5200
    %v5202 = vand.u32 %v5201, 4294901760
    %5203 = vmatmul.mubr.f32.gmra.mxu0 %v5202
    %v5204 = vpop.f32.mrf.mxu0
    %v5205 = vadd.f32 %v5122, %v5204
    %v5206 = vpop.f32.mrf.mxu0
    %5207 = vdwg.mxu0
    %5208 = vmatprep.subr.mxu0 0.0
    %5209 = vmatpush1.msra.mxu0 0.0
    %5210 = vmatprep.subr.mxu0 0.0
    %5211 = vmatpush1.msra.mxu0 0.0
    %5212 = vmatprep.subr.mxu0 0.0
    %5213 = vmatpush1.msra.mxu0 0.0
    %5214 = vmatprep.subr.mxu0 0.0
    %5215 = vmatpush1.msra.mxu0 0.0
    %5216 = vmatprep.subr.mxu0 0.0
    %5217 = vmatpush1.msra.mxu0 0.0
    %5218 = vmatprep.subr.mxu0 0.0
    %5219 = vmatpush1.msra.mxu0 0.0
    %5220 = vmatprep.subr.mxu0 0.0
    %5221 = vmatpush1.msra.mxu0 0.0
    %5222 = vmatprep.subr.mxu0 0.0
    %5223 = vmatpush1.msra.mxu0 0.0
    %5224 = vmatprep.subr.mxu0 0.0
    %5225 = vmatpush1.msra.mxu0 0.0
    %5226 = vmatprep.subr.mxu0 0.0
    %5227 = vmatpush1.msra.mxu0 0.0
    %5228 = vmatprep.subr.mxu0 0.0
    %5229 = vmatpush1.msra.mxu0 0.0
    %5230 = vmatprep.subr.mxu0 0.0
    %5231 = vmatpush1.msra.mxu0 0.0
    %5232 = vmatprep.subr.mxu0 0.0
    %5233 = vmatpush1.msra.mxu0 0.0
    %5234 = vmatprep.subr.mxu0 0.0
    %5235 = vmatpush1.msra.mxu0 0.0
    %5236 = vmatprep.subr.mxu0 0.0
    %v5237 = vand.u32 %v4867, 4294901760
    %v5238 = vsub.f32 %v4867, %v5237
    %v5239 = vand.u32 %v5238, 4294901760
    %5240 = vmatpush1.msra.mxu0 %v5239
    %5241 = vmatprep.subr.mxu0 0.0
    %v5242 = vand.u32 %v4866, 4294901760
    %v5243 = vsub.f32 %v4866, %v5242
    %v5244 = vand.u32 %v5243, 4294901760
    %5245 = vmatpush1.msra.mxu0 %v5244
    %5246 = vmatprep.subr.mxu0 0.0
    %5247 = vmatpush2.msra.mxu0 0.0
    %5248 = vmatprep.subr.mxu0 0.0
    %5249 = vmatpush2.msra.mxu0 0.0
    %5250 = vmatprep.subr.mxu0 0.0
    %5251 = vmatpush2.msra.mxu0 0.0
    %5252 = vmatprep.subr.mxu0 0.0
    %5253 = vmatpush2.msra.mxu0 0.0
    %5254 = vmatprep.subr.mxu0 0.0
    %5255 = vmatpush2.msra.mxu0 0.0
    %5256 = vmatprep.subr.mxu0 0.0
    %5257 = vmatpush2.msra.mxu0 0.0
    %5258 = vmatprep.subr.mxu0 0.0
    %5259 = vmatpush2.msra.mxu0 0.0
    %5260 = vmatprep.subr.mxu0 0.0
    %5261 = vmatpush2.msra.mxu0 0.0
    %5262 = vmatprep.subr.mxu0 0.0
    %5263 = vmatpush2.msra.mxu0 0.0
    %5264 = vmatprep.subr.mxu0 0.0
    %5265 = vmatpush2.msra.mxu0 0.0
    %5266 = vmatprep.subr.mxu0 0.0
    %5267 = vmatpush2.msra.mxu0 0.0
    %5268 = vmatprep.subr.mxu0 0.0
    %5269 = vmatpush2.msra.mxu0 0.0
    %5270 = vmatprep.subr.mxu0 0.0
    %5271 = vmatpush2.msra.mxu0 0.0
    %5272 = vmatprep.subr.mxu0 0.0
    %5273 = vmatpush2.msra.mxu0 0.0
    %5274 = vmatprep.subr.mxu0 0.0
    %5275 = vmatpush2.msra.mxu0 0.0
    %5276 = vmatprep.subr.mxu0 0.0
    %5277 = vmatpush2.msra.mxu0 0.0
    %5278 = vmatprep.mubr.f32.mxu0 0.0
    %v5279 = vand.u32 %v113, 4294901760
    %5280 = vmatmul.mubr.f32.gmra.mxu0 %v5279
    %v5281 = vpop.f32.mrf.mxu0
    %v5282 = vadd.f32 %v5197, %v5281
    %v5283 = vpop.f32.mrf.mxu0
    %5284 = vmatprep.mubr.f32.mxu0 0.0
    %v5285 = vand.u32 %v116, 4294901760
    %5286 = vmatmul.mubr.f32.gmra.mxu0 %v5285
    %v5287 = vpop.f32.mrf.mxu0
    %v5288 = vadd.f32 %v5205, %v5287
    %v5289 = vpop.f32.mrf.mxu0
    %5290 = vdwg.mxu0
    %5291 = vmatprep.subr.mxu0 0.0
    %5292 = vmatpush1.msra.mxu0 0.0
    %5293 = vmatprep.subr.mxu0 0.0
    %5294 = vmatpush1.msra.mxu0 0.0
    %5295 = vmatprep.subr.mxu0 0.0
    %5296 = vmatpush1.msra.mxu0 0.0
    %5297 = vmatprep.subr.mxu0 0.0
    %5298 = vmatpush1.msra.mxu0 0.0
    %5299 = vmatprep.subr.mxu0 0.0
    %5300 = vmatpush1.msra.mxu0 0.0
    %5301 = vmatprep.subr.mxu0 0.0
    %5302 = vmatpush1.msra.mxu0 0.0
    %5303 = vmatprep.subr.mxu0 0.0
    %5304 = vmatpush1.msra.mxu0 0.0
    %5305 = vmatprep.subr.mxu0 0.0
    %5306 = vmatpush1.msra.mxu0 0.0
    %5307 = vmatprep.subr.mxu0 0.0
    %5308 = vmatpush1.msra.mxu0 0.0
    %5309 = vmatprep.subr.mxu0 0.0
    %5310 = vmatpush1.msra.mxu0 0.0
    %5311 = vmatprep.subr.mxu0 0.0
    %5312 = vmatpush1.msra.mxu0 0.0
    %5313 = vmatprep.subr.mxu0 0.0
    %5314 = vmatpush1.msra.mxu0 0.0
    %5315 = vmatprep.subr.mxu0 0.0
    %5316 = vmatpush1.msra.mxu0 0.0
    %5317 = vmatprep.subr.mxu0 0.0
    %5318 = vmatpush1.msra.mxu0 0.0
    %5319 = vmatprep.subr.mxu0 0.0
    %v5320 = vand.u32 %v4867, 4294901760
    %5321 = vmatpush1.msra.mxu0 %v5320
    %5322 = vmatprep.subr.mxu0 0.0
    %v5323 = vand.u32 %v4866, 4294901760
    %5324 = vmatpush1.msra.mxu0 %v5323
    %5325 = vmatprep.subr.mxu0 0.0
    %5326 = vmatpush2.msra.mxu0 0.0
    %5327 = vmatprep.subr.mxu0 0.0
    %5328 = vmatpush2.msra.mxu0 0.0
    %5329 = vmatprep.subr.mxu0 0.0
    %5330 = vmatpush2.msra.mxu0 0.0
    %5331 = vmatprep.subr.mxu0 0.0
    %5332 = vmatpush2.msra.mxu0 0.0
    %5333 = vmatprep.subr.mxu0 0.0
    %5334 = vmatpush2.msra.mxu0 0.0
    %5335 = vmatprep.subr.mxu0 0.0
    %5336 = vmatpush2.msra.mxu0 0.0
    %5337 = vmatprep.subr.mxu0 0.0
    %5338 = vmatpush2.msra.mxu0 0.0
    %5339 = vmatprep.subr.mxu0 0.0
    %5340 = vmatpush2.msra.mxu0 0.0
    %5341 = vmatprep.subr.mxu0 0.0
    %5342 = vmatpush2.msra.mxu0 0.0
    %5343 = vmatprep.subr.mxu0 0.0
    %5344 = vmatpush2.msra.mxu0 0.0
    %5345 = vmatprep.subr.mxu0 0.0
    %5346 = vmatpush2.msra.mxu0 0.0
    %5347 = vmatprep.subr.mxu0 0.0
    %5348 = vmatpush2.msra.mxu0 0.0
    %5349 = vmatprep.subr.mxu0 0.0
    %5350 = vmatpush2.msra.mxu0 0.0
    %5351 = vmatprep.subr.mxu0 0.0
    %5352 = vmatpush2.msra.mxu0 0.0
    %5353 = vmatprep.subr.mxu0 0.0
    %5354 = vmatpush2.msra.mxu0 0.0
    %5355 = vmatprep.subr.mxu0 0.0
    %5356 = vmatpush2.msra.mxu0 0.0
    %5357 = vmatprep.mubr.f32.mxu0 0.0
    %v5358 = vand.u32 %v113, 4294901760
    %5359 = vmatmul.mubr.f32.gmra.mxu0 %v5358
    %v5360 = vpop.f32.mrf.mxu0
    %v5361 = vadd.f32 %v5282, %v5360
    %v5362 = vpop.f32.mrf.mxu0
    %5363 = vmatprep.mubr.f32.mxu0 0.0
    %v5364 = vand.u32 %v116, 4294901760
    %5365 = vmatmul.mubr.f32.gmra.mxu0 %v5364
    %v5366 = vpop.f32.mrf.mxu0
    %v5367 = vadd.f32 %v5288, %v5366
    %v5368 = vpop.f32.mrf.mxu0
    %5369 = vdwg.mxu0
    %5370 = vmatprep.subr.mxu0 0.0
    %v5371 = vand.u32 %v110, 4294901760
    %5372 = vmatpush1.msra.mxu0 %v5371
    %5373 = vmatprep.subr.mxu0 0.0
    %v5374 = vand.u32 %v109, 4294901760
    %5375 = vmatpush1.msra.mxu0 %v5374
    %5376 = vmatprep.subr.mxu0 0.0
    %v5377 = vand.u32 %v108, 4294901760
    %5378 = vmatpush1.msra.mxu0 %v5377
    %5379 = vmatprep.subr.mxu0 0.0
    %v5380 = vand.u32 %v107, 4294901760
    %5381 = vmatpush1.msra.mxu0 %v5380
    %5382 = vmatprep.subr.mxu0 0.0
    %v5383 = vand.u32 %v106, 4294901760
    %5384 = vmatpush1.msra.mxu0 %v5383
    %5385 = vmatprep.subr.mxu0 0.0
    %v5386 = vand.u32 %v105, 4294901760
    %5387 = vmatpush1.msra.mxu0 %v5386
    %5388 = vmatprep.subr.mxu0 0.0
    %v5389 = vand.u32 %v104, 4294901760
    %5390 = vmatpush1.msra.mxu0 %v5389
    %5391 = vmatprep.subr.mxu0 0.0
    %v5392 = vand.u32 %v103, 4294901760
    %5393 = vmatpush1.msra.mxu0 %v5392
    %5394 = vmatprep.subr.mxu0 0.0
    %v5395 = vand.u32 %v102, 4294901760
    %5396 = vmatpush1.msra.mxu0 %v5395
    %5397 = vmatprep.subr.mxu0 0.0
    %v5398 = vand.u32 %v101, 4294901760
    %5399 = vmatpush1.msra.mxu0 %v5398
    %5400 = vmatprep.subr.mxu0 0.0
    %v5401 = vand.u32 %v100, 4294901760
    %5402 = vmatpush1.msra.mxu0 %v5401
    %5403 = vmatprep.subr.mxu0 0.0
    %v5404 = vand.u32 %v99, 4294901760
    %5405 = vmatpush1.msra.mxu0 %v5404
    %5406 = vmatprep.subr.mxu0 0.0
    %v5407 = vand.u32 %v98, 4294901760
    %5408 = vmatpush1.msra.mxu0 %v5407
    %5409 = vmatprep.subr.mxu0 0.0
    %v5410 = vand.u32 %v97, 4294901760
    %5411 = vmatpush1.msra.mxu0 %v5410
    %5412 = vmatprep.subr.mxu0 0.0
    %v5413 = vand.u32 %v96, 4294901760
    %5414 = vmatpush1.msra.mxu0 %v5413
    %5415 = vmatprep.subr.mxu0 0.0
    %v5416 = vand.u32 %v95, 4294901760
    %5417 = vmatpush1.msra.mxu0 %v5416
    %5418 = vmatprep.subr.mxu0 0.0
    %5419 = vmatpush2.msra.mxu0 0.0
    %5420 = vmatprep.subr.mxu0 0.0
    %5421 = vmatpush2.msra.mxu0 0.0
    %5422 = vmatprep.subr.mxu0 0.0
    %5423 = vmatpush2.msra.mxu0 0.0
    %5424 = vmatprep.subr.mxu0 0.0
    %5425 = vmatpush2.msra.mxu0 0.0
    %5426 = vmatprep.subr.mxu0 0.0
    %5427 = vmatpush2.msra.mxu0 0.0
    %5428 = vmatprep.subr.mxu0 0.0
    %5429 = vmatpush2.msra.mxu0 0.0
    %5430 = vmatprep.subr.mxu0 0.0
    %5431 = vmatpush2.msra.mxu0 0.0
    %5432 = vmatprep.subr.mxu0 0.0
    %5433 = vmatpush2.msra.mxu0 0.0
    %5434 = vmatprep.subr.mxu0 0.0
    %5435 = vmatpush2.msra.mxu0 0.0
    %5436 = vmatprep.subr.mxu0 0.0
    %5437 = vmatpush2.msra.mxu0 0.0
    %5438 = vmatprep.subr.mxu0 0.0
    %5439 = vmatpush2.msra.mxu0 0.0
    %5440 = vmatprep.subr.mxu0 0.0
    %5441 = vmatpush2.msra.mxu0 0.0
    %5442 = vmatprep.subr.mxu0 0.0
    %5443 = vmatpush2.msra.mxu0 0.0
    %5444 = vmatprep.subr.mxu0 0.0
    %5445 = vmatpush2.msra.mxu0 0.0
    %5446 = vmatprep.subr.mxu0 0.0
    %5447 = vmatpush2.msra.mxu0 0.0
    %5448 = vmatprep.subr.mxu0 0.0
    %5449 = vmatpush2.msra.mxu0 0.0
    %5450 = vmatprep.mubr.f32.mxu0 0.0
    %v5451 = vand.u32 %v5361, 4294901760
    %v5452 = vsub.f32 %v5361, %v5451
    %v5453 = vand.u32 %v5452, 4294901760
    %v5454 = vsub.f32 %v5452, %v5453
    %v5455 = vand.u32 %v5454, 4294901760
    %5456 = vmatmul.mubr.f32.gmra.mxu0 %v5455
    %v5457 = vpop.f32.mrf.mxu0
    %v5458 = vadd.f32 0.0, %v5457
    %v5459 = vpop.f32.mrf.mxu0
    %5460 = vmatprep.mubr.f32.mxu0 0.0
    %v5461 = vand.u32 %v5367, 4294901760
    %v5462 = vsub.f32 %v5367, %v5461
    %v5463 = vand.u32 %v5462, 4294901760
    %v5464 = vsub.f32 %v5462, %v5463
    %v5465 = vand.u32 %v5464, 4294901760
    %5466 = vmatmul.mubr.f32.gmra.mxu0 %v5465
    %v5467 = vpop.f32.mrf.mxu0
    %v5468 = vadd.f32 0.0, %v5467
    %v5469 = vpop.f32.mrf.mxu0
    %5470 = vdwg.mxu0
    %5471 = vmatprep.subr.mxu0 0.0
    %v5472 = vand.u32 %v110, 4294901760
    %v5473 = vsub.f32 %v110, %v5472
    %v5474 = vand.u32 %v5473, 4294901760
    %v5475 = vsub.f32 %v5473, %v5474
    %v5476 = vand.u32 %v5475, 4294901760
    %5477 = vmatpush1.msra.mxu0 %v5476
    %5478 = vmatprep.subr.mxu0 0.0
    %v5479 = vand.u32 %v109, 4294901760
    %v5480 = vsub.f32 %v109, %v5479
    %v5481 = vand.u32 %v5480, 4294901760
    %v5482 = vsub.f32 %v5480, %v5481
    %v5483 = vand.u32 %v5482, 4294901760
    %5484 = vmatpush1.msra.mxu0 %v5483
    %5485 = vmatprep.subr.mxu0 0.0
    %v5486 = vand.u32 %v108, 4294901760
    %v5487 = vsub.f32 %v108, %v5486
    %v5488 = vand.u32 %v5487, 4294901760
    %v5489 = vsub.f32 %v5487, %v5488
    %v5490 = vand.u32 %v5489, 4294901760
    %5491 = vmatpush1.msra.mxu0 %v5490
    %5492 = vmatprep.subr.mxu0 0.0
    %v5493 = vand.u32 %v107, 4294901760
    %v5494 = vsub.f32 %v107, %v5493
    %v5495 = vand.u32 %v5494, 4294901760
    %v5496 = vsub.f32 %v5494, %v5495
    %v5497 = vand.u32 %v5496, 4294901760
    %5498 = vmatpush1.msra.mxu0 %v5497
    %5499 = vmatprep.subr.mxu0 0.0
    %v5500 = vand.u32 %v106, 4294901760
    %v5501 = vsub.f32 %v106, %v5500
    %v5502 = vand.u32 %v5501, 4294901760
    %v5503 = vsub.f32 %v5501, %v5502
    %v5504 = vand.u32 %v5503, 4294901760
    %5505 = vmatpush1.msra.mxu0 %v5504
    %5506 = vmatprep.subr.mxu0 0.0
    %v5507 = vand.u32 %v105, 4294901760
    %v5508 = vsub.f32 %v105, %v5507
    %v5509 = vand.u32 %v5508, 4294901760
    %v5510 = vsub.f32 %v5508, %v5509
    %v5511 = vand.u32 %v5510, 4294901760
    %5512 = vmatpush1.msra.mxu0 %v5511
    %5513 = vmatprep.subr.mxu0 0.0
    %v5514 = vand.u32 %v104, 4294901760
    %v5515 = vsub.f32 %v104, %v5514
    %v5516 = vand.u32 %v5515, 4294901760
    %v5517 = vsub.f32 %v5515, %v5516
    %v5518 = vand.u32 %v5517, 4294901760
    %5519 = vmatpush1.msra.mxu0 %v5518
    %5520 = vmatprep.subr.mxu0 0.0
    %v5521 = vand.u32 %v103, 4294901760
    %v5522 = vsub.f32 %v103, %v5521
    %v5523 = vand.u32 %v5522, 4294901760
    %v5524 = vsub.f32 %v5522, %v5523
    %v5525 = vand.u32 %v5524, 4294901760
    %5526 = vmatpush1.msra.mxu0 %v5525
    %5527 = vmatprep.subr.mxu0 0.0
    %v5528 = vand.u32 %v102, 4294901760
    %v5529 = vsub.f32 %v102, %v5528
    %v5530 = vand.u32 %v5529, 4294901760
    %v5531 = vsub.f32 %v5529, %v5530
    %v5532 = vand.u32 %v5531, 4294901760
    %5533 = vmatpush1.msra.mxu0 %v5532
    %5534 = vmatprep.subr.mxu0 0.0
    %v5535 = vand.u32 %v101, 4294901760
    %v5536 = vsub.f32 %v101, %v5535
    %v5537 = vand.u32 %v5536, 4294901760
    %v5538 = vsub.f32 %v5536, %v5537
    %v5539 = vand.u32 %v5538, 4294901760
    %5540 = vmatpush1.msra.mxu0 %v5539
    %5541 = vmatprep.subr.mxu0 0.0
    %v5542 = vand.u32 %v100, 4294901760
    %v5543 = vsub.f32 %v100, %v5542
    %v5544 = vand.u32 %v5543, 4294901760
    %v5545 = vsub.f32 %v5543, %v5544
    %v5546 = vand.u32 %v5545, 4294901760
    %5547 = vmatpush1.msra.mxu0 %v5546
    %5548 = vmatprep.subr.mxu0 0.0
    %v5549 = vand.u32 %v99, 4294901760
    %v5550 = vsub.f32 %v99, %v5549
    %v5551 = vand.u32 %v5550, 4294901760
    %v5552 = vsub.f32 %v5550, %v5551
    %v5553 = vand.u32 %v5552, 4294901760
    %5554 = vmatpush1.msra.mxu0 %v5553
    %5555 = vmatprep.subr.mxu0 0.0
    %v5556 = vand.u32 %v98, 4294901760
    %v5557 = vsub.f32 %v98, %v5556
    %v5558 = vand.u32 %v5557, 4294901760
    %v5559 = vsub.f32 %v5557, %v5558
    %v5560 = vand.u32 %v5559, 4294901760
    %5561 = vmatpush1.msra.mxu0 %v5560
    %5562 = vmatprep.subr.mxu0 0.0
    %v5563 = vand.u32 %v97, 4294901760
    %v5564 = vsub.f32 %v97, %v5563
    %v5565 = vand.u32 %v5564, 4294901760
    %v5566 = vsub.f32 %v5564, %v5565
    %v5567 = vand.u32 %v5566, 4294901760
    %5568 = vmatpush1.msra.mxu0 %v5567
    %5569 = vmatprep.subr.mxu0 0.0
    %v5570 = vand.u32 %v96, 4294901760
    %v5571 = vsub.f32 %v96, %v5570
    %v5572 = vand.u32 %v5571, 4294901760
    %v5573 = vsub.f32 %v5571, %v5572
    %v5574 = vand.u32 %v5573, 4294901760
    %5575 = vmatpush1.msra.mxu0 %v5574
    %5576 = vmatprep.subr.mxu0 0.0
    %v5577 = vand.u32 %v95, 4294901760
    %v5578 = vsub.f32 %v95, %v5577
    %v5579 = vand.u32 %v5578, 4294901760
    %v5580 = vsub.f32 %v5578, %v5579
    %v5581 = vand.u32 %v5580, 4294901760
    %5582 = vmatpush1.msra.mxu0 %v5581
    %5583 = vmatprep.subr.mxu0 0.0
    %5584 = vmatpush2.msra.mxu0 0.0
    %5585 = vmatprep.subr.mxu0 0.0
    %5586 = vmatpush2.msra.mxu0 0.0
    %5587 = vmatprep.subr.mxu0 0.0
    %5588 = vmatpush2.msra.mxu0 0.0
    %5589 = vmatprep.subr.mxu0 0.0
    %5590 = vmatpush2.msra.mxu0 0.0
    %5591 = vmatprep.subr.mxu0 0.0
    %5592 = vmatpush2.msra.mxu0 0.0
    %5593 = vmatprep.subr.mxu0 0.0
    %5594 = vmatpush2.msra.mxu0 0.0
    %5595 = vmatprep.subr.mxu0 0.0
    %5596 = vmatpush2.msra.mxu0 0.0
    %5597 = vmatprep.subr.mxu0 0.0
    %5598 = vmatpush2.msra.mxu0 0.0
    %5599 = vmatprep.subr.mxu0 0.0
    %5600 = vmatpush2.msra.mxu0 0.0
    %5601 = vmatprep.subr.mxu0 0.0
    %5602 = vmatpush2.msra.mxu0 0.0
    %5603 = vmatprep.subr.mxu0 0.0
    %5604 = vmatpush2.msra.mxu0 0.0
    %5605 = vmatprep.subr.mxu0 0.0
    %5606 = vmatpush2.msra.mxu0 0.0
    %5607 = vmatprep.subr.mxu0 0.0
    %5608 = vmatpush2.msra.mxu0 0.0
    %5609 = vmatprep.subr.mxu0 0.0
    %5610 = vmatpush2.msra.mxu0 0.0
    %5611 = vmatprep.subr.mxu0 0.0
    %5612 = vmatpush2.msra.mxu0 0.0
    %5613 = vmatprep.subr.mxu0 0.0
    %5614 = vmatpush2.msra.mxu0 0.0
    %5615 = vmatprep.mubr.f32.mxu0 0.0
    %v5616 = vand.u32 %v5361, 4294901760
    %5617 = vmatmul.mubr.f32.gmra.mxu0 %v5616
    %v5618 = vpop.f32.mrf.mxu0
    %v5619 = vadd.f32 %v5458, %v5618
    %v5620 = vpop.f32.mrf.mxu0
    %5621 = vmatprep.mubr.f32.mxu0 0.0
    %v5622 = vand.u32 %v5367, 4294901760
    %5623 = vmatmul.mubr.f32.gmra.mxu0 %v5622
    %v5624 = vpop.f32.mrf.mxu0
    %v5625 = vadd.f32 %v5468, %v5624
    %v5626 = vpop.f32.mrf.mxu0
    %5627 = vdwg.mxu0
    %5628 = vmatprep.subr.mxu0 0.0
    %v5629 = vand.u32 %v110, 4294901760
    %v5630 = vsub.f32 %v110, %v5629
    %5631 = vmatpush1.msra.mxu0 %v5630
    %5632 = vmatprep.subr.mxu0 0.0
    %v5633 = vand.u32 %v109, 4294901760
    %v5634 = vsub.f32 %v109, %v5633
    %5635 = vmatpush1.msra.mxu0 %v5634
    %5636 = vmatprep.subr.mxu0 0.0
    %v5637 = vand.u32 %v108, 4294901760
    %v5638 = vsub.f32 %v108, %v5637
    %5639 = vmatpush1.msra.mxu0 %v5638
    %5640 = vmatprep.subr.mxu0 0.0
    %v5641 = vand.u32 %v107, 4294901760
    %v5642 = vsub.f32 %v107, %v5641
    %5643 = vmatpush1.msra.mxu0 %v5642
    %5644 = vmatprep.subr.mxu0 0.0
    %v5645 = vand.u32 %v106, 4294901760
    %v5646 = vsub.f32 %v106, %v5645
    %5647 = vmatpush1.msra.mxu0 %v5646
    %5648 = vmatprep.subr.mxu0 0.0
    %v5649 = vand.u32 %v105, 4294901760
    %v5650 = vsub.f32 %v105, %v5649
    %5651 = vmatpush1.msra.mxu0 %v5650
    %5652 = vmatprep.subr.mxu0 0.0
    %v5653 = vand.u32 %v104, 4294901760
    %v5654 = vsub.f32 %v104, %v5653
    %5655 = vmatpush1.msra.mxu0 %v5654
    %5656 = vmatprep.subr.mxu0 0.0
    %v5657 = vand.u32 %v103, 4294901760
    %v5658 = vsub.f32 %v103, %v5657
    %5659 = vmatpush1.msra.mxu0 %v5658
    %5660 = vmatprep.subr.mxu0 0.0
    %v5661 = vand.u32 %v102, 4294901760
    %v5662 = vsub.f32 %v102, %v5661
    %5663 = vmatpush1.msra.mxu0 %v5662
    %5664 = vmatprep.subr.mxu0 0.0
    %v5665 = vand.u32 %v101, 4294901760
    %v5666 = vsub.f32 %v101, %v5665
    %5667 = vmatpush1.msra.mxu0 %v5666
    %5668 = vmatprep.subr.mxu0 0.0
    %v5669 = vand.u32 %v100, 4294901760
    %v5670 = vsub.f32 %v100, %v5669
    %5671 = vmatpush1.msra.mxu0 %v5670
    %5672 = vmatprep.subr.mxu0 0.0
    %v5673 = vand.u32 %v99, 4294901760
    %v5674 = vsub.f32 %v99, %v5673
    %5675 = vmatpush1.msra.mxu0 %v5674
    %5676 = vmatprep.subr.mxu0 0.0
    %v5677 = vand.u32 %v98, 4294901760
    %v5678 = vsub.f32 %v98, %v5677
    %5679 = vmatpush1.msra.mxu0 %v5678
    %5680 = vmatprep.subr.mxu0 0.0
    %v5681 = vand.u32 %v97, 4294901760
    %v5682 = vsub.f32 %v97, %v5681
    %5683 = vmatpush1.msra.mxu0 %v5682
    %5684 = vmatprep.subr.mxu0 0.0
    %v5685 = vand.u32 %v96, 4294901760
    %v5686 = vsub.f32 %v96, %v5685
    %5687 = vmatpush1.msra.mxu0 %v5686
    %5688 = vmatprep.subr.mxu0 0.0
    %v5689 = vand.u32 %v95, 4294901760
    %v5690 = vsub.f32 %v95, %v5689
    %5691 = vmatpush1.msra.mxu0 %v5690
    %5692 = vmatprep.subr.mxu0 0.0
    %5693 = vmatpush2.msra.mxu0 0.0
    %5694 = vmatprep.subr.mxu0 0.0
    %5695 = vmatpush2.msra.mxu0 0.0
    %5696 = vmatprep.subr.mxu0 0.0
    %5697 = vmatpush2.msra.mxu0 0.0
    %5698 = vmatprep.subr.mxu0 0.0
    %5699 = vmatpush2.msra.mxu0 0.0
    %5700 = vmatprep.subr.mxu0 0.0
    %5701 = vmatpush2.msra.mxu0 0.0
    %5702 = vmatprep.subr.mxu0 0.0
    %5703 = vmatpush2.msra.mxu0 0.0
    %5704 = vmatprep.subr.mxu0 0.0
    %5705 = vmatpush2.msra.mxu0 0.0
    %5706 = vmatprep.subr.mxu0 0.0
    %5707 = vmatpush2.msra.mxu0 0.0
    %5708 = vmatprep.subr.mxu0 0.0
    %5709 = vmatpush2.msra.mxu0 0.0
    %5710 = vmatprep.subr.mxu0 0.0
    %5711 = vmatpush2.msra.mxu0 0.0
    %5712 = vmatprep.subr.mxu0 0.0
    %5713 = vmatpush2.msra.mxu0 0.0
    %5714 = vmatprep.subr.mxu0 0.0
    %5715 = vmatpush2.msra.mxu0 0.0
    %5716 = vmatprep.subr.mxu0 0.0
    %5717 = vmatpush2.msra.mxu0 0.0
    %5718 = vmatprep.subr.mxu0 0.0
    %5719 = vmatpush2.msra.mxu0 0.0
    %5720 = vmatprep.subr.mxu0 0.0
    %5721 = vmatpush2.msra.mxu0 0.0
    %5722 = vmatprep.subr.mxu0 0.0
    %5723 = vmatpush2.msra.mxu0 0.0
    %5724 = vmatprep.mubr.f32.mxu0 0.0
    %v5725 = vand.u32 %v5361, 4294901760
    %v5726 = vsub.f32 %v5361, %v5725
    %5727 = vmatmul.mubr.f32.gmra.mxu0 %v5726
    %v5728 = vpop.f32.mrf.mxu0
    %v5729 = vadd.f32 %v5619, %v5728
    %v5730 = vpop.f32.mrf.mxu0
    %5731 = vmatprep.mubr.f32.mxu0 0.0
    %v5732 = vand.u32 %v5367, 4294901760
    %v5733 = vsub.f32 %v5367, %v5732
    %5734 = vmatmul.mubr.f32.gmra.mxu0 %v5733
    %v5735 = vpop.f32.mrf.mxu0
    %v5736 = vadd.f32 %v5625, %v5735
    %v5737 = vpop.f32.mrf.mxu0
    %5738 = vdwg.mxu0
    %5739 = vmatprep.subr.mxu0 0.0
    %v5740 = vand.u32 %v110, 4294901760
    %5741 = vmatpush1.msra.mxu0 %v5740
    %5742 = vmatprep.subr.mxu0 0.0
    %v5743 = vand.u32 %v109, 4294901760
    %5744 = vmatpush1.msra.mxu0 %v5743
    %5745 = vmatprep.subr.mxu0 0.0
    %v5746 = vand.u32 %v108, 4294901760
    %5747 = vmatpush1.msra.mxu0 %v5746
    %5748 = vmatprep.subr.mxu0 0.0
    %v5749 = vand.u32 %v107, 4294901760
    %5750 = vmatpush1.msra.mxu0 %v5749
    %5751 = vmatprep.subr.mxu0 0.0
    %v5752 = vand.u32 %v106, 4294901760
    %5753 = vmatpush1.msra.mxu0 %v5752
    %5754 = vmatprep.subr.mxu0 0.0
    %v5755 = vand.u32 %v105, 4294901760
    %5756 = vmatpush1.msra.mxu0 %v5755
    %5757 = vmatprep.subr.mxu0 0.0
    %v5758 = vand.u32 %v104, 4294901760
    %5759 = vmatpush1.msra.mxu0 %v5758
    %5760 = vmatprep.subr.mxu0 0.0
    %v5761 = vand.u32 %v103, 4294901760
    %5762 = vmatpush1.msra.mxu0 %v5761
    %5763 = vmatprep.subr.mxu0 0.0
    %v5764 = vand.u32 %v102, 4294901760
    %5765 = vmatpush1.msra.mxu0 %v5764
    %5766 = vmatprep.subr.mxu0 0.0
    %v5767 = vand.u32 %v101, 4294901760
    %5768 = vmatpush1.msra.mxu0 %v5767
    %5769 = vmatprep.subr.mxu0 0.0
    %v5770 = vand.u32 %v100, 4294901760
    %5771 = vmatpush1.msra.mxu0 %v5770
    %5772 = vmatprep.subr.mxu0 0.0
    %v5773 = vand.u32 %v99, 4294901760
    %5774 = vmatpush1.msra.mxu0 %v5773
    %5775 = vmatprep.subr.mxu0 0.0
    %v5776 = vand.u32 %v98, 4294901760
    %5777 = vmatpush1.msra.mxu0 %v5776
    %5778 = vmatprep.subr.mxu0 0.0
    %v5779 = vand.u32 %v97, 4294901760
    %5780 = vmatpush1.msra.mxu0 %v5779
    %5781 = vmatprep.subr.mxu0 0.0
    %v5782 = vand.u32 %v96, 4294901760
    %5783 = vmatpush1.msra.mxu0 %v5782
    %5784 = vmatprep.subr.mxu0 0.0
    %v5785 = vand.u32 %v95, 4294901760
    %5786 = vmatpush1.msra.mxu0 %v5785
    %5787 = vmatprep.subr.mxu0 0.0
    %5788 = vmatpush2.msra.mxu0 0.0
    %5789 = vmatprep.subr.mxu0 0.0
    %5790 = vmatpush2.msra.mxu0 0.0
    %5791 = vmatprep.subr.mxu0 0.0
    %5792 = vmatpush2.msra.mxu0 0.0
    %5793 = vmatprep.subr.mxu0 0.0
    %5794 = vmatpush2.msra.mxu0 0.0
    %5795 = vmatprep.subr.mxu0 0.0
    %5796 = vmatpush2.msra.mxu0 0.0
    %5797 = vmatprep.subr.mxu0 0.0
    %5798 = vmatpush2.msra.mxu0 0.0
    %5799 = vmatprep.subr.mxu0 0.0
    %5800 = vmatpush2.msra.mxu0 0.0
    %5801 = vmatprep.subr.mxu0 0.0
    %5802 = vmatpush2.msra.mxu0 0.0
    %5803 = vmatprep.subr.mxu0 0.0
    %5804 = vmatpush2.msra.mxu0 0.0
    %5805 = vmatprep.subr.mxu0 0.0
    %5806 = vmatpush2.msra.mxu0 0.0
    %5807 = vmatprep.subr.mxu0 0.0
    %5808 = vmatpush2.msra.mxu0 0.0
    %5809 = vmatprep.subr.mxu0 0.0
    %5810 = vmatpush2.msra.mxu0 0.0
    %5811 = vmatprep.subr.mxu0 0.0
    %5812 = vmatpush2.msra.mxu0 0.0
    %5813 = vmatprep.subr.mxu0 0.0
    %5814 = vmatpush2.msra.mxu0 0.0
    %5815 = vmatprep.subr.mxu0 0.0
    %5816 = vmatpush2.msra.mxu0 0.0
    %5817 = vmatprep.subr.mxu0 0.0
    %5818 = vmatpush2.msra.mxu0 0.0
    %5819 = vmatprep.mubr.f32.mxu0 0.0
    %v5820 = vand.u32 %v5361, 4294901760
    %v5821 = vsub.f32 %v5361, %v5820
    %v5822 = vand.u32 %v5821, 4294901760
    %5823 = vmatmul.mubr.f32.gmra.mxu0 %v5822
    %v5824 = vpop.f32.mrf.mxu0
    %v5825 = vadd.f32 %v5729, %v5824
    %v5826 = vpop.f32.mrf.mxu0
    %5827 = vmatprep.mubr.f32.mxu0 0.0
    %v5828 = vand.u32 %v5367, 4294901760
    %v5829 = vsub.f32 %v5367, %v5828
    %v5830 = vand.u32 %v5829, 4294901760
    %5831 = vmatmul.mubr.f32.gmra.mxu0 %v5830
    %v5832 = vpop.f32.mrf.mxu0
    %v5833 = vadd.f32 %v5736, %v5832
    %v5834 = vpop.f32.mrf.mxu0
    %5835 = vdwg.mxu0
    %5836 = vmatprep.subr.mxu0 0.0
    %v5837 = vand.u32 %v110, 4294901760
    %v5838 = vsub.f32 %v110, %v5837
    %v5839 = vand.u32 %v5838, 4294901760
    %5840 = vmatpush1.msra.mxu0 %v5839
    %5841 = vmatprep.subr.mxu0 0.0
    %v5842 = vand.u32 %v109, 4294901760
    %v5843 = vsub.f32 %v109, %v5842
    %v5844 = vand.u32 %v5843, 4294901760
    %5845 = vmatpush1.msra.mxu0 %v5844
    %5846 = vmatprep.subr.mxu0 0.0
    %v5847 = vand.u32 %v108, 4294901760
    %v5848 = vsub.f32 %v108, %v5847
    %v5849 = vand.u32 %v5848, 4294901760
    %5850 = vmatpush1.msra.mxu0 %v5849
    %5851 = vmatprep.subr.mxu0 0.0
    %v5852 = vand.u32 %v107, 4294901760
    %v5853 = vsub.f32 %v107, %v5852
    %v5854 = vand.u32 %v5853, 4294901760
    %5855 = vmatpush1.msra.mxu0 %v5854
    %5856 = vmatprep.subr.mxu0 0.0
    %v5857 = vand.u32 %v106, 4294901760
    %v5858 = vsub.f32 %v106, %v5857
    %v5859 = vand.u32 %v5858, 4294901760
    %5860 = vmatpush1.msra.mxu0 %v5859
    %5861 = vmatprep.subr.mxu0 0.0
    %v5862 = vand.u32 %v105, 4294901760
    %v5863 = vsub.f32 %v105, %v5862
    %v5864 = vand.u32 %v5863, 4294901760
    %5865 = vmatpush1.msra.mxu0 %v5864
    %5866 = vmatprep.subr.mxu0 0.0
    %v5867 = vand.u32 %v104, 4294901760
    %v5868 = vsub.f32 %v104, %v5867
    %v5869 = vand.u32 %v5868, 4294901760
    %5870 = vmatpush1.msra.mxu0 %v5869
    %5871 = vmatprep.subr.mxu0 0.0
    %v5872 = vand.u32 %v103, 4294901760
    %v5873 = vsub.f32 %v103, %v5872
    %v5874 = vand.u32 %v5873, 4294901760
    %5875 = vmatpush1.msra.mxu0 %v5874
    %5876 = vmatprep.subr.mxu0 0.0
    %v5877 = vand.u32 %v102, 4294901760
    %v5878 = vsub.f32 %v102, %v5877
    %v5879 = vand.u32 %v5878, 4294901760
    %5880 = vmatpush1.msra.mxu0 %v5879
    %5881 = vmatprep.subr.mxu0 0.0
    %v5882 = vand.u32 %v101, 4294901760
    %v5883 = vsub.f32 %v101, %v5882
    %v5884 = vand.u32 %v5883, 4294901760
    %5885 = vmatpush1.msra.mxu0 %v5884
    %5886 = vmatprep.subr.mxu0 0.0
    %v5887 = vand.u32 %v100, 4294901760
    %v5888 = vsub.f32 %v100, %v5887
    %v5889 = vand.u32 %v5888, 4294901760
    %5890 = vmatpush1.msra.mxu0 %v5889
    %5891 = vmatprep.subr.mxu0 0.0
    %v5892 = vand.u32 %v99, 4294901760
    %v5893 = vsub.f32 %v99, %v5892
    %v5894 = vand.u32 %v5893, 4294901760
    %5895 = vmatpush1.msra.mxu0 %v5894
    %5896 = vmatprep.subr.mxu0 0.0
    %v5897 = vand.u32 %v98, 4294901760
    %v5898 = vsub.f32 %v98, %v5897
    %v5899 = vand.u32 %v5898, 4294901760
    %5900 = vmatpush1.msra.mxu0 %v5899
    %5901 = vmatprep.subr.mxu0 0.0
    %v5902 = vand.u32 %v97, 4294901760
    %v5903 = vsub.f32 %v97, %v5902
    %v5904 = vand.u32 %v5903, 4294901760
    %5905 = vmatpush1.msra.mxu0 %v5904
    %5906 = vmatprep.subr.mxu0 0.0
    %v5907 = vand.u32 %v96, 4294901760
    %v5908 = vsub.f32 %v96, %v5907
    %v5909 = vand.u32 %v5908, 4294901760
    %5910 = vmatpush1.msra.mxu0 %v5909
    %5911 = vmatprep.subr.mxu0 0.0
    %v5912 = vand.u32 %v95, 4294901760
    %v5913 = vsub.f32 %v95, %v5912
    %v5914 = vand.u32 %v5913, 4294901760
    %5915 = vmatpush1.msra.mxu0 %v5914
    %5916 = vmatprep.subr.mxu0 0.0
    %5917 = vmatpush2.msra.mxu0 0.0
    %5918 = vmatprep.subr.mxu0 0.0
    %5919 = vmatpush2.msra.mxu0 0.0
    %5920 = vmatprep.subr.mxu0 0.0
    %5921 = vmatpush2.msra.mxu0 0.0
    %5922 = vmatprep.subr.mxu0 0.0
    %5923 = vmatpush2.msra.mxu0 0.0
    %5924 = vmatprep.subr.mxu0 0.0
    %5925 = vmatpush2.msra.mxu0 0.0
    %5926 = vmatprep.subr.mxu0 0.0
    %5927 = vmatpush2.msra.mxu0 0.0
    %5928 = vmatprep.subr.mxu0 0.0
    %5929 = vmatpush2.msra.mxu0 0.0
    %5930 = vmatprep.subr.mxu0 0.0
    %5931 = vmatpush2.msra.mxu0 0.0
    %5932 = vmatprep.subr.mxu0 0.0
    %5933 = vmatpush2.msra.mxu0 0.0
    %5934 = vmatprep.subr.mxu0 0.0
    %5935 = vmatpush2.msra.mxu0 0.0
    %5936 = vmatprep.subr.mxu0 0.0
    %5937 = vmatpush2.msra.mxu0 0.0
    %5938 = vmatprep.subr.mxu0 0.0
    %5939 = vmatpush2.msra.mxu0 0.0
    %5940 = vmatprep.subr.mxu0 0.0
    %5941 = vmatpush2.msra.mxu0 0.0
    %5942 = vmatprep.subr.mxu0 0.0
    %5943 = vmatpush2.msra.mxu0 0.0
    %5944 = vmatprep.subr.mxu0 0.0
    %5945 = vmatpush2.msra.mxu0 0.0
    %5946 = vmatprep.subr.mxu0 0.0
    %5947 = vmatpush2.msra.mxu0 0.0
    %5948 = vmatprep.mubr.f32.mxu0 0.0
    %v5949 = vand.u32 %v5361, 4294901760
    %5950 = vmatmul.mubr.f32.gmra.mxu0 %v5949
    %v5951 = vpop.f32.mrf.mxu0
    %v5952 = vadd.f32 %v5825, %v5951
    %v5953 = vpop.f32.mrf.mxu0
    %5954 = vmatprep.mubr.f32.mxu0 0.0
    %v5955 = vand.u32 %v5367, 4294901760
    %5956 = vmatmul.mubr.f32.gmra.mxu0 %v5955
    %v5957 = vpop.f32.mrf.mxu0
    %v5958 = vadd.f32 %v5833, %v5957
    %v5959 = vpop.f32.mrf.mxu0
    %5960 = vdwg.mxu0
    %5961 = vmatprep.subr.mxu0 0.0
    %v5962 = vand.u32 %v110, 4294901760
    %5963 = vmatpush1.msra.mxu0 %v5962
    %5964 = vmatprep.subr.mxu0 0.0
    %v5965 = vand.u32 %v109, 4294901760
    %5966 = vmatpush1.msra.mxu0 %v5965
    %5967 = vmatprep.subr.mxu0 0.0
    %v5968 = vand.u32 %v108, 4294901760
    %5969 = vmatpush1.msra.mxu0 %v5968
    %5970 = vmatprep.subr.mxu0 0.0
    %v5971 = vand.u32 %v107, 4294901760
    %5972 = vmatpush1.msra.mxu0 %v5971
    %5973 = vmatprep.subr.mxu0 0.0
    %v5974 = vand.u32 %v106, 4294901760
    %5975 = vmatpush1.msra.mxu0 %v5974
    %5976 = vmatprep.subr.mxu0 0.0
    %v5977 = vand.u32 %v105, 4294901760
    %5978 = vmatpush1.msra.mxu0 %v5977
    %5979 = vmatprep.subr.mxu0 0.0
    %v5980 = vand.u32 %v104, 4294901760
    %5981 = vmatpush1.msra.mxu0 %v5980
    %5982 = vmatprep.subr.mxu0 0.0
    %v5983 = vand.u32 %v103, 4294901760
    %5984 = vmatpush1.msra.mxu0 %v5983
    %5985 = vmatprep.subr.mxu0 0.0
    %v5986 = vand.u32 %v102, 4294901760
    %5987 = vmatpush1.msra.mxu0 %v5986
    %5988 = vmatprep.subr.mxu0 0.0
    %v5989 = vand.u32 %v101, 4294901760
    %5990 = vmatpush1.msra.mxu0 %v5989
    %5991 = vmatprep.subr.mxu0 0.0
    %v5992 = vand.u32 %v100, 4294901760
    %5993 = vmatpush1.msra.mxu0 %v5992
    %5994 = vmatprep.subr.mxu0 0.0
    %v5995 = vand.u32 %v99, 4294901760
    %5996 = vmatpush1.msra.mxu0 %v5995
    %5997 = vmatprep.subr.mxu0 0.0
    %v5998 = vand.u32 %v98, 4294901760
    %5999 = vmatpush1.msra.mxu0 %v5998
    %6000 = vmatprep.subr.mxu0 0.0
    %v6001 = vand.u32 %v97, 4294901760
    %6002 = vmatpush1.msra.mxu0 %v6001
    %6003 = vmatprep.subr.mxu0 0.0
    %v6004 = vand.u32 %v96, 4294901760
    %6005 = vmatpush1.msra.mxu0 %v6004
    %6006 = vmatprep.subr.mxu0 0.0
    %v6007 = vand.u32 %v95, 4294901760
    %6008 = vmatpush1.msra.mxu0 %v6007
    %6009 = vmatprep.subr.mxu0 0.0
    %6010 = vmatpush2.msra.mxu0 0.0
    %6011 = vmatprep.subr.mxu0 0.0
    %6012 = vmatpush2.msra.mxu0 0.0
    %6013 = vmatprep.subr.mxu0 0.0
    %6014 = vmatpush2.msra.mxu0 0.0
    %6015 = vmatprep.subr.mxu0 0.0
    %6016 = vmatpush2.msra.mxu0 0.0
    %6017 = vmatprep.subr.mxu0 0.0
    %6018 = vmatpush2.msra.mxu0 0.0
    %6019 = vmatprep.subr.mxu0 0.0
    %6020 = vmatpush2.msra.mxu0 0.0
    %6021 = vmatprep.subr.mxu0 0.0
    %6022 = vmatpush2.msra.mxu0 0.0
    %6023 = vmatprep.subr.mxu0 0.0
    %6024 = vmatpush2.msra.mxu0 0.0
    %6025 = vmatprep.subr.mxu0 0.0
    %6026 = vmatpush2.msra.mxu0 0.0
    %6027 = vmatprep.subr.mxu0 0.0
    %6028 = vmatpush2.msra.mxu0 0.0
    %6029 = vmatprep.subr.mxu0 0.0
    %6030 = vmatpush2.msra.mxu0 0.0
    %6031 = vmatprep.subr.mxu0 0.0
    %6032 = vmatpush2.msra.mxu0 0.0
    %6033 = vmatprep.subr.mxu0 0.0
    %6034 = vmatpush2.msra.mxu0 0.0
    %6035 = vmatprep.subr.mxu0 0.0
    %6036 = vmatpush2.msra.mxu0 0.0
    %6037 = vmatprep.subr.mxu0 0.0
    %6038 = vmatpush2.msra.mxu0 0.0
    %6039 = vmatprep.subr.mxu0 0.0
    %6040 = vmatpush2.msra.mxu0 0.0
    %6041 = vmatprep.mubr.f32.mxu0 0.0
    %v6042 = vand.u32 %v5361, 4294901760
    %6043 = vmatmul.mubr.f32.gmra.mxu0 %v6042
    %v6044 = vpop.f32.mrf.mxu0
    %v6045 = vadd.f32 %v5952, %v6044
    %v6046 = vpop.f32.mrf.mxu0
    %6047 = vmatprep.mubr.f32.mxu0 0.0
    %v6048 = vand.u32 %v5367, 4294901760
    %6049 = vmatmul.mubr.f32.gmra.mxu0 %v6048
    %v6050 = vpop.f32.mrf.mxu0
    %v6051 = vadd.f32 %v5958, %v6050
    %v6052 = vpop.f32.mrf.mxu0
    %6053 = vdwg.mxu0
    %v6054 = vmul.f32 %v1295, %v1295
    %v6055 = vmul.f32 %v1301, %v1301
    %v6056 = vmul.f32 %v2481, %v2481
    %v6057 = vmul.f32 %v2487, %v2487
    %v6058 = vmul.f32 %v1295, %v2481
    %v6059 = vmul.f32 %v1301, %v2487
    %v6060 = vsub.f32 %v3669, %v6054
    %v6061 = vsub.f32 %v3675, %v6055
    %v6062 = vsub.f32 %v4857, %v6056
    %v6063 = vsub.f32 %v4863, %v6057
    %v6064 = vsub.f32 %v6045, %v6058
    %v6065 = vsub.f32 %v6051, %v6059
    %v6066 = vmul.f32 %v6058, 2.0
    %v6067 = vmul.f32 %v6059, 2.0
    %v6068 = vadd.f32 %v6066, 0.0001
    %v6069 = vadd.f32 %v6067, 0.0001
    %v6070 = vmul.f32 %v6064, 2.0
    %v6071 = vmul.f32 %v6065, 2.0
    %v6072 = vadd.f32 %v6070, 0.0009
    %v6073 = vadd.f32 %v6071, 0.0009
    %v6074 = vmul.f32 %v6068, %v6072
    %v6075 = vmul.f32 %v6069, %v6073
    %v6076 = vadd.f32 %v6054, %v6056
    %v6077 = vadd.f32 %v6055, %v6057
    %v6078 = vadd.f32 %v6076, 0.0001
    %v6079 = vadd.f32 %v6077, 0.0001
    %v6080 = vadd.f32 %v6060, %v6062
    %v6081 = vadd.f32 %v6061, %v6063
    %v6082 = vadd.f32 %v6080, 0.0009
    %v6083 = vadd.f32 %v6081, 0.0009
    %v6084 = vmul.f32 %v6078, %v6082
    %v6085 = vmul.f32 %v6079, %v6083
    %v6086 = vrcp.pop %v6084
    %v6087 = vmul.f32 %v6074, %v6086
    %v6088 = vrcp.pop %v6085
    %v6089 = vmul.f32 %v6075, %v6088
    %v6090 = vld [vmem:[#allocation10] sm:$0xff]
    %v6091 = vld [vmem:[#allocation10 + $0x8] sm:$0xff]
    %v6092 = vadd.f32 %v6090, %v6087
    %v6093 = vadd.f32 %v6091, %v6089
    %6094 = vst [vmem:[#allocation10] sm:$0xff] %v6092
    %6095 = vst [vmem:[#allocation10 + $0x8] sm:$0xff] %v6093
    // Predicated region
    $region38: #{tpu_custom_call.1} parent=1 // pred_check
      _
    $region39: #{tpu_custom_call.1} parent=1 // pred_check_branch
      %6097 = sbr.rel (0) target = $region41
    $region40: #{tpu_custom_call.1} parent=1 // pred_region
      %s6099 = ssub.s32 256, 256
      %6100 = vsyncadd [#allocation4], %s6099
      %s6101 = sshll.u32 [#allocation10], 4
      %s6102 = int_to_ptr.vmem [resolvable:$true] %s6101
      %6107 = dma.vmem_to_hbm [thread:$0]  %s6102, 256, %s4, [#allocation4], 128, 128, 8
    $region41: #{tpu_custom_call.1} parent=1 // pred_fallthru
      _
    // Predicated region
    $region42: #{tpu_custom_call.1} parent=1 // pred_check
      _
    $region43: #{tpu_custom_call.1} parent=1 // pred_check_branch
      %6109 = sbr.rel (0) target = $region45
    $region44: #{tpu_custom_call.1} parent=1 // pred_region
      %6110 = dma.done [#allocation4], 256
    $region45: #{tpu_custom_call.1} parent=1 // pred_fallthru
      _
    %6111 = vsyncpa [#allocation3], 1
    %6112 = vsyncpa [#allocation6], 1
    %6113 = vsyncpa [#allocation9], 1
    %6114 = vsyncpa [#allocation4], 1

</llo_original>
